<compile_context>
chip_gen: v6e
topology: v6e:2x2x1
jax: 0.10.0
libtpu: 0.0.40
codegen_flags: <defaults>
</compile_context>

<pallas_src>
import functools

import jax
import jax.numpy as jnp
from jax.experimental import pallas as pl
from jax.experimental.pallas import tpu as pltpu

_EDGE_BLOCK = 1024    # edges per grid step (multiple of 128 when E > block)


def _silu(x):
    return x * jax.nn.sigmoid(x)


def _vmem_limit_bytes():
    """VMEM budget: ~3/4 of physical capacity, capped at 100 MiB."""
    cap = 128 * 1024 * 1024
    try:
        info = pltpu.get_tpu_info()
        cap = int(getattr(info, "vmem_capacity_bytes", cap)) or cap
    except Exception:
        pass
    return min((cap * 3) // 4, 100 * 1024 * 1024)


# ---------------------------------------------------------------------------
# Pallas kernel: one full EGNN_sparse layer, gridded over edge blocks
# ---------------------------------------------------------------------------
def egnn_layer_kernel(
    # edge-blocked inputs
    src_ref,        # (TE, 1) int32  edge_index[0] (source j)
    dst_ref,        # (TE, 1) int32  edge_index[1] (target i)
    ea_ref,         # (TE, A) bf16   edge attributes
    # VMEM-resident node tables (constant index_map)
    feats_ref,      # (N, F)  f32
    coors_ref,      # (N, P)  f32
    proj_i_ref,     # (N, H)  bf16   feats @ we1_xi   (H = hid_e)
    proj_j_ref,     # (N, H)  bf16   feats @ we1_xj
    # VMEM-resident weights (matmul weights bf16, biases / LN params f32)
    we1_ea_ref, we1_rd_ref, be1_ref,
    we2_ref, be2_ref,
    wc1_ref, bc1_ref, wc2_ref, bc2_ref,
    ln_g_ref, ln_b_ref,
    wn1_h_ref, wn1_m_ref, bn1_ref, wn2_ref, bn2_ref,
    # output (single lane-dense slab, written on the last grid step)
    out_ref,        # (N, P + F) f32   [coors_out | feats_out]
    # scratch accumulators
    acc_m_ref,      # (N, m) f32   aggregated messages m_i
    acc_c_ref,      # (N, P) f32   aggregated weighted rel_coors mhat_i
):
    step = pl.program_id(0)
    te = src_ref.shape[0]
    n_nodes = feats_ref.shape[0]
    pos_dim = coors_ref.shape[1]
    f32 = jnp.float32
    bf16 = jnp.bfloat16

    @pl.when(step == 0)
    def _init():
        acc_m_ref[...] = jnp.zeros_like(acc_m_ref)
        acc_c_ref[...] = jnp.zeros_like(acc_c_ref)

    # ---- one-hot gather/scatter matrices from the int32 edge indices -------
    # f32 build (safe lowering on all TPU gens, and needed in f32 for the
    # coordinate path + scatter); exact bf16 copies feed the MXU gathers.
    lane_nodes = jax.lax.broadcasted_iota(jnp.int32, (te, n_nodes), 1)
    g_src_f = jnp.where(lane_nodes == src_ref[...], 1.0, 0.0).astype(f32)  # (TE, N)
    g_dst_f = jnp.where(lane_nodes == dst_ref[...], 1.0, 0.0).astype(f32)  # pad -> 0 row
    g_src_bf = g_src_f.astype(bf16)
    g_dst_bf = g_dst_f.astype(bf16)

    # ---- coordinate path, fully in f32 (fused double gather) ---------------
    rel_coors = jnp.dot(g_src_f - g_dst_f, coors_ref[...],
                        preferred_element_type=f32)                        # (TE, P)
    rel_dist = jnp.sum(rel_coors * rel_coors, axis=-1, keepdims=True)      # (TE, 1)

    # ---- edge MLP: Linear -> SiLU -> Linear -> SiLU -------------------------
    # First linear layer's x_i/x_j blocks were pre-applied at node level, so
    # the gathers directly produce hid_e-wide rows.
    h = (jnp.dot(g_dst_bf, proj_i_ref[...], preferred_element_type=f32)
         + jnp.dot(g_src_bf, proj_j_ref[...], preferred_element_type=f32)
         + jnp.dot(ea_ref[...], we1_ea_ref[...], preferred_element_type=f32)
         + rel_dist * we1_rd_ref[...]
         + be1_ref[...])
    h = _silu(h)
    m_ij = _silu(jnp.dot(h.astype(bf16), we2_ref[...],
                         preferred_element_type=f32) + be2_ref[...])       # (TE, m)

    # ---- coors MLP -> per-edge scalar weight on rel_coors -------------------
    cw = _silu(jnp.dot(m_ij.astype(bf16), wc1_ref[...],
                       preferred_element_type=f32) + bc1_ref[...])
    coor_wij = (jnp.dot(cw.astype(bf16), wc2_ref[...],
                        preferred_element_type=f32) + bc2_ref[...])        # (TE, 1)
    wcoors = coor_wij * rel_coors          # coors_norm = Identity           (TE, P)

    # ---- scatter-add via transposed contraction (f32, exact segment_sum) ----
    dimnums = (((0,), (0,)), ((), ()))     # contract the TE axis of both
    acc_m_ref[...] += jax.lax.dot_general(g_dst_f, m_ij, dimnums,
                                          preferred_element_type=f32)      # (N, m)
    acc_c_ref[...] += jax.lax.dot_general(g_dst_f, wcoors, dimnums,
                                          preferred_element_type=f32)      # (N, P)

    # ---- finalize on the last edge block: node / coordinate update ----------
    @pl.when(step == pl.num_programs(0) - 1)
    def _finalize():
        feats = feats_ref[...]
        coors = coors_ref[...]

        out_ref[:, :pos_dim] = coors + acc_c_ref[...]

        # node_norm = LayerNorm(feats_dim), eps = 1e-5 (PyTorch default)
        mu = jnp.mean(feats, axis=-1, keepdims=True)
        var = jnp.mean((feats - mu) ** 2, axis=-1, keepdims=True)
        ln = (feats - mu) * jax.lax.rsqrt(var + 1e-5) * ln_g_ref[...] + ln_b_ref[...]

        nh = _silu(
            jnp.dot(ln.astype(bf16), wn1_h_ref[...], preferred_element_type=f32)
            + jnp.dot(acc_m_ref[...].astype(bf16), wn1_m_ref[...],
                      preferred_element_type=f32)
            + bn1_ref[...])
        nh = jnp.dot(nh.astype(bf16), wn2_ref[...],
                     preferred_element_type=f32) + bn2_ref[...]
        out_ref[:, pos_dim:] = feats + nh


# ---------------------------------------------------------------------------
# Per-layer pallas_call wrapper
# ---------------------------------------------------------------------------
def _run_layer(feats, coors, src_col, dst_col, edge_attr_bf, p, te):
    n_nodes, feats_dim = feats.shape
    pos_dim = coors.shape[1]
    e_pad = src_col.shape[0]
    n_blocks = e_pad // te
    m_dim = p["we2"].shape[1]
    attr_dim = edge_attr_bf.shape[1]
    bf16 = jnp.bfloat16

    def wbf(name):
        return p[name].astype(bf16)

    # Push the edge-MLP first-layer weights through the gather: project the
    # node features once per layer (tiny N x F x hid_e matmuls in XLA).
    feats_bf = feats.astype(bf16)
    proj_i = jnp.dot(feats_bf, wbf("we1_xi"),
                     preferred_element_type=jnp.float32).astype(bf16)
    proj_j = jnp.dot(feats_bf, wbf("we1_xj"),
                     preferred_element_type=jnp.float32).astype(bf16)

    args = (
        src_col, dst_col, edge_attr_bf,
        feats, coors, proj_i, proj_j,
        wbf("we1_ea"), p["we1_rd"], p["be1"],
        wbf("we2"), p["be2"],
        wbf("wc1"), p["bc1"], wbf("wc2"), p["bc2"],
        p["ln_g"], p["ln_b"],
        wbf("wn1_h"), wbf("wn1_m"), p["bn1"], wbf("wn2"), p["bn2"],
    )

    def resident(a):  # whole array stays in VMEM across the edge-block grid
        return pl.BlockSpec(a.shape, lambda e: (0,) * a.ndim)

    in_specs = [
        pl.BlockSpec((te, 1), lambda e: (e, 0)),          # src
        pl.BlockSpec((te, 1), lambda e: (e, 0)),          # dst
        pl.BlockSpec((te, attr_dim), lambda e: (e, 0)),   # edge_attr
    ] + [resident(a) for a in args[3:]]

    out = pl.pallas_call(
        egnn_layer_kernel,
        out_shape=jax.ShapeDtypeStruct((n_nodes, pos_dim + feats_dim),
                                       jnp.float32),
        grid_spec=pltpu.PrefetchScalarGridSpec(
            num_scalar_prefetch=0,
            grid=(n_blocks,),
            in_specs=in_specs,
            out_specs=pl.BlockSpec((n_nodes, pos_dim + feats_dim),
                                   lambda e: (0, 0)),
            scratch_shapes=[pltpu.VMEM((n_nodes, m_dim), jnp.float32),
                            pltpu.VMEM((n_nodes, pos_dim), jnp.float32)],
        ),
        compiler_params=pltpu.CompilerParams(
            dimension_semantics=("arbitrary",),           # edge axis is a reduction
            vmem_limit_bytes=_vmem_limit_bytes(),
        ),
    )(*args)
    return out


# ---------------------------------------------------------------------------
# Edge preparation (layer-invariant; hoisted out of the layer loop)
# ---------------------------------------------------------------------------
def _round_up(v, m):
    return ((v + m - 1) // m) * m


def _prep_edges(edge_index, edge_attr, n_nodes, block_target=_EDGE_BLOCK):
    src = edge_index[0].astype(jnp.int32)
    dst = edge_index[1].astype(jnp.int32)
    e = src.shape[0]
    if e <= block_target:
        e_pad = _round_up(max(e, 16), 16)
        te = e_pad
    else:
        e_pad = _round_up(e, block_target)
        te = block_target
    pad = e_pad - e
    if pad:
        src = jnp.concatenate([src, jnp.zeros((pad,), jnp.int32)])
        # Padded edges target node index N (out of range) -> all-zero one-hot
        # row: they contribute nothing to the scatter.
        dst = jnp.concatenate([dst, jnp.full((pad,), n_nodes, jnp.int32)])
        edge_attr = jnp.concatenate(
            [edge_attr, jnp.zeros((pad, edge_attr.shape[1]), edge_attr.dtype)],
            axis=0)
    return (src.reshape(e_pad, 1), dst.reshape(e_pad, 1),
            edge_attr.astype(jnp.bfloat16), te)


# ---------------------------------------------------------------------------
# Parameter init (deterministic, mimics module __init__ shapes)
# ---------------------------------------------------------------------------
def init_params(key, n_layers, feats_dim, pos_dim, edge_attr_dim, m_dim,
                init_eps=1e-3):
    edge_in = feats_dim * 2 + edge_attr_dim + 1     # fourier_features = 0
    hid_e = edge_in * 2
    params = []
    for _ in range(n_layers):
        ks = jax.random.split(key, 16)
        key = ks[0]

        def w(k, shape):
            return (init_eps * jax.random.normal(k, shape)).astype(jnp.float32)

        def b(k, shape, fan_in):
            bound = 1.0 / jnp.sqrt(float(fan_in))
            return jax.random.uniform(
                k, shape, minval=-bound, maxval=bound).astype(jnp.float32)

        we1 = w(ks[1], (edge_in, hid_e))
        wn1 = w(ks[9], (feats_dim + m_dim, feats_dim * 2))
        layer = {
            # edge MLP layer 1, split by concat blocks [x_i | x_j | ea | dist]
            "we1_xi": we1[:feats_dim],
            "we1_xj": we1[feats_dim:2 * feats_dim],
            "we1_ea": we1[2 * feats_dim:2 * feats_dim + edge_attr_dim],
            "we1_rd": we1[2 * feats_dim + edge_attr_dim:],
            "be1": b(ks[2], (1, hid_e), edge_in),
            "we2": w(ks[3], (hid_e, m_dim)),
            "be2": b(ks[4], (1, m_dim), hid_e),
            # coors MLP
            "wc1": w(ks[5], (m_dim, m_dim * 4)),
            "bc1": b(ks[6], (1, m_dim * 4), m_dim),
            "wc2": w(ks[7], (m_dim * 4, 1)),
            "bc2": b(ks[8], (1, 1), m_dim * 4),
            # LayerNorm(feats_dim)
            "ln_g": jnp.ones((1, feats_dim), jnp.float32),
            "ln_b": jnp.zeros((1, feats_dim), jnp.float32),
            # node MLP layer 1, split by concat blocks [hidden | m_i]
            "wn1_h": wn1[:feats_dim],
            "wn1_m": wn1[feats_dim:],
            "bn1": b(ks[10], (1, feats_dim * 2), feats_dim + m_dim),
            "wn2": w(ks[11], (feats_dim * 2, feats_dim)),
            "bn2": b(ks[12], (1, feats_dim), feats_dim * 2),
        }
        params.append(layer)
    return params


# ---------------------------------------------------------------------------
# Network forward (glue in JAX, all per-layer compute in ONE Pallas kernel)
# ---------------------------------------------------------------------------
@functools.partial(jax.jit, static_argnames=("pos_dim",))
def egnn_sparse_network_forward(x, edge_index, edge_attr, params, pos_dim=3):
    """x: (N, pos_dim+feats_dim); edge_index: (2, E) int; edge_attr: (E, A)."""
    n_nodes = x.shape[0]
    coors = x[:, :pos_dim]
    feats = x[:, pos_dim:]

    # embedd_token with empty embedding lists is a no-op; recalc=0, so the edge
    # prep below is layer-invariant and hoisted out of the layer loop.
    src_col, dst_col, edge_attr_bf, te = _prep_edges(edge_index, edge_attr,
                                                     n_nodes)
    out = x
    for p in params:
        out = _run_layer(feats, coors, src_col, dst_col, edge_attr_bf, p, te)
        coors = out[:, :pos_dim]
        feats = out[:, pos_dim:]
    return out


# ---------------------------------------------------------------------------
# Pure-JAX reference (true module semantics, f32) for correctness check
# ---------------------------------------------------------------------------
def _reference_forward(x, edge_index, edge_attr, params, pos_dim=3):
    def silu(v):
        return v * jax.nn.sigmoid(v)

    n_nodes = x.shape[0]
    src, dst = edge_index[0], edge_index[1]
    for p in params:
        coors, feats = x[:, :pos_dim], x[:, pos_dim:]
        x_j, x_i = feats[src], feats[dst]
        rel_coors = coors[src] - coors[dst]
        rel_dist = jnp.sum(rel_coors ** 2, axis=-1, keepdims=True)

        h = (x_i @ p["we1_xi"] + x_j @ p["we1_xj"] + edge_attr @ p["we1_ea"]
             + rel_dist @ p["we1_rd"] + p["be1"])
        m_ij = silu(silu(h) @ p["we2"] + p["be2"])

        cw = silu(m_ij @ p["wc1"] + p["bc1"]) @ p["wc2"] + p["bc2"]
        mhat = jax.ops.segment_sum(cw * rel_coors, dst, num_segments=n_nodes)
        coors_out = coors + mhat

        m_i = jax.ops.segment_sum(m_ij, dst, num_segments=n_nodes)
        mu = jnp.mean(feats, axis=-1, keepdims=True)
        var = jnp.mean((feats - mu) ** 2, axis=-1, keepdims=True)
        ln = (feats - mu) * jax.lax.rsqrt(var + 1e-5) * p["ln_g"] + p["ln_b"]
        nh = silu(ln @ p["wn1_h"] + m_i @ p["wn1_m"] + p["bn1"]) @ p["wn2"] + p["bn2"]
        feats_out = feats + nh

        x = jnp.concatenate([coors_out, feats_out], axis=-1)
    return x


# ---------------------------------------------------------------------------
if __name__ == "__main__":
    N_LAYERS = 2
    POS_DIM = 3
    FEATS_DIM = 32
    EDGE_ATTR_DIM = 4
    M_DIM = 16
    N_NODES = 16
    N_EDGES = 64

    key = jax.random.PRNGKey(0)
    k_x, k_e, k_ea, k_p = jax.random.split(key, 4)

    x = jax.random.normal(k_x, (N_NODES, POS_DIM + FEATS_DIM), jnp.float32)
    edge_index = jax.random.randint(k_e, (2, N_EDGES), 0, N_NODES, jnp.int32)
    edge_attr = jax.random.normal(k_ea, (N_EDGES, EDGE_ATTR_DIM), jnp.float32)

    params = init_params(k_p, N_LAYERS, FEATS_DIM, POS_DIM,
                         EDGE_ATTR_DIM, M_DIM)

    out = egnn_sparse_network_forward(x, edge_index, edge_attr, params,
                                      pos_dim=POS_DIM)
    out = jax.block_until_ready(out)

    ref = _reference_forward(x, edge_index, edge_attr, params, pos_dim=POS_DIM)
    assert out.shape == (N_NODES, POS_DIM + FEATS_DIM)
    # bf16 MXU operands on the feature path (f32 accumulation / f32 coordinate
    # and scatter path) -> slightly looser tolerance than pure f32
    assert jnp.allclose(out, ref, rtol=2e-2, atol=2e-3), "kernel/reference mismatch"

    print("KERNEL_OK")
</pallas_src>

<mosaic_0001>
module attributes {stable_mosaic.version = 11 : i64} {
  func.func @egnn_layer_kernel(%arg0: i32, %arg1: memref<64x1xi32, #tpu.memory_space<vmem>>, %arg2: memref<64x1xi32, #tpu.memory_space<vmem>>, %arg3: memref<64x4xbf16, #tpu.memory_space<vmem>>, %arg4: memref<16x32xf32, #tpu.memory_space<vmem>>, %arg5: memref<16x3xf32, #tpu.memory_space<vmem>>, %arg6: memref<16x138xbf16, #tpu.memory_space<vmem>>, %arg7: memref<16x138xbf16, #tpu.memory_space<vmem>>, %arg8: memref<4x138xbf16, #tpu.memory_space<vmem>>, %arg9: memref<1x138xf32, #tpu.memory_space<vmem>>, %arg10: memref<1x138xf32, #tpu.memory_space<vmem>>, %arg11: memref<138x16xbf16, #tpu.memory_space<vmem>>, %arg12: memref<1x16xf32, #tpu.memory_space<vmem>>, %arg13: memref<16x64xbf16, #tpu.memory_space<vmem>>, %arg14: memref<1x64xf32, #tpu.memory_space<vmem>>, %arg15: memref<64x1xbf16, #tpu.memory_space<vmem>>, %arg16: memref<1x1xf32, #tpu.memory_space<vmem>>, %arg17: memref<1x32xf32, #tpu.memory_space<vmem>>, %arg18: memref<1x32xf32, #tpu.memory_space<vmem>>, %arg19: memref<32x64xbf16, #tpu.memory_space<vmem>>, %arg20: memref<16x64xbf16, #tpu.memory_space<vmem>>, %arg21: memref<1x64xf32, #tpu.memory_space<vmem>>, %arg22: memref<64x32xbf16, #tpu.memory_space<vmem>>, %arg23: memref<1x32xf32, #tpu.memory_space<vmem>>, %arg24: memref<16x35xf32, #tpu.memory_space<vmem>>, %arg25: memref<16x16xf32, #tpu.memory_space<vmem>>, %arg26: memref<16x3xf32, #tpu.memory_space<vmem>>) attributes {dimension_semantics = [#tpu.dimension_semantics<arbitrary>], iteration_bounds = array<i64: 1>, scalar_prefetch = 0 : i64, scratch_operands = 2 : i64, tpu.core_type = #tpu.core_type<tc>, window_params = [{transform_indices = @transform_0, window_bounds = array<i64: 64, 1>}, {transform_indices = @transform_1, window_bounds = array<i64: 64, 1>}, {transform_indices = @transform_2, window_bounds = array<i64: 64, 4>}, {pipeline_mode = #tpu.pipeline_mode<synchronous>, transform_indices = @transform_3, window_bounds = array<i64: 16, 32>}, {pipeline_mode = #tpu.pipeline_mode<synchronous>, transform_indices = @transform_4, window_bounds = array<i64: 16, 3>}, {pipeline_mode = #tpu.pipeline_mode<synchronous>, transform_indices = @transform_5, window_bounds = array<i64: 16, 138>}, {pipeline_mode = #tpu.pipeline_mode<synchronous>, transform_indices = @transform_6, window_bounds = array<i64: 16, 138>}, {pipeline_mode = #tpu.pipeline_mode<synchronous>, transform_indices = @transform_7, window_bounds = array<i64: 4, 138>}, {pipeline_mode = #tpu.pipeline_mode<synchronous>, transform_indices = @transform_8, window_bounds = array<i64: 1, 138>}, {pipeline_mode = #tpu.pipeline_mode<synchronous>, transform_indices = @transform_9, window_bounds = array<i64: 1, 138>}, {pipeline_mode = #tpu.pipeline_mode<synchronous>, transform_indices = @transform_10, window_bounds = array<i64: 138, 16>}, {pipeline_mode = #tpu.pipeline_mode<synchronous>, transform_indices = @transform_11, window_bounds = array<i64: 1, 16>}, {pipeline_mode = #tpu.pipeline_mode<synchronous>, transform_indices = @transform_12, window_bounds = array<i64: 16, 64>}, {pipeline_mode = #tpu.pipeline_mode<synchronous>, transform_indices = @transform_13, window_bounds = array<i64: 1, 64>}, {pipeline_mode = #tpu.pipeline_mode<synchronous>, transform_indices = @transform_14, window_bounds = array<i64: 64, 1>}, {pipeline_mode = #tpu.pipeline_mode<synchronous>, transform_indices = @transform_15, window_bounds = array<i64: 1, 1>}, {pipeline_mode = #tpu.pipeline_mode<synchronous>, transform_indices = @transform_16, window_bounds = array<i64: 1, 32>}, {pipeline_mode = #tpu.pipeline_mode<synchronous>, transform_indices = @transform_17, window_bounds = array<i64: 1, 32>}, {pipeline_mode = #tpu.pipeline_mode<synchronous>, transform_indices = @transform_18, window_bounds = array<i64: 32, 64>}, {pipeline_mode = #tpu.pipeline_mode<synchronous>, transform_indices = @transform_19, window_bounds = array<i64: 16, 64>}, {pipeline_mode = #tpu.pipeline_mode<synchronous>, transform_indices = @transform_20, window_bounds = array<i64: 1, 64>}, {pipeline_mode = #tpu.pipeline_mode<synchronous>, transform_indices = @transform_21, window_bounds = array<i64: 64, 32>}, {pipeline_mode = #tpu.pipeline_mode<synchronous>, transform_indices = @transform_22, window_bounds = array<i64: 1, 32>}, {pipeline_mode = #tpu.pipeline_mode<synchronous>, transform_indices = @transform_23, window_bounds = array<i64: 16, 35>}]} {
    %c0_i32 = arith.constant 0 : i32
    %0 = arith.cmpi eq, %arg0, %c0_i32 : i32
    %1 = arith.extui %0 : i1 to i32
    %c0_i32_0 = arith.constant 0 : i32
    %2 = arith.cmpi ne, %1, %c0_i32_0 : i32
    scf.if %2 {
      %cst_56 = arith.constant 0.000000e+00 : f32
      %90 = vector.broadcast %cst_56 : f32 to vector<16x16xf32>
      %c0_57 = arith.constant 0 : index
      %c0_58 = arith.constant 0 : index
      %91 = vector.load %arg25[%c0_57, %c0_58] : memref<16x16xf32, #tpu.memory_space<vmem>>, vector<16x16xf32>
      tpu.vector_store %arg25[%c0_57, %c0_58], %90 {strides = array<i32>} : memref<16x16xf32, #tpu.memory_space<vmem>>, vector<16x16xf32>,
      %cst_59 = arith.constant 0.000000e+00 : f32
      %92 = vector.broadcast %cst_59 : f32 to vector<16x3xf32>
      %c0_60 = arith.constant 0 : index
      %c0_61 = arith.constant 0 : index
      %93 = vector.load %arg26[%c0_60, %c0_61] : memref<16x3xf32, #tpu.memory_space<vmem>>, vector<16x3xf32>
      tpu.vector_store %arg26[%c0_60, %c0_61], %92 {strides = array<i32>} : memref<16x3xf32, #tpu.memory_space<vmem>>, vector<16x3xf32>,
    } else {
    }
    %3 = tpu.iota {dimensions = array<i32: 1>} : vector<64x16xi32>
    %c0 = arith.constant 0 : index
    %c0_1 = arith.constant 0 : index
    %4 = vector.load %arg1[%c0, %c0_1] : memref<64x1xi32, #tpu.memory_space<vmem>>, vector<64x1xi32>
    %5 = vector.broadcast %4 : vector<64x1xi32> to vector<64x16xi32>
    %6 = arith.cmpi eq, %3, %5 : vector<64x16xi32>
    %cst = arith.constant 1.000000e+00 : f32
    %cst_2 = arith.constant 0.000000e+00 : f32
    %7 = vector.broadcast %cst : f32 to vector<64x16xf32>
    %8 = vector.broadcast %cst_2 : f32 to vector<64x16xf32>
    %9 = arith.select %6, %7, %8 : vector<64x16xi1>, vector<64x16xf32>
    %c0_3 = arith.constant 0 : index
    %c0_4 = arith.constant 0 : index
    %10 = vector.load %arg2[%c0_3, %c0_4] : memref<64x1xi32, #tpu.memory_space<vmem>>, vector<64x1xi32>
    %11 = vector.broadcast %10 : vector<64x1xi32> to vector<64x16xi32>
    %12 = arith.cmpi eq, %3, %11 : vector<64x16xi32>
    %cst_5 = arith.constant 1.000000e+00 : f32
    %cst_6 = arith.constant 0.000000e+00 : f32
    %13 = vector.broadcast %cst_5 : f32 to vector<64x16xf32>
    %14 = vector.broadcast %cst_6 : f32 to vector<64x16xf32>
    %15 = arith.select %12, %13, %14 : vector<64x16xi1>, vector<64x16xf32>
    %16 = arith.truncf %9 : vector<64x16xf32> to vector<64x16xbf16>
    %17 = arith.truncf %15 : vector<64x16xf32> to vector<64x16xbf16>
    %18 = arith.subf %9, %15 : vector<64x16xf32>
    %c0_7 = arith.constant 0 : index
    %c0_8 = arith.constant 0 : index
    %19 = vector.load %arg5[%c0_7, %c0_8] : memref<16x3xf32, #tpu.memory_space<vmem>>, vector<16x3xf32>
    %cst_9 = arith.constant dense<0.000000e+00> : vector<64x3xf32>
    %20 = tpu.matmul %18, %19, %cst_9 {dimension_numbers = #tpu.dot_dimension_numbers<[1], [0], [0], [1], [0, 0, 1, 1], [], []>} : vector<64x16xf32>, vector<16x3xf32>, vector<64x3xf32> -> vector<64x3xf32>
    %21 = arith.mulf %20, %20 : vector<64x3xf32>
    %cst_10 = arith.constant dense<0.000000e+00> : vector<64xf32>
    %22 = vector.multi_reduction <add>, %21, %cst_10 [1] : vector<64x3xf32> to vector<64xf32>
    %23 = vector.shape_cast %22 : vector<64xf32> to vector<64x1xf32>
    %c0_11 = arith.constant 0 : index
    %c0_12 = arith.constant 0 : index
    %24 = vector.load %arg6[%c0_11, %c0_12] : memref<16x138xbf16, #tpu.memory_space<vmem>>, vector<16x138xbf16>
    %cst_13 = arith.constant dense<0.000000e+00> : vector<64x138xf32>
    %25 = tpu.matmul %17, %24, %cst_13 {dimension_numbers = #tpu.dot_dimension_numbers<[1], [0], [0], [1], [0, 0, 1, 1], [], []>} : vector<64x16xbf16>, vector<16x138xbf16>, vector<64x138xf32> -> vector<64x138xf32>
    %c0_14 = arith.constant 0 : index
    %c0_15 = arith.constant 0 : index
    %26 = vector.load %arg7[%c0_14, %c0_15] : memref<16x138xbf16, #tpu.memory_space<vmem>>, vector<16x138xbf16>
    %cst_16 = arith.constant dense<0.000000e+00> : vector<64x138xf32>
    %27 = tpu.matmul %16, %26, %cst_16 {dimension_numbers = #tpu.dot_dimension_numbers<[1], [0], [0], [1], [0, 0, 1, 1], [], []>} : vector<64x16xbf16>, vector<16x138xbf16>, vector<64x138xf32> -> vector<64x138xf32>
    %28 = arith.addf %25, %27 : vector<64x138xf32>
    %c0_17 = arith.constant 0 : index
    %c0_18 = arith.constant 0 : index
    %29 = vector.load %arg3[%c0_17, %c0_18] : memref<64x4xbf16, #tpu.memory_space<vmem>>, vector<64x4xbf16>
    %c0_19 = arith.constant 0 : index
    %c0_20 = arith.constant 0 : index
    %30 = vector.load %arg8[%c0_19, %c0_20] : memref<4x138xbf16, #tpu.memory_space<vmem>>, vector<4x138xbf16>
    %cst_21 = arith.constant dense<0.000000e+00> : vector<64x138xf32>
    %31 = tpu.matmul %29, %30, %cst_21 {dimension_numbers = #tpu.dot_dimension_numbers<[1], [0], [0], [1], [0, 0, 1, 1], [], []>} : vector<64x4xbf16>, vector<4x138xbf16>, vector<64x138xf32> -> vector<64x138xf32>
    %32 = arith.addf %28, %31 : vector<64x138xf32>
    %c0_22 = arith.constant 0 : index
    %c0_23 = arith.constant 0 : index
    %33 = vector.load %arg9[%c0_22, %c0_23] : memref<1x138xf32, #tpu.memory_space<vmem>>, vector<1x138xf32>
    %34 = vector.broadcast %23 : vector<64x1xf32> to vector<64x138xf32>
    %35 = vector.broadcast %33 : vector<1x138xf32> to vector<64x138xf32>
    %36 = arith.mulf %34, %35 : vector<64x138xf32>
    %37 = arith.addf %32, %36 : vector<64x138xf32>
    %c0_24 = arith.constant 0 : index
    %c0_25 = arith.constant 0 : index
    %38 = vector.load %arg10[%c0_24, %c0_25] : memref<1x138xf32, #tpu.memory_space<vmem>>, vector<1x138xf32>
    %39 = vector.broadcast %38 : vector<1x138xf32> to vector<64x138xf32>
    %40 = arith.addf %37, %39 : vector<64x138xf32>
    %41 = arith.negf %40 : vector<64x138xf32>
    %42 = math.exp %41 : vector<64x138xf32>
    %cst_26 = arith.constant 1.000000e+00 : f32
    %43 = vector.broadcast %cst_26 : f32 to vector<64x138xf32>
    %44 = arith.addf %43, %42 : vector<64x138xf32>
    %45 = arith.divf %43, %44 : vector<64x138xf32>
    %46 = arith.mulf %40, %45 : vector<64x138xf32>
    %47 = arith.truncf %46 : vector<64x138xf32> to vector<64x138xbf16>
    %c0_27 = arith.constant 0 : index
    %c0_28 = arith.constant 0 : index
    %48 = vector.load %arg11[%c0_27, %c0_28] : memref<138x16xbf16, #tpu.memory_space<vmem>>, vector<138x16xbf16>
    %cst_29 = arith.constant dense<0.000000e+00> : vector<64x16xf32>
    %49 = tpu.matmul %47, %48, %cst_29 {dimension_numbers = #tpu.dot_dimension_numbers<[1], [0], [0], [1], [0, 0, 1, 1], [], []>} : vector<64x138xbf16>, vector<138x16xbf16>, vector<64x16xf32> -> vector<64x16xf32>
    %c0_30 = arith.constant 0 : index
    %c0_31 = arith.constant 0 : index
    %50 = vector.load %arg12[%c0_30, %c0_31] : memref<1x16xf32, #tpu.memory_space<vmem>>, vector<1x16xf32>
    %51 = vector.broadcast %50 : vector<1x16xf32> to vector<64x16xf32>
    %52 = arith.addf %49, %51 : vector<64x16xf32>
    %53 = arith.negf %52 : vector<64x16xf32>
    %54 = math.exp %53 : vector<64x16xf32>
    %cst_32 = arith.constant 1.000000e+00 : f32
    %55 = vector.broadcast %cst_32 : f32 to vector<64x16xf32>
    %56 = arith.addf %55, %54 : vector<64x16xf32>
    %57 = arith.divf %55, %56 : vector<64x16xf32>
    %58 = arith.mulf %52, %57 : vector<64x16xf32>
    %59 = arith.truncf %58 : vector<64x16xf32> to vector<64x16xbf16>
    %c0_33 = arith.constant 0 : index
    %c0_34 = arith.constant 0 : index
    %60 = vector.load %arg13[%c0_33, %c0_34] : memref<16x64xbf16, #tpu.memory_space<vmem>>, vector<16x64xbf16>
    %cst_35 = arith.constant dense<0.000000e+00> : vector<64x64xf32>
    %61 = tpu.matmul %59, %60, %cst_35 {dimension_numbers = #tpu.dot_dimension_numbers<[1], [0], [0], [1], [0, 0, 1, 1], [], []>} : vector<64x16xbf16>, vector<16x64xbf16>, vector<64x64xf32> -> vector<64x64xf32>
    %c0_36 = arith.constant 0 : index
    %c0_37 = arith.constant 0 : index
    %62 = vector.load %arg14[%c0_36, %c0_37] : memref<1x64xf32, #tpu.memory_space<vmem>>, vector<1x64xf32>
    %63 = vector.broadcast %62 : vector<1x64xf32> to vector<64x64xf32>
    %64 = arith.addf %61, %63 : vector<64x64xf32>
    %65 = arith.negf %64 : vector<64x64xf32>
    %66 = math.exp %65 : vector<64x64xf32>
    %cst_38 = arith.constant 1.000000e+00 : f32
    %67 = vector.broadcast %cst_38 : f32 to vector<64x64xf32>
    %68 = arith.addf %67, %66 : vector<64x64xf32>
    %69 = arith.divf %67, %68 : vector<64x64xf32>
    %70 = arith.mulf %64, %69 : vector<64x64xf32>
    %71 = arith.truncf %70 : vector<64x64xf32> to vector<64x64xbf16>
    %c0_39 = arith.constant 0 : index
    %c0_40 = arith.constant 0 : index
    %72 = vector.load %arg15[%c0_39, %c0_40] : memref<64x1xbf16, #tpu.memory_space<vmem>>, vector<64x1xbf16>
    %cst_41 = arith.constant dense<0.000000e+00> : vector<64x1xf32>
    %73 = tpu.matmul %71, %72, %cst_41 {dimension_numbers = #tpu.dot_dimension_numbers<[1], [0], [0], [1], [0, 0, 1, 1], [], []>} : vector<64x64xbf16>, vector<64x1xbf16>, vector<64x1xf32> -> vector<64x1xf32>
    %c0_42 = arith.constant 0 : index
    %c0_43 = arith.constant 0 : index
    %74 = vector.load %arg16[%c0_42, %c0_43] : memref<1x1xf32, #tpu.memory_space<vmem>>, vector<1x1xf32>
    %75 = vector.broadcast %74 : vector<1x1xf32> to vector<64x1xf32>
    %76 = arith.addf %73, %75 : vector<64x1xf32>
    %77 = vector.broadcast %76 : vector<64x1xf32> to vector<64x3xf32>
    %78 = arith.mulf %77, %20 : vector<64x3xf32>
    %c0_44 = arith.constant 0 : index
    %c0_45 = arith.constant 0 : index
    %79 = vector.load %arg25[%c0_44, %c0_45] : memref<16x16xf32, #tpu.memory_space<vmem>>, vector<16x16xf32>
    %cst_46 = arith.constant dense<0.000000e+00> : vector<16x16xf32>
    %80 = tpu.matmul %15, %58, %cst_46 {dimension_numbers = #tpu.dot_dimension_numbers<[0], [0], [1], [1], [0, 1, 1, 1], [], []>} : vector<64x16xf32>, vector<64x16xf32>, vector<16x16xf32> -> vector<16x16xf32>
    %81 = arith.addf %79, %80 : vector<16x16xf32>
    %c0_47 = arith.constant 0 : index
    %c0_48 = arith.constant 0 : index
    %82 = vector.load %arg25[%c0_47, %c0_48] : memref<16x16xf32, #tpu.memory_space<vmem>>, vector<16x16xf32>
    tpu.vector_store %arg25[%c0_47, %c0_48], %81 {strides = array<i32>} : memref<16x16xf32, #tpu.memory_space<vmem>>, vector<16x16xf32>,
    %c0_49 = arith.constant 0 : index
    %c0_50 = arith.constant 0 : index
    %83 = vector.load %arg26[%c0_49, %c0_50] : memref<16x3xf32, #tpu.memory_space<vmem>>, vector<16x3xf32>
    %cst_51 = arith.constant dense<0.000000e+00> : vector<16x3xf32>
    %84 = tpu.matmul %15, %78, %cst_51 {dimension_numbers = #tpu.dot_dimension_numbers<[0], [0], [1], [1], [0, 1, 1, 1], [], []>} : vector<64x16xf32>, vector<64x3xf32>, vector<16x3xf32> -> vector<16x3xf32>
    %85 = arith.addf %83, %84 : vector<16x3xf32>
    %c0_52 = arith.constant 0 : index
    %c0_53 = arith.constant 0 : index
    %86 = vector.load %arg26[%c0_52, %c0_53] : memref<16x3xf32, #tpu.memory_space<vmem>>, vector<16x3xf32>
    tpu.vector_store %arg26[%c0_52, %c0_53], %85 {strides = array<i32>} : memref<16x3xf32, #tpu.memory_space<vmem>>, vector<16x3xf32>,
    %c0_i32_54 = arith.constant 0 : i32
    %87 = arith.cmpi eq, %arg0, %c0_i32_54 : i32
    %88 = arith.extui %87 : i1 to i32
    %c0_i32_55 = arith.constant 0 : i32
    %89 = arith.cmpi ne, %88, %c0_i32_55 : i32
    scf.if %89 {
      %c0_56 = arith.constant 0 : index
      %c0_57 = arith.constant 0 : index
      %90 = vector.load %arg4[%c0_56, %c0_57] : memref<16x32xf32, #tpu.memory_space<vmem>>, vector<16x32xf32>
      %c0_58 = arith.constant 0 : index
      %c0_59 = arith.constant 0 : index
      %91 = vector.load %arg5[%c0_58, %c0_59] : memref<16x3xf32, #tpu.memory_space<vmem>>, vector<16x3xf32>
      %c0_60 = arith.constant 0 : index
      %c0_61 = arith.constant 0 : index
      %92 = vector.load %arg26[%c0_60, %c0_61] : memref<16x3xf32, #tpu.memory_space<vmem>>, vector<16x3xf32>
      %93 = arith.addf %91, %92 : vector<16x3xf32>
      %c0_62 = arith.constant 0 : index
      %c0_63 = arith.constant 0 : index
      %94 = vector.load %arg24[%c0_62, %c0_63] : memref<16x35xf32, #tpu.memory_space<vmem>>, vector<16x3xf32>
      tpu.vector_store %arg24[%c0_62, %c0_63], %93 {strides = array<i32>} : memref<16x35xf32, #tpu.memory_space<vmem>>, vector<16x3xf32>,
      %cst_64 = arith.constant dense<0.000000e+00> : vector<16xf32>
      %95 = vector.multi_reduction <add>, %90, %cst_64 [1] : vector<16x32xf32> to vector<16xf32>
      %96 = vector.shape_cast %95 : vector<16xf32> to vector<16x1xf32>
      %cst_65 = arith.constant 3.200000e+01 : f32
      %97 = vector.broadcast %cst_65 : f32 to vector<16x1xf32>
      %98 = arith.divf %96, %97 : vector<16x1xf32>
      %99 = vector.broadcast %98 : vector<16x1xf32> to vector<16x32xf32>
      %100 = arith.subf %90, %99 : vector<16x32xf32>
      %101 = arith.mulf %100, %100 : vector<16x32xf32>
      %cst_66 = arith.constant dense<0.000000e+00> : vector<16xf32>
      %102 = vector.multi_reduction <add>, %101, %cst_66 [1] : vector<16x32xf32> to vector<16xf32>
      %103 = vector.shape_cast %102 : vector<16xf32> to vector<16x1xf32>
      %cst_67 = arith.constant 3.200000e+01 : f32
      %104 = vector.broadcast %cst_67 : f32 to vector<16x1xf32>
      %105 = arith.divf %103, %104 : vector<16x1xf32>
      %106 = vector.broadcast %98 : vector<16x1xf32> to vector<16x32xf32>
      %107 = arith.subf %90, %106 : vector<16x32xf32>
      %cst_68 = arith.constant 9.99999974E-6 : f32
      %108 = vector.broadcast %cst_68 : f32 to vector<16x1xf32>
      %109 = arith.addf %105, %108 : vector<16x1xf32>
      %110 = math.rsqrt %109 : vector<16x1xf32>
      %111 = vector.broadcast %110 : vector<16x1xf32> to vector<16x32xf32>
      %112 = arith.mulf %107, %111 : vector<16x32xf32>
      %c0_69 = arith.constant 0 : index
      %c0_70 = arith.constant 0 : index
      %113 = vector.load %arg17[%c0_69, %c0_70] : memref<1x32xf32, #tpu.memory_space<vmem>>, vector<1x32xf32>
      %114 = vector.broadcast %113 : vector<1x32xf32> to vector<16x32xf32>
      %115 = arith.mulf %112, %114 : vector<16x32xf32>
      %c0_71 = arith.constant 0 : index
      %c0_72 = arith.constant 0 : index
      %116 = vector.load %arg18[%c0_71, %c0_72] : memref<1x32xf32, #tpu.memory_space<vmem>>, vector<1x32xf32>
      %117 = vector.broadcast %116 : vector<1x32xf32> to vector<16x32xf32>
      %118 = arith.addf %115, %117 : vector<16x32xf32>
      %119 = arith.truncf %118 : vector<16x32xf32> to vector<16x32xbf16>
      %c0_73 = arith.constant 0 : index
      %c0_74 = arith.constant 0 : index
      %120 = vector.load %arg19[%c0_73, %c0_74] : memref<32x64xbf16, #tpu.memory_space<vmem>>, vector<32x64xbf16>
      %cst_75 = arith.constant dense<0.000000e+00> : vector<16x64xf32>
      %121 = tpu.matmul %119, %120, %cst_75 {dimension_numbers = #tpu.dot_dimension_numbers<[1], [0], [0], [1], [0, 0, 1, 1], [], []>} : vector<16x32xbf16>, vector<32x64xbf16>, vector<16x64xf32> -> vector<16x64xf32>
      %c0_76 = arith.constant 0 : index
      %c0_77 = arith.constant 0 : index
      %122 = vector.load %arg25[%c0_76, %c0_77] : memref<16x16xf32, #tpu.memory_space<vmem>>, vector<16x16xf32>
      %123 = arith.truncf %122 : vector<16x16xf32> to vector<16x16xbf16>
      %c0_78 = arith.constant 0 : index
      %c0_79 = arith.constant 0 : index
      %124 = vector.load %arg20[%c0_78, %c0_79] : memref<16x64xbf16, #tpu.memory_space<vmem>>, vector<16x64xbf16>
      %cst_80 = arith.constant dense<0.000000e+00> : vector<16x64xf32>
      %125 = tpu.matmul %123, %124, %cst_80 {dimension_numbers = #tpu.dot_dimension_numbers<[1], [0], [0], [1], [0, 0, 1, 1], [], []>} : vector<16x16xbf16>, vector<16x64xbf16>, vector<16x64xf32> -> vector<16x64xf32>
      %126 = arith.addf %121, %125 : vector<16x64xf32>
      %c0_81 = arith.constant 0 : index
      %c0_82 = arith.constant 0 : index
      %127 = vector.load %arg21[%c0_81, %c0_82] : memref<1x64xf32, #tpu.memory_space<vmem>>, vector<1x64xf32>
      %128 = vector.broadcast %127 : vector<1x64xf32> to vector<16x64xf32>
      %129 = arith.addf %126, %128 : vector<16x64xf32>
      %130 = arith.negf %129 : vector<16x64xf32>
      %131 = math.exp %130 : vector<16x64xf32>
      %cst_83 = arith.constant 1.000000e+00 : f32
      %132 = vector.broadcast %cst_83 : f32 to vector<16x64xf32>
      %133 = arith.addf %132, %131 : vector<16x64xf32>
      %134 = arith.divf %132, %133 : vector<16x64xf32>
      %135 = arith.mulf %129, %134 : vector<16x64xf32>
      %136 = arith.truncf %135 : vector<16x64xf32> to vector<16x64xbf16>
      %c0_84 = arith.constant 0 : index
      %c0_85 = arith.constant 0 : index
      %137 = vector.load %arg22[%c0_84, %c0_85] : memref<64x32xbf16, #tpu.memory_space<vmem>>, vector<64x32xbf16>
      %cst_86 = arith.constant dense<0.000000e+00> : vector<16x32xf32>
      %138 = tpu.matmul %136, %137, %cst_86 {dimension_numbers = #tpu.dot_dimension_numbers<[1], [0], [0], [1], [0, 0, 1, 1], [], []>} : vector<16x64xbf16>, vector<64x32xbf16>, vector<16x32xf32> -> vector<16x32xf32>
      %c0_87 = arith.constant 0 : index
      %c0_88 = arith.constant 0 : index
      %139 = vector.load %arg23[%c0_87, %c0_88] : memref<1x32xf32, #tpu.memory_space<vmem>>, vector<1x32xf32>
      %140 = vector.broadcast %139 : vector<1x32xf32> to vector<16x32xf32>
      %141 = arith.addf %138, %140 : vector<16x32xf32>
      %142 = arith.addf %90, %141 : vector<16x32xf32>
      %c0_89 = arith.constant 0 : index
      %c3 = arith.constant 3 : index
      %143 = vector.load %arg24[%c0_89, %c3] : memref<16x35xf32, #tpu.memory_space<vmem>>, vector<16x32xf32>
      tpu.vector_store %arg24[%c0_89, %c3], %142 {strides = array<i32>} : memref<16x35xf32, #tpu.memory_space<vmem>>, vector<16x32xf32>,
    } else {
    }
    return
  }
  func.func @transform_0(%arg0: i32) -> (i32, i32) {
    %c0_i32 = arith.constant 0 : i32
    %c0_i32_0 = arith.constant 0 : i32
    return %arg0, %c0_i32 : i32, i32
  }
  func.func @transform_1(%arg0: i32) -> (i32, i32) {
    %c0_i32 = arith.constant 0 : i32
    %c0_i32_0 = arith.constant 0 : i32
    return %arg0, %c0_i32 : i32, i32
  }
  func.func @transform_2(%arg0: i32) -> (i32, i32) {
    %c0_i32 = arith.constant 0 : i32
    %c0_i32_0 = arith.constant 0 : i32
    return %arg0, %c0_i32 : i32, i32
  }
  func.func @transform_3(%arg0: i32) -> (i32, i32) {
    %c0_i32 = arith.constant 0 : i32
    %c0_i32_0 = arith.constant 0 : i32
    %c0_i32_1 = arith.constant 0 : i32
    return %c0_i32, %c0_i32_0 : i32, i32
  }
  func.func @transform_4(%arg0: i32) -> (i32, i32) {
    %c0_i32 = arith.constant 0 : i32
    %c0_i32_0 = arith.constant 0 : i32
    %c0_i32_1 = arith.constant 0 : i32
    return %c0_i32, %c0_i32_0 : i32, i32
  }
  func.func @transform_5(%arg0: i32) -> (i32, i32) {
    %c0_i32 = arith.constant 0 : i32
    %c0_i32_0 = arith.constant 0 : i32
    %c0_i32_1 = arith.constant 0 : i32
    return %c0_i32, %c0_i32_0 : i32, i32
  }
  func.func @transform_6(%arg0: i32) -> (i32, i32) {
    %c0_i32 = arith.constant 0 : i32
    %c0_i32_0 = arith.constant 0 : i32
    %c0_i32_1 = arith.constant 0 : i32
    return %c0_i32, %c0_i32_0 : i32, i32
  }
  func.func @transform_7(%arg0: i32) -> (i32, i32) {
    %c0_i32 = arith.constant 0 : i32
    %c0_i32_0 = arith.constant 0 : i32
    %c0_i32_1 = arith.constant 0 : i32
    return %c0_i32, %c0_i32_0 : i32, i32
  }
  func.func @transform_8(%arg0: i32) -> (i32, i32) {
    %c0_i32 = arith.constant 0 : i32
    %c0_i32_0 = arith.constant 0 : i32
    %c0_i32_1 = arith.constant 0 : i32
    return %c0_i32, %c0_i32_0 : i32, i32
  }
  func.func @transform_9(%arg0: i32) -> (i32, i32) {
    %c0_i32 = arith.constant 0 : i32
    %c0_i32_0 = arith.constant 0 : i32
    %c0_i32_1 = arith.constant 0 : i32
    return %c0_i32, %c0_i32_0 : i32, i32
  }
  func.func @transform_10(%arg0: i32) -> (i32, i32) {
    %c0_i32 = arith.constant 0 : i32
    %c0_i32_0 = arith.constant 0 : i32
    %c0_i32_1 = arith.constant 0 : i32
    return %c0_i32, %c0_i32_0 : i32, i32
  }
  func.func @transform_11(%arg0: i32) -> (i32, i32) {
    %c0_i32 = arith.constant 0 : i32
    %c0_i32_0 = arith.constant 0 : i32
    %c0_i32_1 = arith.constant 0 : i32
    return %c0_i32, %c0_i32_0 : i32, i32
  }
  func.func @transform_12(%arg0: i32) -> (i32, i32) {
    %c0_i32 = arith.constant 0 : i32
    %c0_i32_0 = arith.constant 0 : i32
    %c0_i32_1 = arith.constant 0 : i32
    return %c0_i32, %c0_i32_0 : i32, i32
  }
  func.func @transform_13(%arg0: i32) -> (i32, i32) {
    %c0_i32 = arith.constant 0 : i32
    %c0_i32_0 = arith.constant 0 : i32
    %c0_i32_1 = arith.constant 0 : i32
    return %c0_i32, %c0_i32_0 : i32, i32
  }
  func.func @transform_14(%arg0: i32) -> (i32, i32) {
    %c0_i32 = arith.constant 0 : i32
    %c0_i32_0 = arith.constant 0 : i32
    %c0_i32_1 = arith.constant 0 : i32
    return %c0_i32, %c0_i32_0 : i32, i32
  }
  func.func @transform_15(%arg0: i32) -> (i32, i32) {
    %c0_i32 = arith.constant 0 : i32
    %c0_i32_0 = arith.constant 0 : i32
    %c0_i32_1 = arith.constant 0 : i32
    return %c0_i32, %c0_i32_0 : i32, i32
  }
  func.func @transform_16(%arg0: i32) -> (i32, i32) {
    %c0_i32 = arith.constant 0 : i32
    %c0_i32_0 = arith.constant 0 : i32
    %c0_i32_1 = arith.constant 0 : i32
    return %c0_i32, %c0_i32_0 : i32, i32
  }
  func.func @transform_17(%arg0: i32) -> (i32, i32) {
    %c0_i32 = arith.constant 0 : i32
    %c0_i32_0 = arith.constant 0 : i32
    %c0_i32_1 = arith.constant 0 : i32
    return %c0_i32, %c0_i32_0 : i32, i32
  }
  func.func @transform_18(%arg0: i32) -> (i32, i32) {
    %c0_i32 = arith.constant 0 : i32
    %c0_i32_0 = arith.constant 0 : i32
    %c0_i32_1 = arith.constant 0 : i32
    return %c0_i32, %c0_i32_0 : i32, i32
  }
  func.func @transform_19(%arg0: i32) -> (i32, i32) {
    %c0_i32 = arith.constant 0 : i32
    %c0_i32_0 = arith.constant 0 : i32
    %c0_i32_1 = arith.constant 0 : i32
    return %c0_i32, %c0_i32_0 : i32, i32
  }
  func.func @transform_20(%arg0: i32) -> (i32, i32) {
    %c0_i32 = arith.constant 0 : i32
    %c0_i32_0 = arith.constant 0 : i32
    %c0_i32_1 = arith.constant 0 : i32
    return %c0_i32, %c0_i32_0 : i32, i32
  }
  func.func @transform_21(%arg0: i32) -> (i32, i32) {
    %c0_i32 = arith.constant 0 : i32
    %c0_i32_0 = arith.constant 0 : i32
    %c0_i32_1 = arith.constant 0 : i32
    return %c0_i32, %c0_i32_0 : i32, i32
  }
  func.func @transform_22(%arg0: i32) -> (i32, i32) {
    %c0_i32 = arith.constant 0 : i32
    %c0_i32_0 = arith.constant 0 : i32
    %c0_i32_1 = arith.constant 0 : i32
    return %c0_i32, %c0_i32_0 : i32, i32
  }
  func.func @transform_23(%arg0: i32) -> (i32, i32) {
    %c0_i32 = arith.constant 0 : i32
    %c0_i32_0 = arith.constant 0 : i32
    %c0_i32_1 = arith.constant 0 : i32
    return %c0_i32, %c0_i32_0 : i32, i32
  }
}

module attributes {stable_mosaic.version = 11 : i64} {
  func.func @egnn_layer_kernel(%arg0: i32, %arg1: memref<64x1xi32, #tpu.memory_space<vmem>>, %arg2: memref<64x1xi32, #tpu.memory_space<vmem>>, %arg3: memref<64x4xbf16, #tpu.memory_space<vmem>>, %arg4: memref<16x32xf32, #tpu.memory_space<vmem>>, %arg5: memref<16x3xf32, #tpu.memory_space<vmem>>, %arg6: memref<16x138xbf16, #tpu.memory_space<vmem>>, %arg7: memref<16x138xbf16, #tpu.memory_space<vmem>>, %arg8: memref<4x138xbf16, #tpu.memory_space<vmem>>, %arg9: memref<1x138xf32, #tpu.memory_space<vmem>>, %arg10: memref<1x138xf32, #tpu.memory_space<vmem>>, %arg11: memref<138x16xbf16, #tpu.memory_space<vmem>>, %arg12: memref<1x16xf32, #tpu.memory_space<vmem>>, %arg13: memref<16x64xbf16, #tpu.memory_space<vmem>>, %arg14: memref<1x64xf32, #tpu.memory_space<vmem>>, %arg15: memref<64x1xbf16, #tpu.memory_space<vmem>>, %arg16: memref<1x1xf32, #tpu.memory_space<vmem>>, %arg17: memref<1x32xf32, #tpu.memory_space<vmem>>, %arg18: memref<1x32xf32, #tpu.memory_space<vmem>>, %arg19: memref<32x64xbf16, #tpu.memory_space<vmem>>, %arg20: memref<16x64xbf16, #tpu.memory_space<vmem>>, %arg21: memref<1x64xf32, #tpu.memory_space<vmem>>, %arg22: memref<64x32xbf16, #tpu.memory_space<vmem>>, %arg23: memref<1x32xf32, #tpu.memory_space<vmem>>, %arg24: memref<16x35xf32, #tpu.memory_space<vmem>>, %arg25: memref<16x16xf32, #tpu.memory_space<vmem>>, %arg26: memref<16x3xf32, #tpu.memory_space<vmem>>) attributes {dimension_semantics = [#tpu.dimension_semantics<arbitrary>], iteration_bounds = array<i64: 1>, scalar_prefetch = 0 : i64, scratch_operands = 2 : i64, tpu.core_type = #tpu.core_type<tc>, window_params = [{transform_indices = @transform_0, window_bounds = array<i64: 64, 1>}, {transform_indices = @transform_1, window_bounds = array<i64: 64, 1>}, {transform_indices = @transform_2, window_bounds = array<i64: 64, 4>}, {pipeline_mode = #tpu.pipeline_mode<synchronous>, transform_indices = @transform_3, window_bounds = array<i64: 16, 32>}, {pipeline_mode = #tpu.pipeline_mode<synchronous>, transform_indices = @transform_4, window_bounds = array<i64: 16, 3>}, {pipeline_mode = #tpu.pipeline_mode<synchronous>, transform_indices = @transform_5, window_bounds = array<i64: 16, 138>}, {pipeline_mode = #tpu.pipeline_mode<synchronous>, transform_indices = @transform_6, window_bounds = array<i64: 16, 138>}, {pipeline_mode = #tpu.pipeline_mode<synchronous>, transform_indices = @transform_7, window_bounds = array<i64: 4, 138>}, {pipeline_mode = #tpu.pipeline_mode<synchronous>, transform_indices = @transform_8, window_bounds = array<i64: 1, 138>}, {pipeline_mode = #tpu.pipeline_mode<synchronous>, transform_indices = @transform_9, window_bounds = array<i64: 1, 138>}, {pipeline_mode = #tpu.pipeline_mode<synchronous>, transform_indices = @transform_10, window_bounds = array<i64: 138, 16>}, {pipeline_mode = #tpu.pipeline_mode<synchronous>, transform_indices = @transform_11, window_bounds = array<i64: 1, 16>}, {pipeline_mode = #tpu.pipeline_mode<synchronous>, transform_indices = @transform_12, window_bounds = array<i64: 16, 64>}, {pipeline_mode = #tpu.pipeline_mode<synchronous>, transform_indices = @transform_13, window_bounds = array<i64: 1, 64>}, {pipeline_mode = #tpu.pipeline_mode<synchronous>, transform_indices = @transform_14, window_bounds = array<i64: 64, 1>}, {pipeline_mode = #tpu.pipeline_mode<synchronous>, transform_indices = @transform_15, window_bounds = array<i64: 1, 1>}, {pipeline_mode = #tpu.pipeline_mode<synchronous>, transform_indices = @transform_16, window_bounds = array<i64: 1, 32>}, {pipeline_mode = #tpu.pipeline_mode<synchronous>, transform_indices = @transform_17, window_bounds = array<i64: 1, 32>}, {pipeline_mode = #tpu.pipeline_mode<synchronous>, transform_indices = @transform_18, window_bounds = array<i64: 32, 64>}, {pipeline_mode = #tpu.pipeline_mode<synchronous>, transform_indices = @transform_19, window_bounds = array<i64: 16, 64>}, {pipeline_mode = #tpu.pipeline_mode<synchronous>, transform_indices = @transform_20, window_bounds = array<i64: 1, 64>}, {pipeline_mode = #tpu.pipeline_mode<synchronous>, transform_indices = @transform_21, window_bounds = array<i64: 64, 32>}, {pipeline_mode = #tpu.pipeline_mode<synchronous>, transform_indices = @transform_22, window_bounds = array<i64: 1, 32>}, {pipeline_mode = #tpu.pipeline_mode<synchronous>, transform_indices = @transform_23, window_bounds = array<i64: 16, 35>}]} {
    %c0_i32 = arith.constant 0 : i32
    %0 = arith.cmpi eq, %arg0, %c0_i32 : i32
    %1 = arith.extui %0 : i1 to i32
    %c0_i32_0 = arith.constant 0 : i32
    %2 = arith.cmpi ne, %1, %c0_i32_0 : i32
    scf.if %2 {
      %cst_56 = arith.constant 0.000000e+00 : f32
      %90 = vector.broadcast %cst_56 : f32 to vector<16x16xf32>
      %c0_57 = arith.constant 0 : index
      %c0_58 = arith.constant 0 : index
      %91 = vector.load %arg25[%c0_57, %c0_58] : memref<16x16xf32, #tpu.memory_space<vmem>>, vector<16x16xf32>
      tpu.vector_store %arg25[%c0_57, %c0_58], %90 {strides = array<i32>} : memref<16x16xf32, #tpu.memory_space<vmem>>, vector<16x16xf32>,
      %cst_59 = arith.constant 0.000000e+00 : f32
      %92 = vector.broadcast %cst_59 : f32 to vector<16x3xf32>
      %c0_60 = arith.constant 0 : index
      %c0_61 = arith.constant 0 : index
      %93 = vector.load %arg26[%c0_60, %c0_61] : memref<16x3xf32, #tpu.memory_space<vmem>>, vector<16x3xf32>
      tpu.vector_store %arg26[%c0_60, %c0_61], %92 {strides = array<i32>} : memref<16x3xf32, #tpu.memory_space<vmem>>, vector<16x3xf32>,
    } else {
    }
    %3 = tpu.iota {dimensions = array<i32: 1>} : vector<64x16xi32>
    %c0 = arith.constant 0 : index
    %c0_1 = arith.constant 0 : index
    %4 = vector.load %arg1[%c0, %c0_1] : memref<64x1xi32, #tpu.memory_space<vmem>>, vector<64x1xi32>
    %5 = vector.broadcast %4 : vector<64x1xi32> to vector<64x16xi32>
    %6 = arith.cmpi eq, %3, %5 : vector<64x16xi32>
    %cst = arith.constant 1.000000e+00 : f32
    %cst_2 = arith.constant 0.000000e+00 : f32
    %7 = vector.broadcast %cst : f32 to vector<64x16xf32>
    %8 = vector.broadcast %cst_2 : f32 to vector<64x16xf32>
    %9 = arith.select %6, %7, %8 : vector<64x16xi1>, vector<64x16xf32>
    %c0_3 = arith.constant 0 : index
    %c0_4 = arith.constant 0 : index
    %10 = vector.load %arg2[%c0_3, %c0_4] : memref<64x1xi32, #tpu.memory_space<vmem>>, vector<64x1xi32>
    %11 = vector.broadcast %10 : vector<64x1xi32> to vector<64x16xi32>
    %12 = arith.cmpi eq, %3, %11 : vector<64x16xi32>
    %cst_5 = arith.constant 1.000000e+00 : f32
    %cst_6 = arith.constant 0.000000e+00 : f32
    %13 = vector.broadcast %cst_5 : f32 to vector<64x16xf32>
    %14 = vector.broadcast %cst_6 : f32 to vector<64x16xf32>
    %15 = arith.select %12, %13, %14 : vector<64x16xi1>, vector<64x16xf32>
    %16 = arith.truncf %9 : vector<64x16xf32> to vector<64x16xbf16>
    %17 = arith.truncf %15 : vector<64x16xf32> to vector<64x16xbf16>
    %18 = arith.subf %9, %15 : vector<64x16xf32>
    %c0_7 = arith.constant 0 : index
    %c0_8 = arith.constant 0 : index
    %19 = vector.load %arg5[%c0_7, %c0_8] : memref<16x3xf32, #tpu.memory_space<vmem>>, vector<16x3xf32>
    %cst_9 = arith.constant dense<0.000000e+00> : vector<64x3xf32>
    %20 = tpu.matmul %18, %19, %cst_9 {dimension_numbers = #tpu.dot_dimension_numbers<[1], [0], [0], [1], [0, 0, 1, 1], [], []>} : vector<64x16xf32>, vector<16x3xf32>, vector<64x3xf32> -> vector<64x3xf32>
    %21 = arith.mulf %20, %20 : vector<64x3xf32>
    %cst_10 = arith.constant dense<0.000000e+00> : vector<64xf32>
    %22 = vector.multi_reduction <add>, %21, %cst_10 [1] : vector<64x3xf32> to vector<64xf32>
    %23 = vector.shape_cast %22 : vector<64xf32> to vector<64x1xf32>
    %c0_11 = arith.constant 0 : index
    %c0_12 = arith.constant 0 : index
    %24 = vector.load %arg6[%c0_11, %c0_12] : memref<16x138xbf16, #tpu.memory_space<vmem>>, vector<16x138xbf16>
    %cst_13 = arith.constant dense<0.000000e+00> : vector<64x138xf32>
    %25 = tpu.matmul %17, %24, %cst_13 {dimension_numbers = #tpu.dot_dimension_numbers<[1], [0], [0], [1], [0, 0, 1, 1], [], []>} : vector<64x16xbf16>, vector<16x138xbf16>, vector<64x138xf32> -> vector<64x138xf32>
    %c0_14 = arith.constant 0 : index
    %c0_15 = arith.constant 0 : index
    %26 = vector.load %arg7[%c0_14, %c0_15] : memref<16x138xbf16, #tpu.memory_space<vmem>>, vector<16x138xbf16>
    %cst_16 = arith.constant dense<0.000000e+00> : vector<64x138xf32>
    %27 = tpu.matmul %16, %26, %cst_16 {dimension_numbers = #tpu.dot_dimension_numbers<[1], [0], [0], [1], [0, 0, 1, 1], [], []>} : vector<64x16xbf16>, vector<16x138xbf16>, vector<64x138xf32> -> vector<64x138xf32>
    %28 = arith.addf %25, %27 : vector<64x138xf32>
    %c0_17 = arith.constant 0 : index
    %c0_18 = arith.constant 0 : index
    %29 = vector.load %arg3[%c0_17, %c0_18] : memref<64x4xbf16, #tpu.memory_space<vmem>>, vector<64x4xbf16>
    %c0_19 = arith.constant 0 : index
    %c0_20 = arith.constant 0 : index
    %30 = vector.load %arg8[%c0_19, %c0_20] : memref<4x138xbf16, #tpu.memory_space<vmem>>, vector<4x138xbf16>
    %cst_21 = arith.constant dense<0.000000e+00> : vector<64x138xf32>
    %31 = tpu.matmul %29, %30, %cst_21 {dimension_numbers = #tpu.dot_dimension_numbers<[1], [0], [0], [1], [0, 0, 1, 1], [], []>} : vector<64x4xbf16>, vector<4x138xbf16>, vector<64x138xf32> -> vector<64x138xf32>
    %32 = arith.addf %28, %31 : vector<64x138xf32>
    %c0_22 = arith.constant 0 : index
    %c0_23 = arith.constant 0 : index
    %33 = vector.load %arg9[%c0_22, %c0_23] : memref<1x138xf32, #tpu.memory_space<vmem>>, vector<1x138xf32>
    %34 = vector.broadcast %23 : vector<64x1xf32> to vector<64x138xf32>
    %35 = vector.broadcast %33 : vector<1x138xf32> to vector<64x138xf32>
    %36 = arith.mulf %34, %35 : vector<64x138xf32>
    %37 = arith.addf %32, %36 : vector<64x138xf32>
    %c0_24 = arith.constant 0 : index
    %c0_25 = arith.constant 0 : index
    %38 = vector.load %arg10[%c0_24, %c0_25] : memref<1x138xf32, #tpu.memory_space<vmem>>, vector<1x138xf32>
    %39 = vector.broadcast %38 : vector<1x138xf32> to vector<64x138xf32>
    %40 = arith.addf %37, %39 : vector<64x138xf32>
    %41 = arith.negf %40 : vector<64x138xf32>
    %42 = math.exp %41 : vector<64x138xf32>
    %cst_26 = arith.constant 1.000000e+00 : f32
    %43 = vector.broadcast %cst_26 : f32 to vector<64x138xf32>
    %44 = arith.addf %43, %42 : vector<64x138xf32>
    %45 = arith.divf %43, %44 : vector<64x138xf32>
    %46 = arith.mulf %40, %45 : vector<64x138xf32>
    %47 = arith.truncf %46 : vector<64x138xf32> to vector<64x138xbf16>
    %c0_27 = arith.constant 0 : index
    %c0_28 = arith.constant 0 : index
    %48 = vector.load %arg11[%c0_27, %c0_28] : memref<138x16xbf16, #tpu.memory_space<vmem>>, vector<138x16xbf16>
    %cst_29 = arith.constant dense<0.000000e+00> : vector<64x16xf32>
    %49 = tpu.matmul %47, %48, %cst_29 {dimension_numbers = #tpu.dot_dimension_numbers<[1], [0], [0], [1], [0, 0, 1, 1], [], []>} : vector<64x138xbf16>, vector<138x16xbf16>, vector<64x16xf32> -> vector<64x16xf32>
    %c0_30 = arith.constant 0 : index
    %c0_31 = arith.constant 0 : index
    %50 = vector.load %arg12[%c0_30, %c0_31] : memref<1x16xf32, #tpu.memory_space<vmem>>, vector<1x16xf32>
    %51 = vector.broadcast %50 : vector<1x16xf32> to vector<64x16xf32>
    %52 = arith.addf %49, %51 : vector<64x16xf32>
    %53 = arith.negf %52 : vector<64x16xf32>
    %54 = math.exp %53 : vector<64x16xf32>
    %cst_32 = arith.constant 1.000000e+00 : f32
    %55 = vector.broadcast %cst_32 : f32 to vector<64x16xf32>
    %56 = arith.addf %55, %54 : vector<64x16xf32>
    %57 = arith.divf %55, %56 : vector<64x16xf32>
    %58 = arith.mulf %52, %57 : vector<64x16xf32>
    %59 = arith.truncf %58 : vector<64x16xf32> to vector<64x16xbf16>
    %c0_33 = arith.constant 0 : index
    %c0_34 = arith.constant 0 : index
    %60 = vector.load %arg13[%c0_33, %c0_34] : memref<16x64xbf16, #tpu.memory_space<vmem>>, vector<16x64xbf16>
    %cst_35 = arith.constant dense<0.000000e+00> : vector<64x64xf32>
    %61 = tpu.matmul %59, %60, %cst_35 {dimension_numbers = #tpu.dot_dimension_numbers<[1], [0], [0], [1], [0, 0, 1, 1], [], []>} : vector<64x16xbf16>, vector<16x64xbf16>, vector<64x64xf32> -> vector<64x64xf32>
    %c0_36 = arith.constant 0 : index
    %c0_37 = arith.constant 0 : index
    %62 = vector.load %arg14[%c0_36, %c0_37] : memref<1x64xf32, #tpu.memory_space<vmem>>, vector<1x64xf32>
    %63 = vector.broadcast %62 : vector<1x64xf32> to vector<64x64xf32>
    %64 = arith.addf %61, %63 : vector<64x64xf32>
    %65 = arith.negf %64 : vector<64x64xf32>
    %66 = math.exp %65 : vector<64x64xf32>
    %cst_38 = arith.constant 1.000000e+00 : f32
    %67 = vector.broadcast %cst_38 : f32 to vector<64x64xf32>
    %68 = arith.addf %67, %66 : vector<64x64xf32>
    %69 = arith.divf %67, %68 : vector<64x64xf32>
    %70 = arith.mulf %64, %69 : vector<64x64xf32>
    %71 = arith.truncf %70 : vector<64x64xf32> to vector<64x64xbf16>
    %c0_39 = arith.constant 0 : index
    %c0_40 = arith.constant 0 : index
    %72 = vector.load %arg15[%c0_39, %c0_40] : memref<64x1xbf16, #tpu.memory_space<vmem>>, vector<64x1xbf16>
    %cst_41 = arith.constant dense<0.000000e+00> : vector<64x1xf32>
    %73 = tpu.matmul %71, %72, %cst_41 {dimension_numbers = #tpu.dot_dimension_numbers<[1], [0], [0], [1], [0, 0, 1, 1], [], []>} : vector<64x64xbf16>, vector<64x1xbf16>, vector<64x1xf32> -> vector<64x1xf32>
    %c0_42 = arith.constant 0 : index
    %c0_43 = arith.constant 0 : index
    %74 = vector.load %arg16[%c0_42, %c0_43] : memref<1x1xf32, #tpu.memory_space<vmem>>, vector<1x1xf32>
    %75 = vector.broadcast %74 : vector<1x1xf32> to vector<64x1xf32>
    %76 = arith.addf %73, %75 : vector<64x1xf32>
    %77 = vector.broadcast %76 : vector<64x1xf32> to vector<64x3xf32>
    %78 = arith.mulf %77, %20 : vector<64x3xf32>
    %c0_44 = arith.constant 0 : index
    %c0_45 = arith.constant 0 : index
    %79 = vector.load %arg25[%c0_44, %c0_45] : memref<16x16xf32, #tpu.memory_space<vmem>>, vector<16x16xf32>
    %cst_46 = arith.constant dense<0.000000e+00> : vector<16x16xf32>
    %80 = tpu.matmul %15, %58, %cst_46 {dimension_numbers = #tpu.dot_dimension_numbers<[0], [0], [1], [1], [0, 1, 1, 1], [], []>} : vector<64x16xf32>, vector<64x16xf32>, vector<16x16xf32> -> vector<16x16xf32>
    %81 = arith.addf %79, %80 : vector<16x16xf32>
    %c0_47 = arith.constant 0 : index
    %c0_48 = arith.constant 0 : index
    %82 = vector.load %arg25[%c0_47, %c0_48] : memref<16x16xf32, #tpu.memory_space<vmem>>, vector<16x16xf32>
    tpu.vector_store %arg25[%c0_47, %c0_48], %81 {strides = array<i32>} : memref<16x16xf32, #tpu.memory_space<vmem>>, vector<16x16xf32>,
    %c0_49 = arith.constant 0 : index
    %c0_50 = arith.constant 0 : index
    %83 = vector.load %arg26[%c0_49, %c0_50] : memref<16x3xf32, #tpu.memory_space<vmem>>, vector<16x3xf32>
    %cst_51 = arith.constant dense<0.000000e+00> : vector<16x3xf32>
    %84 = tpu.matmul %15, %78, %cst_51 {dimension_numbers = #tpu.dot_dimension_numbers<[0], [0], [1], [1], [0, 1, 1, 1], [], []>} : vector<64x16xf32>, vector<64x3xf32>, vector<16x3xf32> -> vector<16x3xf32>
    %85 = arith.addf %83, %84 : vector<16x3xf32>
    %c0_52 = arith.constant 0 : index
    %c0_53 = arith.constant 0 : index
    %86 = vector.load %arg26[%c0_52, %c0_53] : memref<16x3xf32, #tpu.memory_space<vmem>>, vector<16x3xf32>
    tpu.vector_store %arg26[%c0_52, %c0_53], %85 {strides = array<i32>} : memref<16x3xf32, #tpu.memory_space<vmem>>, vector<16x3xf32>,
    %c0_i32_54 = arith.constant 0 : i32
    %87 = arith.cmpi eq, %arg0, %c0_i32_54 : i32
    %88 = arith.extui %87 : i1 to i32
    %c0_i32_55 = arith.constant 0 : i32
    %89 = arith.cmpi ne, %88, %c0_i32_55 : i32
    scf.if %89 {
      %c0_56 = arith.constant 0 : index
      %c0_57 = arith.constant 0 : index
      %90 = vector.load %arg4[%c0_56, %c0_57] : memref<16x32xf32, #tpu.memory_space<vmem>>, vector<16x32xf32>
      %c0_58 = arith.constant 0 : index
      %c0_59 = arith.constant 0 : index
      %91 = vector.load %arg5[%c0_58, %c0_59] : memref<16x3xf32, #tpu.memory_space<vmem>>, vector<16x3xf32>
      %c0_60 = arith.constant 0 : index
      %c0_61 = arith.constant 0 : index
      %92 = vector.load %arg26[%c0_60, %c0_61] : memref<16x3xf32, #tpu.memory_space<vmem>>, vector<16x3xf32>
      %93 = arith.addf %91, %92 : vector<16x3xf32>
      %c0_62 = arith.constant 0 : index
      %c0_63 = arith.constant 0 : index
      %94 = vector.load %arg24[%c0_62, %c0_63] : memref<16x35xf32, #tpu.memory_space<vmem>>, vector<16x3xf32>
      tpu.vector_store %arg24[%c0_62, %c0_63], %93 {strides = array<i32>} : memref<16x35xf32, #tpu.memory_space<vmem>>, vector<16x3xf32>,
      %cst_64 = arith.constant dense<0.000000e+00> : vector<16xf32>
      %95 = vector.multi_reduction <add>, %90, %cst_64 [1] : vector<16x32xf32> to vector<16xf32>
      %96 = vector.shape_cast %95 : vector<16xf32> to vector<16x1xf32>
      %cst_65 = arith.constant 3.200000e+01 : f32
      %97 = vector.broadcast %cst_65 : f32 to vector<16x1xf32>
      %98 = arith.divf %96, %97 : vector<16x1xf32>
      %99 = vector.broadcast %98 : vector<16x1xf32> to vector<16x32xf32>
      %100 = arith.subf %90, %99 : vector<16x32xf32>
      %101 = arith.mulf %100, %100 : vector<16x32xf32>
      %cst_66 = arith.constant dense<0.000000e+00> : vector<16xf32>
      %102 = vector.multi_reduction <add>, %101, %cst_66 [1] : vector<16x32xf32> to vector<16xf32>
      %103 = vector.shape_cast %102 : vector<16xf32> to vector<16x1xf32>
      %cst_67 = arith.constant 3.200000e+01 : f32
      %104 = vector.broadcast %cst_67 : f32 to vector<16x1xf32>
      %105 = arith.divf %103, %104 : vector<16x1xf32>
      %106 = vector.broadcast %98 : vector<16x1xf32> to vector<16x32xf32>
      %107 = arith.subf %90, %106 : vector<16x32xf32>
      %cst_68 = arith.constant 9.99999974E-6 : f32
      %108 = vector.broadcast %cst_68 : f32 to vector<16x1xf32>
      %109 = arith.addf %105, %108 : vector<16x1xf32>
      %110 = math.rsqrt %109 : vector<16x1xf32>
      %111 = vector.broadcast %110 : vector<16x1xf32> to vector<16x32xf32>
      %112 = arith.mulf %107, %111 : vector<16x32xf32>
      %c0_69 = arith.constant 0 : index
      %c0_70 = arith.constant 0 : index
      %113 = vector.load %arg17[%c0_69, %c0_70] : memref<1x32xf32, #tpu.memory_space<vmem>>, vector<1x32xf32>
      %114 = vector.broadcast %113 : vector<1x32xf32> to vector<16x32xf32>
      %115 = arith.mulf %112, %114 : vector<16x32xf32>
      %c0_71 = arith.constant 0 : index
      %c0_72 = arith.constant 0 : index
      %116 = vector.load %arg18[%c0_71, %c0_72] : memref<1x32xf32, #tpu.memory_space<vmem>>, vector<1x32xf32>
      %117 = vector.broadcast %116 : vector<1x32xf32> to vector<16x32xf32>
      %118 = arith.addf %115, %117 : vector<16x32xf32>
      %119 = arith.truncf %118 : vector<16x32xf32> to vector<16x32xbf16>
      %c0_73 = arith.constant 0 : index
      %c0_74 = arith.constant 0 : index
      %120 = vector.load %arg19[%c0_73, %c0_74] : memref<32x64xbf16, #tpu.memory_space<vmem>>, vector<32x64xbf16>
      %cst_75 = arith.constant dense<0.000000e+00> : vector<16x64xf32>
      %121 = tpu.matmul %119, %120, %cst_75 {dimension_numbers = #tpu.dot_dimension_numbers<[1], [0], [0], [1], [0, 0, 1, 1], [], []>} : vector<16x32xbf16>, vector<32x64xbf16>, vector<16x64xf32> -> vector<16x64xf32>
      %c0_76 = arith.constant 0 : index
      %c0_77 = arith.constant 0 : index
      %122 = vector.load %arg25[%c0_76, %c0_77] : memref<16x16xf32, #tpu.memory_space<vmem>>, vector<16x16xf32>
      %123 = arith.truncf %122 : vector<16x16xf32> to vector<16x16xbf16>
      %c0_78 = arith.constant 0 : index
      %c0_79 = arith.constant 0 : index
      %124 = vector.load %arg20[%c0_78, %c0_79] : memref<16x64xbf16, #tpu.memory_space<vmem>>, vector<16x64xbf16>
      %cst_80 = arith.constant dense<0.000000e+00> : vector<16x64xf32>
      %125 = tpu.matmul %123, %124, %cst_80 {dimension_numbers = #tpu.dot_dimension_numbers<[1], [0], [0], [1], [0, 0, 1, 1], [], []>} : vector<16x16xbf16>, vector<16x64xbf16>, vector<16x64xf32> -> vector<16x64xf32>
      %126 = arith.addf %121, %125 : vector<16x64xf32>
      %c0_81 = arith.constant 0 : index
      %c0_82 = arith.constant 0 : index
      %127 = vector.load %arg21[%c0_81, %c0_82] : memref<1x64xf32, #tpu.memory_space<vmem>>, vector<1x64xf32>
      %128 = vector.broadcast %127 : vector<1x64xf32> to vector<16x64xf32>
      %129 = arith.addf %126, %128 : vector<16x64xf32>
      %130 = arith.negf %129 : vector<16x64xf32>
      %131 = math.exp %130 : vector<16x64xf32>
      %cst_83 = arith.constant 1.000000e+00 : f32
      %132 = vector.broadcast %cst_83 : f32 to vector<16x64xf32>
      %133 = arith.addf %132, %131 : vector<16x64xf32>
      %134 = arith.divf %132, %133 : vector<16x64xf32>
      %135 = arith.mulf %129, %134 : vector<16x64xf32>
      %136 = arith.truncf %135 : vector<16x64xf32> to vector<16x64xbf16>
      %c0_84 = arith.constant 0 : index
      %c0_85 = arith.constant 0 : index
      %137 = vector.load %arg22[%c0_84, %c0_85] : memref<64x32xbf16, #tpu.memory_space<vmem>>, vector<64x32xbf16>
      %cst_86 = arith.constant dense<0.000000e+00> : vector<16x32xf32>
      %138 = tpu.matmul %136, %137, %cst_86 {dimension_numbers = #tpu.dot_dimension_numbers<[1], [0], [0], [1], [0, 0, 1, 1], [], []>} : vector<16x64xbf16>, vector<64x32xbf16>, vector<16x32xf32> -> vector<16x32xf32>
      %c0_87 = arith.constant 0 : index
      %c0_88 = arith.constant 0 : index
      %139 = vector.load %arg23[%c0_87, %c0_88] : memref<1x32xf32, #tpu.memory_space<vmem>>, vector<1x32xf32>
      %140 = vector.broadcast %139 : vector<1x32xf32> to vector<16x32xf32>
      %141 = arith.addf %138, %140 : vector<16x32xf32>
      %142 = arith.addf %90, %141 : vector<16x32xf32>
      %c0_89 = arith.constant 0 : index
      %c3 = arith.constant 3 : index
      %143 = vector.load %arg24[%c0_89, %c3] : memref<16x35xf32, #tpu.memory_space<vmem>>, vector<16x32xf32>
      tpu.vector_store %arg24[%c0_89, %c3], %142 {strides = array<i32>} : memref<16x35xf32, #tpu.memory_space<vmem>>, vector<16x32xf32>,
    } else {
    }
    return
  }
  func.func @transform_0(%arg0: i32) -> (i32, i32) {
    %c0_i32 = arith.constant 0 : i32
    %c0_i32_0 = arith.constant 0 : i32
    return %arg0, %c0_i32 : i32, i32
  }
  func.func @transform_1(%arg0: i32) -> (i32, i32) {
    %c0_i32 = arith.constant 0 : i32
    %c0_i32_0 = arith.constant 0 : i32
    return %arg0, %c0_i32 : i32, i32
  }
  func.func @transform_2(%arg0: i32) -> (i32, i32) {
    %c0_i32 = arith.constant 0 : i32
    %c0_i32_0 = arith.constant 0 : i32
    return %arg0, %c0_i32 : i32, i32
  }
  func.func @transform_3(%arg0: i32) -> (i32, i32) {
    %c0_i32 = arith.constant 0 : i32
    %c0_i32_0 = arith.constant 0 : i32
    %c0_i32_1 = arith.constant 0 : i32
    return %c0_i32, %c0_i32_0 : i32, i32
  }
  func.func @transform_4(%arg0: i32) -> (i32, i32) {
    %c0_i32 = arith.constant 0 : i32
    %c0_i32_0 = arith.constant 0 : i32
    %c0_i32_1 = arith.constant 0 : i32
    return %c0_i32, %c0_i32_0 : i32, i32
  }
  func.func @transform_5(%arg0: i32) -> (i32, i32) {
    %c0_i32 = arith.constant 0 : i32
    %c0_i32_0 = arith.constant 0 : i32
    %c0_i32_1 = arith.constant 0 : i32
    return %c0_i32, %c0_i32_0 : i32, i32
  }
  func.func @transform_6(%arg0: i32) -> (i32, i32) {
    %c0_i32 = arith.constant 0 : i32
    %c0_i32_0 = arith.constant 0 : i32
    %c0_i32_1 = arith.constant 0 : i32
    return %c0_i32, %c0_i32_0 : i32, i32
  }
  func.func @transform_7(%arg0: i32) -> (i32, i32) {
    %c0_i32 = arith.constant 0 : i32
    %c0_i32_0 = arith.constant 0 : i32
    %c0_i32_1 = arith.constant 0 : i32
    return %c0_i32, %c0_i32_0 : i32, i32
  }
  func.func @transform_8(%arg0: i32) -> (i32, i32) {
    %c0_i32 = arith.constant 0 : i32
    %c0_i32_0 = arith.constant 0 : i32
    %c0_i32_1 = arith.constant 0 : i32
    return %c0_i32, %c0_i32_0 : i32, i32
  }
  func.func @transform_9(%arg0: i32) -> (i32, i32) {
    %c0_i32 = arith.constant 0 : i32
    %c0_i32_0 = arith.constant 0 : i32
    %c0_i32_1 = arith.constant 0 : i32
    return %c0_i32, %c0_i32_0 : i32, i32
  }
  func.func @transform_10(%arg0: i32) -> (i32, i32) {
    %c0_i32 = arith.constant 0 : i32
    %c0_i32_0 = arith.constant 0 : i32
    %c0_i32_1 = arith.constant 0 : i32
    return %c0_i32, %c0_i32_0 : i32, i32
  }
  func.func @transform_11(%arg0: i32) -> (i32, i32) {
    %c0_i32 = arith.constant 0 : i32
    %c0_i32_0 = arith.constant 0 : i32
    %c0_i32_1 = arith.constant 0 : i32
    return %c0_i32, %c0_i32_0 : i32, i32
  }
  func.func @transform_12(%arg0: i32) -> (i32, i32) {
    %c0_i32 = arith.constant 0 : i32
    %c0_i32_0 = arith.constant 0 : i32
    %c0_i32_1 = arith.constant 0 : i32
    return %c0_i32, %c0_i32_0 : i32, i32
  }
  func.func @transform_13(%arg0: i32) -> (i32, i32) {
    %c0_i32 = arith.constant 0 : i32
    %c0_i32_0 = arith.constant 0 : i32
    %c0_i32_1 = arith.constant 0 : i32
    return %c0_i32, %c0_i32_0 : i32, i32
  }
  func.func @transform_14(%arg0: i32) -> (i32, i32) {
    %c0_i32 = arith.constant 0 : i32
    %c0_i32_0 = arith.constant 0 : i32
    %c0_i32_1 = arith.constant 0 : i32
    return %c0_i32, %c0_i32_0 : i32, i32
  }
  func.func @transform_15(%arg0: i32) -> (i32, i32) {
    %c0_i32 = arith.constant 0 : i32
    %c0_i32_0 = arith.constant 0 : i32
    %c0_i32_1 = arith.constant 0 : i32
    return %c0_i32, %c0_i32_0 : i32, i32
  }
  func.func @transform_16(%arg0: i32) -> (i32, i32) {
    %c0_i32 = arith.constant 0 : i32
    %c0_i32_0 = arith.constant 0 : i32
    %c0_i32_1 = arith.constant 0 : i32
    return %c0_i32, %c0_i32_0 : i32, i32
  }
  func.func @transform_17(%arg0: i32) -> (i32, i32) {
    %c0_i32 = arith.constant 0 : i32
    %c0_i32_0 = arith.constant 0 : i32
    %c0_i32_1 = arith.constant 0 : i32
    return %c0_i32, %c0_i32_0 : i32, i32
  }
  func.func @transform_18(%arg0: i32) -> (i32, i32) {
    %c0_i32 = arith.constant 0 : i32
    %c0_i32_0 = arith.constant 0 : i32
    %c0_i32_1 = arith.constant 0 : i32
    return %c0_i32, %c0_i32_0 : i32, i32
  }
  func.func @transform_19(%arg0: i32) -> (i32, i32) {
    %c0_i32 = arith.constant 0 : i32
    %c0_i32_0 = arith.constant 0 : i32
    %c0_i32_1 = arith.constant 0 : i32
    return %c0_i32, %c0_i32_0 : i32, i32
  }
  func.func @transform_20(%arg0: i32) -> (i32, i32) {
    %c0_i32 = arith.constant 0 : i32
    %c0_i32_0 = arith.constant 0 : i32
    %c0_i32_1 = arith.constant 0 : i32
    return %c0_i32, %c0_i32_0 : i32, i32
  }
  func.func @transform_21(%arg0: i32) -> (i32, i32) {
    %c0_i32 = arith.constant 0 : i32
    %c0_i32_0 = arith.constant 0 : i32
    %c0_i32_1 = arith.constant 0 : i32
    return %c0_i32, %c0_i32_0 : i32, i32
  }
  func.func @transform_22(%arg0: i32) -> (i32, i32) {
    %c0_i32 = arith.constant 0 : i32
    %c0_i32_0 = arith.constant 0 : i32
    %c0_i32_1 = arith.constant 0 : i32
    return %c0_i32, %c0_i32_0 : i32, i32
  }
  func.func @transform_23(%arg0: i32) -> (i32, i32) {
    %c0_i32 = arith.constant 0 : i32
    %c0_i32_0 = arith.constant 0 : i32
    %c0_i32_1 = arith.constant 0 : i32
    return %c0_i32, %c0_i32_0 : i32, i32
  }
}

</mosaic_0001>

<llo_original>
// kernel: egnn_sparse_network_forward.2
$region0: #{egnn_sparse_network_forward.2}
  #allocation0 [shape = 'u32[]', space=smem, size = 0x4, offset = 0x4, fixed_abs, tag = 'smem constant byte address 0x4 - core index']
  #allocation1 [shape = 'u32[144,128]{1,0:T(1,128)}', space=vmem, size = 0x12000, scoped, tag = 'internal scratch']
  #allocation2 [shape = 'f32[16,16]{1,0:T(8,128)}', space=vmem, size = 0x2000, scoped, tag = 'scratch operand']
  #allocation3 [shape = 'f32[16,3]{1,0:T(8,128)}', space=vmem, size = 0x2000, scoped, tag = 'scratch operand']
  #allocation4 [shape = 'f32[1,1]{1,0:T(1,128)S(1)}', space=vmem, size = 0x200, scoped, tag = 'scoped memory for egnn_sparse_network_forward.2']
  %s0 = inlined_call_operand.vmem [shape: s32[64,1], index: 0, kind: input, shape index: {}]
  %s1 = inlined_call_operand.vmem [shape: s32[64,1], index: 1, kind: input, shape index: {}]
  %s2 = inlined_call_operand.vmem [shape: bf16[64,4], index: 2, kind: input, shape index: {}]
  %s3 = inlined_call_operand.vmem [shape: f32[16,32], index: 3, kind: input, shape index: {}]
  %s4 = inlined_call_operand.vmem [shape: f32[16,3], index: 4, kind: input, shape index: {}]
  %s5 = inlined_call_operand.vmem [shape: bf16[16,138], index: 5, kind: input, shape index: {}]
  %s6 = inlined_call_operand.vmem [shape: bf16[16,138], index: 6, kind: input, shape index: {}]
  %s7 = inlined_call_operand.vmem [shape: bf16[4,138], index: 7, kind: input, shape index: {}]
  %s8 = inlined_call_operand.vmem [shape: f32[1,138], index: 8, kind: input, shape index: {}]
  %s9 = inlined_call_operand.vmem [shape: f32[1,138], index: 9, kind: input, shape index: {}]
  %s10 = inlined_call_operand.vmem [shape: bf16[138,16], index: 10, kind: input, shape index: {}]
  %s11 = inlined_call_operand.vmem [shape: f32[1,16], index: 11, kind: input, shape index: {}]
  %s12 = inlined_call_operand.vmem [shape: bf16[16,64], index: 12, kind: input, shape index: {}]
  %s13 = inlined_call_operand.vmem [shape: f32[1,64], index: 13, kind: input, shape index: {}]
  %s14 = inlined_call_operand.vmem [shape: bf16[64,1], index: 14, kind: input, shape index: {}]
  %s15 = inlined_call_operand.<no memory space> [shape: f32[1,1], index: 15, kind: input, shape index: {}]
  %s16 = inlined_call_operand.vmem [shape: f32[1,32], index: 16, kind: input, shape index: {}]
  %s17 = inlined_call_operand.vmem [shape: f32[1,32], index: 17, kind: input, shape index: {}]
  %s18 = inlined_call_operand.vmem [shape: bf16[32,64], index: 18, kind: input, shape index: {}]
  %s19 = inlined_call_operand.vmem [shape: bf16[16,64], index: 19, kind: input, shape index: {}]
  %s20 = inlined_call_operand.vmem [shape: f32[1,64], index: 20, kind: input, shape index: {}]
  %s21 = inlined_call_operand.vmem [shape: bf16[64,32], index: 21, kind: input, shape index: {}]
  %s22 = inlined_call_operand.vmem [shape: f32[1,32], index: 22, kind: input, shape index: {}]
  %s23 = inlined_call_operand.vmem [shape: f32[16,35], index: 23, kind: output, shape index: {}]
  %s24 = sld [smem:[#allocation0]]
  $region110: #{egnn_sparse_network_forward.2} parent=0
    _
  %s26 = ssub.s32 1, %s24
  %s27 = scalar_select 0, %s26, %s24
  %v28 = vstv %s15
  %29 = vst [vmem:[#allocation4] sm:$0x1] %v28
  // Predicated region
  $region2: #{egnn_sparse_network_forward.2} parent=0 // pred_check
    _
  $region3: #{egnn_sparse_network_forward.2} parent=0 // pred_check_branch
    %31 = sbr.rel (0) target = $region5
  $region4: #{egnn_sparse_network_forward.2} parent=0 // pred_region
    _
  $region5: #{egnn_sparse_network_forward.2} parent=0 // pred_fallthru
    _
  // Predicated region
  $region6: #{egnn_sparse_network_forward.2} parent=0 // pred_check
    _
  $region7: #{egnn_sparse_network_forward.2} parent=0 // pred_check_branch
    %33 = sbr.rel (0) target = $region9
  $region8: #{egnn_sparse_network_forward.2} parent=0 // pred_region
    _
  $region9: #{egnn_sparse_network_forward.2} parent=0 // pred_fallthru
    _
  // Predicated region
  $region10: #{egnn_sparse_network_forward.2} parent=0 // pred_check
    _
  $region11: #{egnn_sparse_network_forward.2} parent=0 // pred_check_branch
    %35 = sbr.rel (0) target = $region13
  $region12: #{egnn_sparse_network_forward.2} parent=0 // pred_region
    _
  $region13: #{egnn_sparse_network_forward.2} parent=0 // pred_fallthru
    _
  // Predicated region
  $region14: #{egnn_sparse_network_forward.2} parent=0 // pred_check
    _
  $region15: #{egnn_sparse_network_forward.2} parent=0 // pred_check_branch
    %37 = sbr.rel (0) target = $region17
  $region16: #{egnn_sparse_network_forward.2} parent=0 // pred_region
    _
  $region17: #{egnn_sparse_network_forward.2} parent=0 // pred_fallthru
    _
  // Predicated region
  $region18: #{egnn_sparse_network_forward.2} parent=0 // pred_check
    _
  $region19: #{egnn_sparse_network_forward.2} parent=0 // pred_check_branch
    %39 = sbr.rel (0) target = $region21
  $region20: #{egnn_sparse_network_forward.2} parent=0 // pred_region
    _
  $region21: #{egnn_sparse_network_forward.2} parent=0 // pred_fallthru
    _
  // Predicated region
  $region22: #{egnn_sparse_network_forward.2} parent=0 // pred_check
    _
  $region23: #{egnn_sparse_network_forward.2} parent=0 // pred_check_branch
    %41 = sbr.rel (0) target = $region25
  $region24: #{egnn_sparse_network_forward.2} parent=0 // pred_region
    _
  $region25: #{egnn_sparse_network_forward.2} parent=0 // pred_fallthru
    _
  // Predicated region
  $region26: #{egnn_sparse_network_forward.2} parent=0 // pred_check
    _
  $region27: #{egnn_sparse_network_forward.2} parent=0 // pred_check_branch
    %43 = sbr.rel (0) target = $region29
  $region28: #{egnn_sparse_network_forward.2} parent=0 // pred_region
    _
  $region29: #{egnn_sparse_network_forward.2} parent=0 // pred_fallthru
    _
  // Predicated region
  $region30: #{egnn_sparse_network_forward.2} parent=0 // pred_check
    _
  $region31: #{egnn_sparse_network_forward.2} parent=0 // pred_check_branch
    %45 = sbr.rel (0) target = $region33
  $region32: #{egnn_sparse_network_forward.2} parent=0 // pred_region
    _
  $region33: #{egnn_sparse_network_forward.2} parent=0 // pred_fallthru
    _
  // Predicated region
  $region34: #{egnn_sparse_network_forward.2} parent=0 // pred_check
    _
  $region35: #{egnn_sparse_network_forward.2} parent=0 // pred_check_branch
    %47 = sbr.rel (0) target = $region37
  $region36: #{egnn_sparse_network_forward.2} parent=0 // pred_region
    _
  $region37: #{egnn_sparse_network_forward.2} parent=0 // pred_fallthru
    _
  // Predicated region
  $region38: #{egnn_sparse_network_forward.2} parent=0 // pred_check
    _
  $region39: #{egnn_sparse_network_forward.2} parent=0 // pred_check_branch
    %49 = sbr.rel (0) target = $region41
  $region40: #{egnn_sparse_network_forward.2} parent=0 // pred_region
    _
  $region41: #{egnn_sparse_network_forward.2} parent=0 // pred_fallthru
    _
  // Predicated region
  $region42: #{egnn_sparse_network_forward.2} parent=0 // pred_check
    _
  $region43: #{egnn_sparse_network_forward.2} parent=0 // pred_check_branch
    %51 = sbr.rel (0) target = $region45
  $region44: #{egnn_sparse_network_forward.2} parent=0 // pred_region
    _
  $region45: #{egnn_sparse_network_forward.2} parent=0 // pred_fallthru
    _
  // Predicated region
  $region46: #{egnn_sparse_network_forward.2} parent=0 // pred_check
    _
  $region47: #{egnn_sparse_network_forward.2} parent=0 // pred_check_branch
    %53 = sbr.rel (0) target = $region49
  $region48: #{egnn_sparse_network_forward.2} parent=0 // pred_region
    _
  $region49: #{egnn_sparse_network_forward.2} parent=0 // pred_fallthru
    _
  // Predicated region
  $region50: #{egnn_sparse_network_forward.2} parent=0 // pred_check
    _
  $region51: #{egnn_sparse_network_forward.2} parent=0 // pred_check_branch
    %55 = sbr.rel (0) target = $region53
  $region52: #{egnn_sparse_network_forward.2} parent=0 // pred_region
    _
  $region53: #{egnn_sparse_network_forward.2} parent=0 // pred_fallthru
    _
  // Predicated region
  $region54: #{egnn_sparse_network_forward.2} parent=0 // pred_check
    _
  $region55: #{egnn_sparse_network_forward.2} parent=0 // pred_check_branch
    %57 = sbr.rel (0) target = $region57
  $region56: #{egnn_sparse_network_forward.2} parent=0 // pred_region
    _
  $region57: #{egnn_sparse_network_forward.2} parent=0 // pred_fallthru
    _
  // Predicated region
  $region58: #{egnn_sparse_network_forward.2} parent=0 // pred_check
    _
  $region59: #{egnn_sparse_network_forward.2} parent=0 // pred_check_branch
    %59 = sbr.rel (0) target = $region61
  $region60: #{egnn_sparse_network_forward.2} parent=0 // pred_region
    _
  $region61: #{egnn_sparse_network_forward.2} parent=0 // pred_fallthru
    _
  // Predicated region
  $region62: #{egnn_sparse_network_forward.2} parent=0 // pred_check
    _
  $region63: #{egnn_sparse_network_forward.2} parent=0 // pred_check_branch
    %61 = sbr.rel (0) target = $region65
  $region64: #{egnn_sparse_network_forward.2} parent=0 // pred_region
    _
  $region65: #{egnn_sparse_network_forward.2} parent=0 // pred_fallthru
    _
  // Predicated region
  $region66: #{egnn_sparse_network_forward.2} parent=0 // pred_check
    _
  $region67: #{egnn_sparse_network_forward.2} parent=0 // pred_check_branch
    %63 = sbr.rel (0) target = $region69
  $region68: #{egnn_sparse_network_forward.2} parent=0 // pred_region
    _
  $region69: #{egnn_sparse_network_forward.2} parent=0 // pred_fallthru
    _
  // Predicated region
  $region70: #{egnn_sparse_network_forward.2} parent=0 // pred_check
    _
  $region71: #{egnn_sparse_network_forward.2} parent=0 // pred_check_branch
    %65 = sbr.rel (0) target = $region73
  $region72: #{egnn_sparse_network_forward.2} parent=0 // pred_region
    _
  $region73: #{egnn_sparse_network_forward.2} parent=0 // pred_fallthru
    _
  // Predicated region
  $region74: #{egnn_sparse_network_forward.2} parent=0 // pred_check
    _
  $region75: #{egnn_sparse_network_forward.2} parent=0 // pred_check_branch
    %67 = sbr.rel (0) target = $region77
  $region76: #{egnn_sparse_network_forward.2} parent=0 // pred_region
    _
  $region77: #{egnn_sparse_network_forward.2} parent=0 // pred_fallthru
    _
  // Predicated region
  $region78: #{egnn_sparse_network_forward.2} parent=0 // pred_check
    _
  $region79: #{egnn_sparse_network_forward.2} parent=0 // pred_check_branch
    %69 = sbr.rel (0) target = $region81
  $region80: #{egnn_sparse_network_forward.2} parent=0 // pred_region
    _
  $region81: #{egnn_sparse_network_forward.2} parent=0 // pred_fallthru
    _
  // Predicated region
  $region82: #{egnn_sparse_network_forward.2} parent=0 // pred_check
    _
  $region83: #{egnn_sparse_network_forward.2} parent=0 // pred_check_branch
    %71 = sbr.rel (0) target = $region85
  $region84: #{egnn_sparse_network_forward.2} parent=0 // pred_region
    _
  $region85: #{egnn_sparse_network_forward.2} parent=0 // pred_fallthru
    _
  // Predicated region
  $region86: #{egnn_sparse_network_forward.2} parent=0 // pred_check
    _
  $region87: #{egnn_sparse_network_forward.2} parent=0 // pred_check_branch
    %73 = sbr.rel (0) target = $region89
  $region88: #{egnn_sparse_network_forward.2} parent=0 // pred_region
    _
  $region89: #{egnn_sparse_network_forward.2} parent=0 // pred_fallthru
    _
  // Predicated region
  $region90: #{egnn_sparse_network_forward.2} parent=0 // pred_check
    _
  $region91: #{egnn_sparse_network_forward.2} parent=0 // pred_check_branch
    %75 = sbr.rel (0) target = $region93
  $region92: #{egnn_sparse_network_forward.2} parent=0 // pred_region
    _
  $region93: #{egnn_sparse_network_forward.2} parent=0 // pred_fallthru
    _
  %p77 = scmp.eq.s32.totalorder 0, 0
  // Predicated region
  $region94: #{egnn_sparse_network_forward.2} parent=0 // pred_check
    %p78 = pneg %p77
  $region95: #{egnn_sparse_network_forward.2} parent=0 // pred_check_branch
    %80 = sbr.rel (%p78) target = $region97
  $region96: #{egnn_sparse_network_forward.2} parent=0 // pred_region
    %vm81 = vcmask 130048
    %82 = vst.msk [vmem:[#allocation2] sm:$0xff] %vm81, 0.0
    %83 = vst.msk [vmem:[#allocation2 + $0x8] sm:$0xff] %vm81, 0.0
    %vm84 = vcmask 23552
    %85 = vst.msk [vmem:[#allocation3] sm:$0xff] %vm84, 0.0
    %86 = vst.msk [vmem:[#allocation3 + $0x8] sm:$0xff] %vm84, 0.0
  $region97: #{egnn_sparse_network_forward.2} parent=0 // pred_fallthru
    _
  %v87 = vlaneseq
  %v88 = vand.u32 %v87, 127
  %v89 = vld [vmem:[%s0] sm:$0xff]
  %v90 = vld [vmem:[%s0 + $0x8] sm:$0xff]
  %v91 = vld [vmem:[%s0 + $0x10] sm:$0xff]
  %v92 = vld [vmem:[%s0 + $0x18] sm:$0xff]
  %v93 = vld [vmem:[%s0 + $0x20] sm:$0xff]
  %v94 = vld [vmem:[%s0 + $0x28] sm:$0xff]
  %v95 = vld [vmem:[%s0 + $0x30] sm:$0xff]
  %v96 = vld [vmem:[%s0 + $0x38] sm:$0xff]
  %97 = vset.pattern.permute.xlu0 0
  %98 = vperm.xlu0 %97, %v89
  %v99 = vpop.permute.xlu0 %98
  %100 = vset.pattern.permute.xlu0 0
  %101 = vperm.xlu0 %100, %v90
  %v102 = vpop.permute.xlu0 %101
  %103 = vset.pattern.permute.xlu0 0
  %104 = vperm.xlu0 %103, %v91
  %v105 = vpop.permute.xlu0 %104
  %106 = vset.pattern.permute.xlu0 0
  %107 = vperm.xlu0 %106, %v92
  %v108 = vpop.permute.xlu0 %107
  %109 = vset.pattern.permute.xlu0 0
  %110 = vperm.xlu0 %109, %v93
  %v111 = vpop.permute.xlu0 %110
  %112 = vset.pattern.permute.xlu0 0
  %113 = vperm.xlu0 %112, %v94
  %v114 = vpop.permute.xlu0 %113
  %115 = vset.pattern.permute.xlu0 0
  %116 = vperm.xlu0 %115, %v95
  %v117 = vpop.permute.xlu0 %116
  %118 = vset.pattern.permute.xlu0 0
  %119 = vperm.xlu0 %118, %v96
  %v120 = vpop.permute.xlu0 %119
  %vm121 = vcmp.eq.s32.totalorder %v88, %v99
  %vm122 = vcmp.eq.s32.totalorder %v88, %v102
  %vm123 = vcmp.eq.s32.totalorder %v88, %v105
  %vm124 = vcmp.eq.s32.totalorder %v88, %v108
  %vm125 = vcmp.eq.s32.totalorder %v88, %v111
  %vm126 = vcmp.eq.s32.totalorder %v88, %v114
  %vm127 = vcmp.eq.s32.totalorder %v88, %v117
  %vm128 = vcmp.eq.s32.totalorder %v88, %v120
  %v129 = vsel %vm121, 1.0, 0.0
  %v130 = vsel %vm122, 1.0, 0.0
  %v131 = vsel %vm123, 1.0, 0.0
  %v132 = vsel %vm124, 1.0, 0.0
  %v133 = vsel %vm125, 1.0, 0.0
  %v134 = vsel %vm126, 1.0, 0.0
  %v135 = vsel %vm127, 1.0, 0.0
  %v136 = vsel %vm128, 1.0, 0.0
  %v137 = vld [vmem:[%s1] sm:$0xff]
  %v138 = vld [vmem:[%s1 + $0x8] sm:$0xff]
  %v139 = vld [vmem:[%s1 + $0x10] sm:$0xff]
  %v140 = vld [vmem:[%s1 + $0x18] sm:$0xff]
  %v141 = vld [vmem:[%s1 + $0x20] sm:$0xff]
  %v142 = vld [vmem:[%s1 + $0x28] sm:$0xff]
  %v143 = vld [vmem:[%s1 + $0x30] sm:$0xff]
  %v144 = vld [vmem:[%s1 + $0x38] sm:$0xff]
  %145 = vset.pattern.permute.xlu0 0
  %146 = vperm.xlu0 %145, %v137
  %v147 = vpop.permute.xlu0 %146
  %148 = vset.pattern.permute.xlu0 0
  %149 = vperm.xlu0 %148, %v138
  %v150 = vpop.permute.xlu0 %149
  %151 = vset.pattern.permute.xlu0 0
  %152 = vperm.xlu0 %151, %v139
  %v153 = vpop.permute.xlu0 %152
  %154 = vset.pattern.permute.xlu0 0
  %155 = vperm.xlu0 %154, %v140
  %v156 = vpop.permute.xlu0 %155
  %157 = vset.pattern.permute.xlu0 0
  %158 = vperm.xlu0 %157, %v141
  %v159 = vpop.permute.xlu0 %158
  %160 = vset.pattern.permute.xlu0 0
  %161 = vperm.xlu0 %160, %v142
  %v162 = vpop.permute.xlu0 %161
  %163 = vset.pattern.permute.xlu0 0
  %164 = vperm.xlu0 %163, %v143
  %v165 = vpop.permute.xlu0 %164
  %166 = vset.pattern.permute.xlu0 0
  %167 = vperm.xlu0 %166, %v144
  %v168 = vpop.permute.xlu0 %167
  %vm169 = vcmp.eq.s32.totalorder %v88, %v147
  %vm170 = vcmp.eq.s32.totalorder %v88, %v150
  %vm171 = vcmp.eq.s32.totalorder %v88, %v153
  %vm172 = vcmp.eq.s32.totalorder %v88, %v156
  %vm173 = vcmp.eq.s32.totalorder %v88, %v159
  %vm174 = vcmp.eq.s32.totalorder %v88, %v162
  %vm175 = vcmp.eq.s32.totalorder %v88, %v165
  %vm176 = vcmp.eq.s32.totalorder %v88, %v168
  %v177 = vsel %vm169, 1.0, 0.0
  %v178 = vsel %vm170, 1.0, 0.0
  %v179 = vsel %vm171, 1.0, 0.0
  %v180 = vsel %vm172, 1.0, 0.0
  %v181 = vsel %vm173, 1.0, 0.0
  %v182 = vsel %vm174, 1.0, 0.0
  %v183 = vsel %vm175, 1.0, 0.0
  %v184 = vsel %vm176, 1.0, 0.0
  %v185 = vpack.c.bf16 %v130, %v129
  %v186 = vpack.c.bf16 %v132, %v131
  %v187 = vpack.c.bf16 %v134, %v133
  %v188 = vpack.c.bf16 %v136, %v135
  %v189 = vpack.c.bf16 %v178, %v177
  %v190 = vpack.c.bf16 %v180, %v179
  %v191 = vpack.c.bf16 %v182, %v181
  %v192 = vpack.c.bf16 %v184, %v183
  %v193 = vsub.f32 %v129, %v177
  %v194 = vsub.f32 %v130, %v178
  %v195 = vsub.f32 %v131, %v179
  %v196 = vsub.f32 %v132, %v180
  %v197 = vsub.f32 %v133, %v181
  %v198 = vsub.f32 %v134, %v182
  %v199 = vsub.f32 %v135, %v183
  %v200 = vsub.f32 %v136, %v184
  %v201 = vld [vmem:[%s4] sm:$0xff]
  %v202 = vld [vmem:[%s4 + $0x8] sm:$0xff]
  %vm203 = vcmask 130048
  %v205 = vsel %vm203, %v193, 0
  %v208 = vsel %vm203, %v194, 0
  %v211 = vsel %vm203, %v195, 0
  %v214 = vsel %vm203, %v196, 0
  %v217 = vsel %vm203, %v197, 0
  %v220 = vsel %vm203, %v198, 0
  %v223 = vsel %vm203, %v199, 0
  %v226 = vsel %vm203, %v200, 0
  %228 = vmatprep.subr.mxu0 0.0
  %229 = vmatpush1.msra.mxu0 0.0
  %230 = vmatprep.subr.mxu0 0.0
  %231 = vmatpush1.msra.mxu0 0.0
  %232 = vmatprep.subr.mxu0 0.0
  %233 = vmatpush1.msra.mxu0 0.0
  %234 = vmatprep.subr.mxu0 0.0
  %235 = vmatpush1.msra.mxu0 0.0
  %236 = vmatprep.subr.mxu0 0.0
  %237 = vmatpush1.msra.mxu0 0.0
  %238 = vmatprep.subr.mxu0 0.0
  %239 = vmatpush1.msra.mxu0 0.0
  %240 = vmatprep.subr.mxu0 0.0
  %241 = vmatpush1.msra.mxu0 0.0
  %242 = vmatprep.subr.mxu0 0.0
  %243 = vmatpush1.msra.mxu0 0.0
  %244 = vmatprep.subr.mxu0 0.0
  %245 = vmatpush1.msra.mxu0 0.0
  %246 = vmatprep.subr.mxu0 0.0
  %247 = vmatpush1.msra.mxu0 0.0
  %248 = vmatprep.subr.mxu0 0.0
  %249 = vmatpush1.msra.mxu0 0.0
  %250 = vmatprep.subr.mxu0 0.0
  %251 = vmatpush1.msra.mxu0 0.0
  %252 = vmatprep.subr.mxu0 0.0
  %253 = vmatpush1.msra.mxu0 0.0
  %254 = vmatprep.subr.mxu0 0.0
  %255 = vmatpush1.msra.mxu0 0.0
  %256 = vmatprep.subr.mxu0 0.0
  %257 = vmatpush1.msra.mxu0 %v202
  %258 = vmatprep.subr.mxu0 0.0
  %259 = vmatpush1.msra.mxu0 %v201
  %260 = vmatprep.subr.mxu0 0.0
  %261 = vmatpush2.msra.mxu0 0.0
  %262 = vmatprep.subr.mxu0 0.0
  %263 = vmatpush2.msra.mxu0 0.0
  %264 = vmatprep.subr.mxu0 0.0
  %265 = vmatpush2.msra.mxu0 0.0
  %266 = vmatprep.subr.mxu0 0.0
  %267 = vmatpush2.msra.mxu0 0.0
  %268 = vmatprep.subr.mxu0 0.0
  %269 = vmatpush2.msra.mxu0 0.0
  %270 = vmatprep.subr.mxu0 0.0
  %271 = vmatpush2.msra.mxu0 0.0
  %272 = vmatprep.subr.mxu0 0.0
  %273 = vmatpush2.msra.mxu0 0.0
  %274 = vmatprep.subr.mxu0 0.0
  %275 = vmatpush2.msra.mxu0 0.0
  %276 = vmatprep.subr.mxu0 0.0
  %277 = vmatpush2.msra.mxu0 0.0
  %278 = vmatprep.subr.mxu0 0.0
  %279 = vmatpush2.msra.mxu0 0.0
  %280 = vmatprep.subr.mxu0 0.0
  %281 = vmatpush2.msra.mxu0 0.0
  %282 = vmatprep.subr.mxu0 0.0
  %283 = vmatpush2.msra.mxu0 0.0
  %284 = vmatprep.subr.mxu0 0.0
  %285 = vmatpush2.msra.mxu0 0.0
  %286 = vmatprep.subr.mxu0 0.0
  %287 = vmatpush2.msra.mxu0 0.0
  %288 = vmatprep.subr.mxu0 0.0
  %289 = vmatpush2.msra.mxu0 0.0
  %290 = vmatprep.subr.mxu0 0.0
  %291 = vmatpush2.msra.mxu0 0.0
  %292 = vmatprep.mubr.f32.mxu0 0.0
  %293 = vmatmul.mubr.f32.gmra.mxu0 %v205
  %v294 = vpop.f32.mrf.mxu0
  %v295 = vadd.f32 0.0, %v294
  %v296 = vpop.f32.mrf.mxu0
  %297 = vmatprep.mubr.f32.mxu0 0.0
  %298 = vmatmul.mubr.f32.gmra.mxu0 %v208
  %v299 = vpop.f32.mrf.mxu0
  %v300 = vadd.f32 0.0, %v299
  %v301 = vpop.f32.mrf.mxu0
  %302 = vmatprep.mubr.f32.mxu0 0.0
  %303 = vmatmul.mubr.f32.gmra.mxu0 %v211
  %v304 = vpop.f32.mrf.mxu0
  %v305 = vadd.f32 0.0, %v304
  %v306 = vpop.f32.mrf.mxu0
  %307 = vmatprep.mubr.f32.mxu0 0.0
  %308 = vmatmul.mubr.f32.gmra.mxu0 %v214
  %v309 = vpop.f32.mrf.mxu0
  %v310 = vadd.f32 0.0, %v309
  %v311 = vpop.f32.mrf.mxu0
  %312 = vmatprep.mubr.f32.mxu0 0.0
  %313 = vmatmul.mubr.f32.gmra.mxu0 %v217
  %v314 = vpop.f32.mrf.mxu0
  %v315 = vadd.f32 0.0, %v314
  %v316 = vpop.f32.mrf.mxu0
  %317 = vmatprep.mubr.f32.mxu0 0.0
  %318 = vmatmul.mubr.f32.gmra.mxu0 %v220
  %v319 = vpop.f32.mrf.mxu0
  %v320 = vadd.f32 0.0, %v319
  %v321 = vpop.f32.mrf.mxu0
  %322 = vmatprep.mubr.f32.mxu0 0.0
  %323 = vmatmul.mubr.f32.gmra.mxu0 %v223
  %v324 = vpop.f32.mrf.mxu0
  %v325 = vadd.f32 0.0, %v324
  %v326 = vpop.f32.mrf.mxu0
  %327 = vmatprep.mubr.f32.mxu0 0.0
  %328 = vmatmul.mubr.f32.gmra.mxu0 %v226
  %v329 = vpop.f32.mrf.mxu0
  %v330 = vadd.f32 0.0, %v329
  %v331 = vpop.f32.mrf.mxu0
  %332 = vdwg.mxu0
  %v333 = vmul.f32 %v295, %v295
  %v334 = vmul.f32 %v300, %v300
  %v335 = vmul.f32 %v305, %v305
  %v336 = vmul.f32 %v310, %v310
  %v337 = vmul.f32 %v315, %v315
  %v338 = vmul.f32 %v320, %v320
  %v339 = vmul.f32 %v325, %v325
  %v340 = vmul.f32 %v330, %v330
  %vm341 = vcmask 23552
  %v342 = vsel %vm341, %v333, 0.0
  %343 = vadd.xlane.f32.xlu0 %v342
  %v344 = vpop.xlane.xlu0 %343
  %v345 = vsel %vm341, %v334, 0.0
  %346 = vadd.xlane.f32.xlu0 %v345
  %v347 = vpop.xlane.xlu0 %346
  %v348 = vsel %vm341, %v335, 0.0
  %349 = vadd.xlane.f32.xlu0 %v348
  %v350 = vpop.xlane.xlu0 %349
  %v351 = vsel %vm341, %v336, 0.0
  %352 = vadd.xlane.f32.xlu0 %v351
  %v353 = vpop.xlane.xlu0 %352
  %v354 = vsel %vm341, %v337, 0.0
  %355 = vadd.xlane.f32.xlu0 %v354
  %v356 = vpop.xlane.xlu0 %355
  %v357 = vsel %vm341, %v338, 0.0
  %358 = vadd.xlane.f32.xlu0 %v357
  %v359 = vpop.xlane.xlu0 %358
  %v360 = vsel %vm341, %v339, 0.0
  %361 = vadd.xlane.f32.xlu0 %v360
  %v362 = vpop.xlane.xlu0 %361
  %v363 = vsel %vm341, %v340, 0.0
  %364 = vadd.xlane.f32.xlu0 %v363
  %v365 = vpop.xlane.xlu0 %364
  %v366 = vld [vmem:[%s5] sm:$0xff]
  %v367 = vld [vmem:[%s5 + $0x8] sm:$0xff]
  %v368 = vld [vmem:[%s6] sm:$0xff]
  %v369 = vld [vmem:[%s6 + $0x8] sm:$0xff]
  %v372 = vunpack.c.l.b16 %v368
  %v373 = vunpack.c.h.b16 %v368
  %v374 = vunpack.c.l.b16 %v369
  %v375 = vunpack.c.h.b16 %v369
  %v376 = vpack.c.b16 %v374, %v372
  %v377 = vpack.c.b16 %v375, %v373
  %v381 = vsel %vm203, %v185, 0
  %v384 = vsel %vm203, %v186, 0
  %v387 = vsel %vm203, %v187, 0
  %v390 = vsel %vm203, %v188, 0
  %392 = vmatprep.subr.bf16.mxu0 0
  %393 = vmatpush1.bf16.msra.mxu0 0
  %394 = vmatprep.subr.bf16.mxu0 0
  %395 = vmatpush1.bf16.msra.mxu0 0
  %396 = vmatprep.subr.bf16.mxu0 0
  %397 = vmatpush1.bf16.msra.mxu0 0
  %398 = vmatprep.subr.bf16.mxu0 0
  %399 = vmatpush1.bf16.msra.mxu0 0
  %400 = vmatprep.subr.bf16.mxu0 0
  %401 = vmatpush1.bf16.msra.mxu0 0
  %402 = vmatprep.subr.bf16.mxu0 0
  %403 = vmatpush1.bf16.msra.mxu0 0
  %404 = vmatprep.subr.bf16.mxu0 0
  %405 = vmatpush1.bf16.msra.mxu0 0
  %406 = vmatprep.subr.bf16.mxu0 %v377
  %407 = vmatpush1.bf16.msra.mxu0 %v376
  %408 = vmatprep.subr.bf16.mxu0 0
  %409 = vmatpush2.bf16.msra.mxu0 0
  %410 = vmatprep.subr.bf16.mxu0 0
  %411 = vmatpush2.bf16.msra.mxu0 0
  %412 = vmatprep.subr.bf16.mxu0 0
  %413 = vmatpush2.bf16.msra.mxu0 0
  %414 = vmatprep.subr.bf16.mxu0 0
  %415 = vmatpush2.bf16.msra.mxu0 0
  %416 = vmatprep.subr.bf16.mxu0 0
  %417 = vmatpush2.bf16.msra.mxu0 0
  %418 = vmatprep.subr.bf16.mxu0 0
  %419 = vmatpush2.bf16.msra.mxu0 0
  %420 = vmatprep.subr.bf16.mxu0 0
  %421 = vmatpush2.bf16.msra.mxu0 0
  %422 = vmatprep.subr.bf16.mxu0 0
  %423 = vmatpush2.bf16.msra.mxu0 0
  %424 = vmatprep.mubr.bf16.mxu0 0
  %425 = vmatmul.mubr.bf16.gmra.mxu0 %v381
  %v426 = vpop.f32.mrf.mxu0
  %v427 = vadd.f32 0.0, %v426
  %v428 = vpop.f32.mrf.mxu0
  %v429 = vadd.f32 0.0, %v428
  %v430 = vpop.f32.mrf.mxu0
  %v431 = vadd.f32 0.0, %v430
  %v432 = vpop.f32.mrf.mxu0
  %v433 = vadd.f32 0.0, %v432
  %434 = vmatprep.mubr.bf16.mxu0 0
  %435 = vmatmul.mubr.bf16.gmra.mxu0 %v384
  %v436 = vpop.f32.mrf.mxu0
  %v437 = vadd.f32 0.0, %v436
  %v438 = vpop.f32.mrf.mxu0
  %v439 = vadd.f32 0.0, %v438
  %v440 = vpop.f32.mrf.mxu0
  %v441 = vadd.f32 0.0, %v440
  %v442 = vpop.f32.mrf.mxu0
  %v443 = vadd.f32 0.0, %v442
  %444 = vmatprep.mubr.bf16.mxu0 0
  %445 = vmatmul.mubr.bf16.gmra.mxu0 %v387
  %v446 = vpop.f32.mrf.mxu0
  %v447 = vadd.f32 0.0, %v446
  %v448 = vpop.f32.mrf.mxu0
  %v449 = vadd.f32 0.0, %v448
  %v450 = vpop.f32.mrf.mxu0
  %v451 = vadd.f32 0.0, %v450
  %v452 = vpop.f32.mrf.mxu0
  %v453 = vadd.f32 0.0, %v452
  %454 = vmatprep.mubr.bf16.mxu0 0
  %455 = vmatmul.mubr.bf16.gmra.mxu0 %v390
  %v456 = vpop.f32.mrf.mxu0
  %v457 = vadd.f32 0.0, %v456
  %v458 = vpop.f32.mrf.mxu0
  %v459 = vadd.f32 0.0, %v458
  %v460 = vpop.f32.mrf.mxu0
  %v461 = vadd.f32 0.0, %v460
  %v462 = vpop.f32.mrf.mxu0
  %v463 = vadd.f32 0.0, %v462
  %464 = vdwg.mxu0
  %v467 = vunpack.c.l.b16 %v366
  %v468 = vunpack.c.h.b16 %v366
  %v469 = vunpack.c.l.b16 %v367
  %v470 = vunpack.c.h.b16 %v367
  %v471 = vpack.c.b16 %v469, %v467
  %v472 = vpack.c.b16 %v470, %v468
  %v476 = vsel %vm203, %v189, 0
  %v479 = vsel %vm203, %v190, 0
  %v482 = vsel %vm203, %v191, 0
  %v485 = vsel %vm203, %v192, 0
  %487 = vmatprep.subr.bf16.mxu0 0
  %488 = vmatpush1.bf16.msra.mxu0 0
  %489 = vmatprep.subr.bf16.mxu0 0
  %490 = vmatpush1.bf16.msra.mxu0 0
  %491 = vmatprep.subr.bf16.mxu0 0
  %492 = vmatpush1.bf16.msra.mxu0 0
  %493 = vmatprep.subr.bf16.mxu0 0
  %494 = vmatpush1.bf16.msra.mxu0 0
  %495 = vmatprep.subr.bf16.mxu0 0
  %496 = vmatpush1.bf16.msra.mxu0 0
  %497 = vmatprep.subr.bf16.mxu0 0
  %498 = vmatpush1.bf16.msra.mxu0 0
  %499 = vmatprep.subr.bf16.mxu0 0
  %500 = vmatpush1.bf16.msra.mxu0 0
  %501 = vmatprep.subr.bf16.mxu0 %v472
  %502 = vmatpush1.bf16.msra.mxu0 %v471
  %503 = vmatprep.subr.bf16.mxu0 0
  %504 = vmatpush2.bf16.msra.mxu0 0
  %505 = vmatprep.subr.bf16.mxu0 0
  %506 = vmatpush2.bf16.msra.mxu0 0
  %507 = vmatprep.subr.bf16.mxu0 0
  %508 = vmatpush2.bf16.msra.mxu0 0
  %509 = vmatprep.subr.bf16.mxu0 0
  %510 = vmatpush2.bf16.msra.mxu0 0
  %511 = vmatprep.subr.bf16.mxu0 0
  %512 = vmatpush2.bf16.msra.mxu0 0
  %513 = vmatprep.subr.bf16.mxu0 0
  %514 = vmatpush2.bf16.msra.mxu0 0
  %515 = vmatprep.subr.bf16.mxu0 0
  %516 = vmatpush2.bf16.msra.mxu0 0
  %517 = vmatprep.subr.bf16.mxu0 0
  %518 = vmatpush2.bf16.msra.mxu0 0
  %519 = vmatprep.mubr.bf16.mxu0 0
  %520 = vmatmul.mubr.bf16.gmra.mxu0 %v476
  %v521 = vpop.f32.mrf.mxu0
  %v522 = vadd.f32 %v427, %v521
  %v523 = vpop.f32.mrf.mxu0
  %v524 = vadd.f32 %v429, %v523
  %v525 = vpop.f32.mrf.mxu0
  %v526 = vadd.f32 %v431, %v525
  %v527 = vpop.f32.mrf.mxu0
  %v528 = vadd.f32 %v433, %v527
  %529 = vmatprep.mubr.bf16.mxu0 0
  %530 = vmatmul.mubr.bf16.gmra.mxu0 %v479
  %v531 = vpop.f32.mrf.mxu0
  %v532 = vadd.f32 %v437, %v531
  %v533 = vpop.f32.mrf.mxu0
  %v534 = vadd.f32 %v439, %v533
  %v535 = vpop.f32.mrf.mxu0
  %v536 = vadd.f32 %v441, %v535
  %v537 = vpop.f32.mrf.mxu0
  %v538 = vadd.f32 %v443, %v537
  %539 = vmatprep.mubr.bf16.mxu0 0
  %540 = vmatmul.mubr.bf16.gmra.mxu0 %v482
  %v541 = vpop.f32.mrf.mxu0
  %v542 = vadd.f32 %v447, %v541
  %v543 = vpop.f32.mrf.mxu0
  %v544 = vadd.f32 %v449, %v543
  %v545 = vpop.f32.mrf.mxu0
  %v546 = vadd.f32 %v451, %v545
  %v547 = vpop.f32.mrf.mxu0
  %v548 = vadd.f32 %v453, %v547
  %549 = vmatprep.mubr.bf16.mxu0 0
  %550 = vmatmul.mubr.bf16.gmra.mxu0 %v485
  %v551 = vpop.f32.mrf.mxu0
  %v552 = vadd.f32 %v457, %v551
  %v553 = vpop.f32.mrf.mxu0
  %v554 = vadd.f32 %v459, %v553
  %v555 = vpop.f32.mrf.mxu0
  %v556 = vadd.f32 %v461, %v555
  %v557 = vpop.f32.mrf.mxu0
  %v558 = vadd.f32 %v463, %v557
  %559 = vdwg.mxu0
  %v560 = vld [vmem:[%s2] sm:$0xf]
  %v561 = vld [vmem:[%s2 + $0x4] sm:$0xf]
  %v562 = vld [vmem:[%s2 + $0x8] sm:$0xf]
  %v563 = vld [vmem:[%s2 + $0xc] sm:$0xf]
  %v564 = vld [vmem:[%s2 + $0x10] sm:$0xf]
  %v565 = vld [vmem:[%s2 + $0x14] sm:$0xf]
  %v566 = vld [vmem:[%s2 + $0x18] sm:$0xf]
  %v567 = vld [vmem:[%s2 + $0x1c] sm:$0xf]
  %v568 = vld [vmem:[%s7] sm:$0xf]
  %v577 = vunpack.c.l.b16 %v560
  %v578 = vunpack.c.l.b16 %v561
  %v579 = vunpack.c.l.b16 %v562
  %v580 = vunpack.c.l.b16 %v563
  %v581 = vunpack.c.l.b16 %v564
  %v582 = vunpack.c.l.b16 %v565
  %v583 = vunpack.c.l.b16 %v566
  %v584 = vunpack.c.l.b16 %v567
  %v585 = vpack.c.b16 %v578, %v577
  %v586 = vpack.c.b16 %v580, %v579
  %v587 = vpack.c.b16 %v582, %v581
  %v588 = vpack.c.b16 %v584, %v583
  %v591 = vunpack.c.l.s4 1983009808
  %v592 = vunpack.c.0.s8 %v591
  %v593 = vlaneseq
  %v594 = vshrl.u32 %v593, 7
  %v595 = vsub.s32 %v592, %v594
  %v596 = vrot.slane %v568, %v595
  %v597 = vcombine.high %v596, %v596
  %vm598 = vcmask 31744
  %v600 = vsel %vm598, %v585, 0
  %v603 = vsel %vm598, %v586, 0
  %v606 = vsel %vm598, %v587, 0
  %v609 = vsel %vm598, %v588, 0
  %vm611 = vcmask 1041408
  %v613 = vsel %vm611, %v596, 0
  %v616 = vsel %vm611, %v597, 0
  %618 = vmatprep.subr.bf16.mxu0 0
  %619 = vmatpush1.bf16.msra.mxu0 0
  %620 = vmatprep.subr.bf16.mxu0 0
  %621 = vmatpush1.bf16.msra.mxu0 0
  %622 = vmatprep.subr.bf16.mxu0 0
  %623 = vmatpush1.bf16.msra.mxu0 0
  %624 = vmatprep.subr.bf16.mxu0 0
  %625 = vmatpush1.bf16.msra.mxu0 0
  %626 = vmatprep.subr.bf16.mxu0 0
  %627 = vmatpush1.bf16.msra.mxu0 0
  %628 = vmatprep.subr.bf16.mxu0 0
  %629 = vmatpush1.bf16.msra.mxu0 0
  %630 = vmatprep.subr.bf16.mxu0 0
  %631 = vmatpush1.bf16.msra.mxu0 0
  %632 = vmatprep.subr.bf16.mxu0 %v616
  %633 = vmatpush1.bf16.msra.mxu0 %v613
  %634 = vmatprep.subr.bf16.mxu0 0
  %635 = vmatpush2.bf16.msra.mxu0 0
  %636 = vmatprep.subr.bf16.mxu0 0
  %637 = vmatpush2.bf16.msra.mxu0 0
  %638 = vmatprep.subr.bf16.mxu0 0
  %639 = vmatpush2.bf16.msra.mxu0 0
  %640 = vmatprep.subr.bf16.mxu0 0
  %641 = vmatpush2.bf16.msra.mxu0 0
  %642 = vmatprep.subr.bf16.mxu0 0
  %643 = vmatpush2.bf16.msra.mxu0 0
  %644 = vmatprep.subr.bf16.mxu0 0
  %645 = vmatpush2.bf16.msra.mxu0 0
  %646 = vmatprep.subr.bf16.mxu0 0
  %647 = vmatpush2.bf16.msra.mxu0 0
  %648 = vmatprep.subr.bf16.mxu0 0
  %649 = vmatpush2.bf16.msra.mxu0 0
  %650 = vmatprep.mubr.bf16.mxu0 0
  %651 = vmatmul.mubr.bf16.gmra.mxu0 %v600
  %v652 = vpop.f32.mrf.mxu0
  %v653 = vadd.f32 0.0, %v652
  %v654 = vpop.f32.mrf.mxu0
  %v655 = vadd.f32 0.0, %v654
  %v656 = vpop.f32.mrf.mxu0
  %v657 = vadd.f32 0.0, %v656
  %v658 = vpop.f32.mrf.mxu0
  %v659 = vadd.f32 0.0, %v658
  %660 = vmatprep.mubr.bf16.mxu0 0
  %661 = vmatmul.mubr.bf16.gmra.mxu0 %v603
  %v662 = vpop.f32.mrf.mxu0
  %v663 = vadd.f32 0.0, %v662
  %v664 = vpop.f32.mrf.mxu0
  %v665 = vadd.f32 0.0, %v664
  %v666 = vpop.f32.mrf.mxu0
  %v667 = vadd.f32 0.0, %v666
  %v668 = vpop.f32.mrf.mxu0
  %v669 = vadd.f32 0.0, %v668
  %670 = vmatprep.mubr.bf16.mxu0 0
  %671 = vmatmul.mubr.bf16.gmra.mxu0 %v606
  %v672 = vpop.f32.mrf.mxu0
  %v673 = vadd.f32 0.0, %v672
  %v674 = vpop.f32.mrf.mxu0
  %v675 = vadd.f32 0.0, %v674
  %v676 = vpop.f32.mrf.mxu0
  %v677 = vadd.f32 0.0, %v676
  %v678 = vpop.f32.mrf.mxu0
  %v679 = vadd.f32 0.0, %v678
  %680 = vmatprep.mubr.bf16.mxu0 0
  %681 = vmatmul.mubr.bf16.gmra.mxu0 %v609
  %v682 = vpop.f32.mrf.mxu0
  %v683 = vadd.f32 0.0, %v682
  %v684 = vpop.f32.mrf.mxu0
  %v685 = vadd.f32 0.0, %v684
  %v686 = vpop.f32.mrf.mxu0
  %v687 = vadd.f32 0.0, %v686
  %v688 = vpop.f32.mrf.mxu0
  %v689 = vadd.f32 0.0, %v688
  %690 = vdwg.mxu0
  %v691 = vadd.f32 %v522, %v653
  %v692 = vadd.f32 %v524, %v655
  %v693 = vadd.f32 %v526, %v657
  %v694 = vadd.f32 %v528, %v659
  %v695 = vadd.f32 %v532, %v663
  %v696 = vadd.f32 %v534, %v665
  %v697 = vadd.f32 %v536, %v667
  %v698 = vadd.f32 %v538, %v669
  %v699 = vadd.f32 %v542, %v673
  %v700 = vadd.f32 %v544, %v675
  %v701 = vadd.f32 %v546, %v677
  %v702 = vadd.f32 %v548, %v679
  %v703 = vadd.f32 %v552, %v683
  %v704 = vadd.f32 %v554, %v685
  %v705 = vadd.f32 %v556, %v687
  %v706 = vadd.f32 %v558, %v689
  %v707 = vld [vmem:[%s8] sm:$0x3]
  %v709 = vlaneseq
  %v710 = vshrl.u32 %v709, 7
  %v711 = vsub.s32 0, %v710
  %v712 = vrot.slane %v707, %v711
  %v713 = vlaneseq
  %v714 = vshrl.u32 %v713, 7
  %v715 = vsub.s32 1, %v714
  %v716 = vrot.slane %v707, %v715
  %v719 = vmul.f32 %v344, %v712
  %v720 = vmul.f32 %v344, %v716
  %v721 = vmul.f32 %v347, %v712
  %v722 = vmul.f32 %v347, %v716
  %v723 = vmul.f32 %v350, %v712
  %v724 = vmul.f32 %v350, %v716
  %v725 = vmul.f32 %v353, %v712
  %v726 = vmul.f32 %v353, %v716
  %v727 = vmul.f32 %v356, %v712
  %v728 = vmul.f32 %v356, %v716
  %v729 = vmul.f32 %v359, %v712
  %v730 = vmul.f32 %v359, %v716
  %v731 = vmul.f32 %v362, %v712
  %v732 = vmul.f32 %v362, %v716
  %v733 = vmul.f32 %v365, %v712
  %v734 = vmul.f32 %v365, %v716
  %v735 = vadd.f32 %v691, %v719
  %v736 = vadd.f32 %v692, %v720
  %v737 = vadd.f32 %v693, %v721
  %v738 = vadd.f32 %v694, %v722
  %v739 = vadd.f32 %v695, %v723
  %v740 = vadd.f32 %v696, %v724
  %v741 = vadd.f32 %v697, %v725
  %v742 = vadd.f32 %v698, %v726
  %v743 = vadd.f32 %v699, %v727
  %v744 = vadd.f32 %v700, %v728
  %v745 = vadd.f32 %v701, %v729
  %v746 = vadd.f32 %v702, %v730
  %v747 = vadd.f32 %v703, %v731
  %v748 = vadd.f32 %v704, %v732
  %v749 = vadd.f32 %v705, %v733
  %v750 = vadd.f32 %v706, %v734
  %v751 = vld [vmem:[%s9] sm:$0x3]
  %v753 = vlaneseq
  %v754 = vshrl.u32 %v753, 7
  %v755 = vsub.s32 0, %v754
  %v756 = vrot.slane %v751, %v755
  %v757 = vlaneseq
  %v758 = vshrl.u32 %v757, 7
  %v759 = vsub.s32 1, %v758
  %v760 = vrot.slane %v751, %v759
  %v763 = vadd.f32 %v735, %v756
  %v764 = vadd.f32 %v736, %v760
  %v765 = vadd.f32 %v737, %v756
  %v766 = vadd.f32 %v738, %v760
  %v767 = vadd.f32 %v739, %v756
  %v768 = vadd.f32 %v740, %v760
  %v769 = vadd.f32 %v741, %v756
  %v770 = vadd.f32 %v742, %v760
  %v771 = vadd.f32 %v743, %v756
  %v772 = vadd.f32 %v744, %v760
  %v773 = vadd.f32 %v745, %v756
  %v774 = vadd.f32 %v746, %v760
  %v775 = vadd.f32 %v747, %v756
  %v776 = vadd.f32 %v748, %v760
  %v777 = vadd.f32 %v749, %v756
  %v778 = vadd.f32 %v750, %v760
  %v779 = vxor.u32 %v763, 2147483648
  %v780 = vxor.u32 %v764, 2147483648
  %v781 = vxor.u32 %v765, 2147483648
  %v782 = vxor.u32 %v766, 2147483648
  %v783 = vxor.u32 %v767, 2147483648
  %v784 = vxor.u32 %v768, 2147483648
  %v785 = vxor.u32 %v769, 2147483648
  %v786 = vxor.u32 %v770, 2147483648
  %v787 = vxor.u32 %v771, 2147483648
  %v788 = vxor.u32 %v772, 2147483648
  %v789 = vxor.u32 %v773, 2147483648
  %v790 = vxor.u32 %v774, 2147483648
  %v791 = vxor.u32 %v775, 2147483648
  %v792 = vxor.u32 %v776, 2147483648
  %v793 = vxor.u32 %v777, 2147483648
  %v794 = vxor.u32 %v778, 2147483648
  %v795 = vmul.f32 %v779, 1.442695
  %v796 = vpow.pop %v795
  %v797 = vmul.f32 %v780, 1.442695
  %v798 = vpow.pop %v797
  %v799 = vmul.f32 %v781, 1.442695
  %v800 = vpow.pop %v799
  %v801 = vmul.f32 %v782, 1.442695
  %v802 = vpow.pop %v801
  %v803 = vmul.f32 %v783, 1.442695
  %v804 = vpow.pop %v803
  %v805 = vmul.f32 %v784, 1.442695
  %v806 = vpow.pop %v805
  %v807 = vmul.f32 %v785, 1.442695
  %v808 = vpow.pop %v807
  %v809 = vmul.f32 %v786, 1.442695
  %v810 = vpow.pop %v809
  %v811 = vmul.f32 %v787, 1.442695
  %v812 = vpow.pop %v811
  %v813 = vmul.f32 %v788, 1.442695
  %v814 = vpow.pop %v813
  %v815 = vmul.f32 %v789, 1.442695
  %v816 = vpow.pop %v815
  %v817 = vmul.f32 %v790, 1.442695
  %v818 = vpow.pop %v817
  %v819 = vmul.f32 %v791, 1.442695
  %v820 = vpow.pop %v819
  %v821 = vmul.f32 %v792, 1.442695
  %v822 = vpow.pop %v821
  %v823 = vmul.f32 %v793, 1.442695
  %v824 = vpow.pop %v823
  %v825 = vmul.f32 %v794, 1.442695
  %v826 = vpow.pop %v825
  %v827 = vadd.f32 %v796, 1.0
  %v828 = vadd.f32 %v798, 1.0
  %v829 = vadd.f32 %v800, 1.0
  %v830 = vadd.f32 %v802, 1.0
  %v831 = vadd.f32 %v804, 1.0
  %v832 = vadd.f32 %v806, 1.0
  %v833 = vadd.f32 %v808, 1.0
  %v834 = vadd.f32 %v810, 1.0
  %v835 = vadd.f32 %v812, 1.0
  %v836 = vadd.f32 %v814, 1.0
  %v837 = vadd.f32 %v816, 1.0
  %v838 = vadd.f32 %v818, 1.0
  %v839 = vadd.f32 %v820, 1.0
  %v840 = vadd.f32 %v822, 1.0
  %v841 = vadd.f32 %v824, 1.0
  %v842 = vadd.f32 %v826, 1.0
  %v843 = vrcp.pop %v827
  %v844 = vmul.f32 1.0, %v843
  %v845 = vrcp.pop %v828
  %v846 = vmul.f32 1.0, %v845
  %v847 = vrcp.pop %v829
  %v848 = vmul.f32 1.0, %v847
  %v849 = vrcp.pop %v830
  %v850 = vmul.f32 1.0, %v849
  %v851 = vrcp.pop %v831
  %v852 = vmul.f32 1.0, %v851
  %v853 = vrcp.pop %v832
  %v854 = vmul.f32 1.0, %v853
  %v855 = vrcp.pop %v833
  %v856 = vmul.f32 1.0, %v855
  %v857 = vrcp.pop %v834
  %v858 = vmul.f32 1.0, %v857
  %v859 = vrcp.pop %v835
  %v860 = vmul.f32 1.0, %v859
  %v861 = vrcp.pop %v836
  %v862 = vmul.f32 1.0, %v861
  %v863 = vrcp.pop %v837
  %v864 = vmul.f32 1.0, %v863
  %v865 = vrcp.pop %v838
  %v866 = vmul.f32 1.0, %v865
  %v867 = vrcp.pop %v839
  %v868 = vmul.f32 1.0, %v867
  %v869 = vrcp.pop %v840
  %v870 = vmul.f32 1.0, %v869
  %v871 = vrcp.pop %v841
  %v872 = vmul.f32 1.0, %v871
  %v873 = vrcp.pop %v842
  %v874 = vmul.f32 1.0, %v873
  %v875 = vmul.f32 %v763, %v844
  %v876 = vmul.f32 %v764, %v846
  %v877 = vmul.f32 %v765, %v848
  %v878 = vmul.f32 %v766, %v850
  %v879 = vmul.f32 %v767, %v852
  %v880 = vmul.f32 %v768, %v854
  %v881 = vmul.f32 %v769, %v856
  %v882 = vmul.f32 %v770, %v858
  %v883 = vmul.f32 %v771, %v860
  %v884 = vmul.f32 %v772, %v862
  %v885 = vmul.f32 %v773, %v864
  %v886 = vmul.f32 %v774, %v866
  %v887 = vmul.f32 %v775, %v868
  %v888 = vmul.f32 %v776, %v870
  %v889 = vmul.f32 %v777, %v872
  %v890 = vmul.f32 %v778, %v874
  %v891 = vpack.c.bf16 %v877, %v875
  %v892 = vpack.c.bf16 %v878, %v876
  %v893 = vpack.c.bf16 %v881, %v879
  %v894 = vpack.c.bf16 %v882, %v880
  %v895 = vpack.c.bf16 %v885, %v883
  %v896 = vpack.c.bf16 %v886, %v884
  %v897 = vpack.c.bf16 %v889, %v887
  %v898 = vpack.c.bf16 %v890, %v888
  %v899 = vld [vmem:[%s10] sm:$0xf]
  %v900 = vld [vmem:[%s10 + $0x4] sm:$0xf]
  %v901 = vld [vmem:[%s10 + $0x8] sm:$0xf]
  %v902 = vld [vmem:[%s10 + $0xc] sm:$0xf]
  %v903 = vld [vmem:[%s10 + $0x10] sm:$0xf]
  %v904 = vld [vmem:[%s10 + $0x14] sm:$0xf]
  %v905 = vld [vmem:[%s10 + $0x18] sm:$0xf]
  %v906 = vld [vmem:[%s10 + $0x1c] sm:$0xf]
  %v907 = vld [vmem:[%s10 + $0x20] sm:$0xf]
  %v908 = vld [vmem:[%s10 + $0x24] sm:$0xf]
  %v909 = vld [vmem:[%s10 + $0x28] sm:$0xf]
  %v910 = vld [vmem:[%s10 + $0x2c] sm:$0xf]
  %v911 = vld [vmem:[%s10 + $0x30] sm:$0xf]
  %v912 = vld [vmem:[%s10 + $0x34] sm:$0xf]
  %v913 = vld [vmem:[%s10 + $0x38] sm:$0xf]
  %v914 = vld [vmem:[%s10 + $0x3c] sm:$0xf]
  %v915 = vld [vmem:[%s10 + $0x40] sm:$0xf]
  %v916 = vld [vmem:[%s10 + $0x44] sm:$0x1]
  %v917 = vld [vmem:[%s11] sm:$0x1]
  %v919 = vlaneseq
  %v920 = vshrl.u32 %v919, 7
  %v921 = vsub.s32 0, %v920
  %v922 = vrot.slane %v917, %v921
  %v942 = vunpack.c.l.b16 %v899
  %v943 = vunpack.c.l.b16 %v900
  %v944 = vunpack.c.l.b16 %v901
  %v945 = vunpack.c.l.b16 %v902
  %v946 = vunpack.c.l.b16 %v903
  %v947 = vunpack.c.l.b16 %v904
  %v948 = vunpack.c.l.b16 %v905
  %v949 = vunpack.c.l.b16 %v906
  %v950 = vunpack.c.l.b16 %v907
  %v951 = vunpack.c.l.b16 %v908
  %v952 = vunpack.c.l.b16 %v909
  %v953 = vunpack.c.l.b16 %v910
  %v954 = vunpack.c.l.b16 %v911
  %v955 = vunpack.c.l.b16 %v912
  %v956 = vunpack.c.l.b16 %v913
  %v957 = vunpack.c.l.b16 %v914
  %v958 = vunpack.c.l.b16 %v915
  %v959 = vunpack.c.l.b16 %v916
  %v960 = vpack.c.b16 %v943, %v942
  %v961 = vpack.c.b16 %v945, %v944
  %v962 = vpack.c.b16 %v947, %v946
  %v963 = vpack.c.b16 %v949, %v948
  %v964 = vpack.c.b16 %v951, %v950
  %v965 = vpack.c.b16 %v953, %v952
  %v966 = vpack.c.b16 %v955, %v954
  %v967 = vpack.c.b16 %v957, %v956
  %v968 = vpack.c.b16 %v959, %v958
  %vm977 = vcmask 80896
  %v979 = vsel %vm977, %v892, 0
  %v982 = vsel %vm977, %v894, 0
  %v985 = vsel %vm977, %v896, 0
  %v988 = vsel %vm977, %v898, 0
  %vm990 = vcmask 1044480
  %v992 = vsel %vm990, %v968, 0
  %994 = vmatprep.subr.bf16.mxu0 0
  %995 = vmatpush1.bf16.msra.mxu0 %v967
  %996 = vmatprep.subr.bf16.mxu0 0
  %997 = vmatpush1.bf16.msra.mxu0 %v966
  %998 = vmatprep.subr.bf16.mxu0 0
  %999 = vmatpush1.bf16.msra.mxu0 %v965
  %1000 = vmatprep.subr.bf16.mxu0 0
  %1001 = vmatpush1.bf16.msra.mxu0 %v964
  %1002 = vmatprep.subr.bf16.mxu0 0
  %1003 = vmatpush1.bf16.msra.mxu0 %v963
  %1004 = vmatprep.subr.bf16.mxu0 0
  %1005 = vmatpush1.bf16.msra.mxu0 %v962
  %1006 = vmatprep.subr.bf16.mxu0 0
  %1007 = vmatpush1.bf16.msra.mxu0 %v961
  %1008 = vmatprep.subr.bf16.mxu0 0
  %1009 = vmatpush1.bf16.msra.mxu0 %v960
  %1010 = vmatprep.subr.bf16.mxu0 0
  %1011 = vmatpush2.bf16.msra.mxu0 0
  %1012 = vmatprep.subr.bf16.mxu0 0
  %1013 = vmatpush2.bf16.msra.mxu0 0
  %1014 = vmatprep.subr.bf16.mxu0 0
  %1015 = vmatpush2.bf16.msra.mxu0 0
  %1016 = vmatprep.subr.bf16.mxu0 0
  %1017 = vmatpush2.bf16.msra.mxu0 0
  %1018 = vmatprep.subr.bf16.mxu0 0
  %1019 = vmatpush2.bf16.msra.mxu0 0
  %1020 = vmatprep.subr.bf16.mxu0 0
  %1021 = vmatpush2.bf16.msra.mxu0 0
  %1022 = vmatprep.subr.bf16.mxu0 0
  %1023 = vmatpush2.bf16.msra.mxu0 0
  %1024 = vmatprep.subr.bf16.mxu0 0
  %1025 = vmatpush2.bf16.msra.mxu0 %v992
  %1026 = vmatprep.mubr.bf16.mxu0 %v979
  %1027 = vmatmul.mubr.bf16.gmra.mxu0 %v891
  %v1028 = vpop.f32.mrf.mxu0
  %v1029 = vadd.f32 %v922, %v1028
  %v1030 = vpop.f32.mrf.mxu0
  %v1031 = vpop.f32.mrf.mxu0
  %v1032 = vadd.f32 %v922, %v1031
  %v1033 = vpop.f32.mrf.mxu0
  %1034 = vmatprep.mubr.bf16.mxu0 %v982
  %1035 = vmatmul.mubr.bf16.gmra.mxu0 %v893
  %v1036 = vpop.f32.mrf.mxu0
  %v1037 = vadd.f32 %v922, %v1036
  %v1038 = vpop.f32.mrf.mxu0
  %v1039 = vpop.f32.mrf.mxu0
  %v1040 = vadd.f32 %v922, %v1039
  %v1041 = vpop.f32.mrf.mxu0
  %1042 = vmatprep.mubr.bf16.mxu0 %v985
  %1043 = vmatmul.mubr.bf16.gmra.mxu0 %v895
  %v1044 = vpop.f32.mrf.mxu0
  %v1045 = vadd.f32 %v922, %v1044
  %v1046 = vpop.f32.mrf.mxu0
  %v1047 = vpop.f32.mrf.mxu0
  %v1048 = vadd.f32 %v922, %v1047
  %v1049 = vpop.f32.mrf.mxu0
  %1050 = vmatprep.mubr.bf16.mxu0 %v988
  %1051 = vmatmul.mubr.bf16.gmra.mxu0 %v897
  %v1052 = vpop.f32.mrf.mxu0
  %v1053 = vadd.f32 %v922, %v1052
  %v1054 = vpop.f32.mrf.mxu0
  %v1055 = vpop.f32.mrf.mxu0
  %v1056 = vadd.f32 %v922, %v1055
  %v1057 = vpop.f32.mrf.mxu0
  %1058 = vdwg.mxu0
  %v1059 = vxor.u32 %v1029, 2147483648
  %v1060 = vxor.u32 %v1032, 2147483648
  %v1061 = vxor.u32 %v1037, 2147483648
  %v1062 = vxor.u32 %v1040, 2147483648
  %v1063 = vxor.u32 %v1045, 2147483648
  %v1064 = vxor.u32 %v1048, 2147483648
  %v1065 = vxor.u32 %v1053, 2147483648
  %v1066 = vxor.u32 %v1056, 2147483648
  %v1067 = vmul.f32 %v1059, 1.442695
  %v1068 = vpow.pop %v1067
  %v1069 = vmul.f32 %v1060, 1.442695
  %v1070 = vpow.pop %v1069
  %v1071 = vmul.f32 %v1061, 1.442695
  %v1072 = vpow.pop %v1071
  %v1073 = vmul.f32 %v1062, 1.442695
  %v1074 = vpow.pop %v1073
  %v1075 = vmul.f32 %v1063, 1.442695
  %v1076 = vpow.pop %v1075
  %v1077 = vmul.f32 %v1064, 1.442695
  %v1078 = vpow.pop %v1077
  %v1079 = vmul.f32 %v1065, 1.442695
  %v1080 = vpow.pop %v1079
  %v1081 = vmul.f32 %v1066, 1.442695
  %v1082 = vpow.pop %v1081
  %v1083 = vadd.f32 %v1068, 1.0
  %v1084 = vadd.f32 %v1070, 1.0
  %v1085 = vadd.f32 %v1072, 1.0
  %v1086 = vadd.f32 %v1074, 1.0
  %v1087 = vadd.f32 %v1076, 1.0
  %v1088 = vadd.f32 %v1078, 1.0
  %v1089 = vadd.f32 %v1080, 1.0
  %v1090 = vadd.f32 %v1082, 1.0
  %v1091 = vrcp.pop %v1083
  %v1092 = vmul.f32 1.0, %v1091
  %v1093 = vrcp.pop %v1084
  %v1094 = vmul.f32 1.0, %v1093
  %v1095 = vrcp.pop %v1085
  %v1096 = vmul.f32 1.0, %v1095
  %v1097 = vrcp.pop %v1086
  %v1098 = vmul.f32 1.0, %v1097
  %v1099 = vrcp.pop %v1087
  %v1100 = vmul.f32 1.0, %v1099
  %v1101 = vrcp.pop %v1088
  %v1102 = vmul.f32 1.0, %v1101
  %v1103 = vrcp.pop %v1089
  %v1104 = vmul.f32 1.0, %v1103
  %v1105 = vrcp.pop %v1090
  %v1106 = vmul.f32 1.0, %v1105
  %v1107 = vmul.f32 %v1029, %v1092
  %v1108 = vmul.f32 %v1032, %v1094
  %v1109 = vmul.f32 %v1037, %v1096
  %v1110 = vmul.f32 %v1040, %v1098
  %v1111 = vmul.f32 %v1045, %v1100
  %v1112 = vmul.f32 %v1048, %v1102
  %v1113 = vmul.f32 %v1053, %v1104
  %v1114 = vmul.f32 %v1056, %v1106
  %v1115 = vpack.c.bf16 %v1108, %v1107
  %v1116 = vpack.c.bf16 %v1110, %v1109
  %v1117 = vpack.c.bf16 %v1112, %v1111
  %v1118 = vpack.c.bf16 %v1114, %v1113
  %v1119 = vld [vmem:[%s12] sm:$0xf]
  %v1120 = vld [vmem:[%s12 + $0x4] sm:$0xf]
  %v1121 = vld [vmem:[%s13] sm:$0x1]
  %v1123 = vlaneseq
  %v1124 = vshrl.u32 %v1123, 7
  %v1125 = vsub.s32 0, %v1124
  %v1126 = vrot.slane %v1121, %v1125
  %v1130 = vunpack.c.l.b16 %v1119
  %v1131 = vunpack.c.l.b16 %v1120
  %v1132 = vpack.c.b16 %v1131, %v1130
  %v1135 = vsel %vm203, %v1115, 0
  %v1138 = vsel %vm203, %v1116, 0
  %v1141 = vsel %vm203, %v1117, 0
  %v1144 = vsel %vm203, %v1118, 0
  %1146 = vmatprep.subr.bf16.mxu0 0
  %1147 = vmatpush1.bf16.msra.mxu0 0
  %1148 = vmatprep.subr.bf16.mxu0 0
  %1149 = vmatpush1.bf16.msra.mxu0 0
  %1150 = vmatprep.subr.bf16.mxu0 0
  %1151 = vmatpush1.bf16.msra.mxu0 0
  %1152 = vmatprep.subr.bf16.mxu0 0
  %1153 = vmatpush1.bf16.msra.mxu0 0
  %1154 = vmatprep.subr.bf16.mxu0 0
  %1155 = vmatpush1.bf16.msra.mxu0 0
  %1156 = vmatprep.subr.bf16.mxu0 0
  %1157 = vmatpush1.bf16.msra.mxu0 0
  %1158 = vmatprep.subr.bf16.mxu0 0
  %1159 = vmatpush1.bf16.msra.mxu0 0
  %1160 = vmatprep.subr.bf16.mxu0 0
  %1161 = vmatpush1.bf16.msra.mxu0 %v1132
  %1162 = vmatprep.subr.bf16.mxu0 0
  %1163 = vmatpush2.bf16.msra.mxu0 0
  %1164 = vmatprep.subr.bf16.mxu0 0
  %1165 = vmatpush2.bf16.msra.mxu0 0
  %1166 = vmatprep.subr.bf16.mxu0 0
  %1167 = vmatpush2.bf16.msra.mxu0 0
  %1168 = vmatprep.subr.bf16.mxu0 0
  %1169 = vmatpush2.bf16.msra.mxu0 0
  %1170 = vmatprep.subr.bf16.mxu0 0
  %1171 = vmatpush2.bf16.msra.mxu0 0
  %1172 = vmatprep.subr.bf16.mxu0 0
  %1173 = vmatpush2.bf16.msra.mxu0 0
  %1174 = vmatprep.subr.bf16.mxu0 0
  %1175 = vmatpush2.bf16.msra.mxu0 0
  %1176 = vmatprep.subr.bf16.mxu0 0
  %1177 = vmatpush2.bf16.msra.mxu0 0
  %1178 = vmatprep.mubr.bf16.mxu0 0
  %1179 = vmatmul.mubr.bf16.gmra.mxu0 %v1135
  %v1180 = vpop.f32.mrf.mxu0
  %v1181 = vadd.f32 %v1126, %v1180
  %v1182 = vpop.f32.mrf.mxu0
  %v1183 = vpop.f32.mrf.mxu0
  %v1184 = vadd.f32 %v1126, %v1183
  %v1185 = vpop.f32.mrf.mxu0
  %1186 = vmatprep.mubr.bf16.mxu0 0
  %1187 = vmatmul.mubr.bf16.gmra.mxu0 %v1138
  %v1188 = vpop.f32.mrf.mxu0
  %v1189 = vadd.f32 %v1126, %v1188
  %v1190 = vpop.f32.mrf.mxu0
  %v1191 = vpop.f32.mrf.mxu0
  %v1192 = vadd.f32 %v1126, %v1191
  %v1193 = vpop.f32.mrf.mxu0
  %1194 = vmatprep.mubr.bf16.mxu0 0
  %1195 = vmatmul.mubr.bf16.gmra.mxu0 %v1141
  %v1196 = vpop.f32.mrf.mxu0
  %v1197 = vadd.f32 %v1126, %v1196
  %v1198 = vpop.f32.mrf.mxu0
  %v1199 = vpop.f32.mrf.mxu0
  %v1200 = vadd.f32 %v1126, %v1199
  %v1201 = vpop.f32.mrf.mxu0
  %1202 = vmatprep.mubr.bf16.mxu0 0
  %1203 = vmatmul.mubr.bf16.gmra.mxu0 %v1144
  %v1204 = vpop.f32.mrf.mxu0
  %v1205 = vadd.f32 %v1126, %v1204
  %v1206 = vpop.f32.mrf.mxu0
  %v1207 = vpop.f32.mrf.mxu0
  %v1208 = vadd.f32 %v1126, %v1207
  %v1209 = vpop.f32.mrf.mxu0
  %1210 = vdwg.mxu0
  %v1211 = vxor.u32 %v1181, 2147483648
  %v1212 = vxor.u32 %v1184, 2147483648
  %v1213 = vxor.u32 %v1189, 2147483648
  %v1214 = vxor.u32 %v1192, 2147483648
  %v1215 = vxor.u32 %v1197, 2147483648
  %v1216 = vxor.u32 %v1200, 2147483648
  %v1217 = vxor.u32 %v1205, 2147483648
  %v1218 = vxor.u32 %v1208, 2147483648
  %v1219 = vmul.f32 %v1211, 1.442695
  %v1220 = vpow.pop %v1219
  %v1221 = vmul.f32 %v1212, 1.442695
  %v1222 = vpow.pop %v1221
  %v1223 = vmul.f32 %v1213, 1.442695
  %v1224 = vpow.pop %v1223
  %v1225 = vmul.f32 %v1214, 1.442695
  %v1226 = vpow.pop %v1225
  %v1227 = vmul.f32 %v1215, 1.442695
  %v1228 = vpow.pop %v1227
  %v1229 = vmul.f32 %v1216, 1.442695
  %v1230 = vpow.pop %v1229
  %v1231 = vmul.f32 %v1217, 1.442695
  %v1232 = vpow.pop %v1231
  %v1233 = vmul.f32 %v1218, 1.442695
  %v1234 = vpow.pop %v1233
  %v1235 = vadd.f32 %v1220, 1.0
  %v1236 = vadd.f32 %v1222, 1.0
  %v1237 = vadd.f32 %v1224, 1.0
  %v1238 = vadd.f32 %v1226, 1.0
  %v1239 = vadd.f32 %v1228, 1.0
  %v1240 = vadd.f32 %v1230, 1.0
  %v1241 = vadd.f32 %v1232, 1.0
  %v1242 = vadd.f32 %v1234, 1.0
  %v1243 = vrcp.pop %v1235
  %v1244 = vmul.f32 1.0, %v1243
  %v1245 = vrcp.pop %v1236
  %v1246 = vmul.f32 1.0, %v1245
  %v1247 = vrcp.pop %v1237
  %v1248 = vmul.f32 1.0, %v1247
  %v1249 = vrcp.pop %v1238
  %v1250 = vmul.f32 1.0, %v1249
  %v1251 = vrcp.pop %v1239
  %v1252 = vmul.f32 1.0, %v1251
  %v1253 = vrcp.pop %v1240
  %v1254 = vmul.f32 1.0, %v1253
  %v1255 = vrcp.pop %v1241
  %v1256 = vmul.f32 1.0, %v1255
  %v1257 = vrcp.pop %v1242
  %v1258 = vmul.f32 1.0, %v1257
  %v1259 = vmul.f32 %v1181, %v1244
  %v1260 = vmul.f32 %v1184, %v1246
  %v1261 = vmul.f32 %v1189, %v1248
  %v1262 = vmul.f32 %v1192, %v1250
  %v1263 = vmul.f32 %v1197, %v1252
  %v1264 = vmul.f32 %v1200, %v1254
  %v1265 = vmul.f32 %v1205, %v1256
  %v1266 = vmul.f32 %v1208, %v1258
  %v1267 = vpack.c.bf16 %v1260, %v1259
  %v1268 = vpack.c.bf16 %v1262, %v1261
  %v1269 = vpack.c.bf16 %v1264, %v1263
  %v1270 = vpack.c.bf16 %v1266, %v1265
  %v1271 = vld [vmem:[%s14] sm:$0xf]
  %v1272 = vld [vmem:[%s14 + $0x4] sm:$0xf]
  %v1273 = vld [vmem:[%s14 + $0x8] sm:$0xf]
  %v1274 = vld [vmem:[%s14 + $0xc] sm:$0xf]
  %v1275 = vld [vmem:[%s14 + $0x10] sm:$0xf]
  %v1276 = vld [vmem:[%s14 + $0x14] sm:$0xf]
  %v1277 = vld [vmem:[%s14 + $0x18] sm:$0xf]
  %v1278 = vld [vmem:[%s14 + $0x1c] sm:$0xf]
  %v1279 = vld [vmem:[#allocation4] sm:$0x1]
  %v1281 = vlaneseq
  %v1282 = vshrl.u32 %v1281, 7
  %v1283 = vsub.s32 0, %v1282
  %v1284 = vrot.slane %v1279, %v1283
  %v1294 = vunpack.c.l.b16 %v1271
  %v1295 = vunpack.c.l.b16 %v1272
  %v1296 = vunpack.c.l.b16 %v1273
  %v1297 = vunpack.c.l.b16 %v1274
  %v1298 = vunpack.c.l.b16 %v1275
  %v1299 = vunpack.c.l.b16 %v1276
  %v1300 = vunpack.c.l.b16 %v1277
  %v1301 = vunpack.c.l.b16 %v1278
  %v1302 = vpack.c.b16 %v1295, %v1294
  %v1303 = vpack.c.b16 %v1297, %v1296
  %v1304 = vpack.c.b16 %v1299, %v1298
  %v1305 = vpack.c.b16 %v1301, %v1300
  %vm1310 = vcmask 523264
  %v1312 = vsel %vm1310, %v1267, 0
  %v1315 = vsel %vm1310, %v1268, 0
  %v1318 = vsel %vm1310, %v1269, 0
  %v1321 = vsel %vm1310, %v1270, 0
  %1323 = vmatprep.subr.bf16.mxu0 0
  %1324 = vmatpush1.bf16.msra.mxu0 0
  %1325 = vmatprep.subr.bf16.mxu0 0
  %1326 = vmatpush1.bf16.msra.mxu0 0
  %1327 = vmatprep.subr.bf16.mxu0 0
  %1328 = vmatpush1.bf16.msra.mxu0 0
  %1329 = vmatprep.subr.bf16.mxu0 0
  %1330 = vmatpush1.bf16.msra.mxu0 0
  %1331 = vmatprep.subr.bf16.mxu0 0
  %1332 = vmatpush1.bf16.msra.mxu0 %v1305
  %1333 = vmatprep.subr.bf16.mxu0 0
  %1334 = vmatpush1.bf16.msra.mxu0 %v1304
  %1335 = vmatprep.subr.bf16.mxu0 0
  %1336 = vmatpush1.bf16.msra.mxu0 %v1303
  %1337 = vmatprep.subr.bf16.mxu0 0
  %1338 = vmatpush1.bf16.msra.mxu0 %v1302
  %1339 = vmatprep.subr.bf16.mxu0 0
  %1340 = vmatpush2.bf16.msra.mxu0 0
  %1341 = vmatprep.subr.bf16.mxu0 0
  %1342 = vmatpush2.bf16.msra.mxu0 0
  %1343 = vmatprep.subr.bf16.mxu0 0
  %1344 = vmatpush2.bf16.msra.mxu0 0
  %1345 = vmatprep.subr.bf16.mxu0 0
  %1346 = vmatpush2.bf16.msra.mxu0 0
  %1347 = vmatprep.subr.bf16.mxu0 0
  %1348 = vmatpush2.bf16.msra.mxu0 0
  %1349 = vmatprep.subr.bf16.mxu0 0
  %1350 = vmatpush2.bf16.msra.mxu0 0
  %1351 = vmatprep.subr.bf16.mxu0 0
  %1352 = vmatpush2.bf16.msra.mxu0 0
  %1353 = vmatprep.subr.bf16.mxu0 0
  %1354 = vmatpush2.bf16.msra.mxu0 0
  %1355 = vmatprep.mubr.bf16.mxu0 0
  %1356 = vmatmul.mubr.bf16.gmra.mxu0 %v1312
  %v1357 = vpop.f32.mrf.mxu0
  %v1358 = vadd.f32 %v1284, %v1357
  %v1359 = vpop.f32.mrf.mxu0
  %v1360 = vpop.f32.mrf.mxu0
  %v1361 = vadd.f32 %v1284, %v1360
  %v1362 = vpop.f32.mrf.mxu0
  %1363 = vmatprep.mubr.bf16.mxu0 0
  %1364 = vmatmul.mubr.bf16.gmra.mxu0 %v1315
  %v1365 = vpop.f32.mrf.mxu0
  %v1366 = vadd.f32 %v1284, %v1365
  %v1367 = vpop.f32.mrf.mxu0
  %v1368 = vpop.f32.mrf.mxu0
  %v1369 = vadd.f32 %v1284, %v1368
  %v1370 = vpop.f32.mrf.mxu0
  %1371 = vmatprep.mubr.bf16.mxu0 0
  %1372 = vmatmul.mubr.bf16.gmra.mxu0 %v1318
  %v1373 = vpop.f32.mrf.mxu0
  %v1374 = vadd.f32 %v1284, %v1373
  %v1375 = vpop.f32.mrf.mxu0
  %v1376 = vpop.f32.mrf.mxu0
  %v1377 = vadd.f32 %v1284, %v1376
  %v1378 = vpop.f32.mrf.mxu0
  %1379 = vmatprep.mubr.bf16.mxu0 0
  %1380 = vmatmul.mubr.bf16.gmra.mxu0 %v1321
  %v1381 = vpop.f32.mrf.mxu0
  %v1382 = vadd.f32 %v1284, %v1381
  %v1383 = vpop.f32.mrf.mxu0
  %v1384 = vpop.f32.mrf.mxu0
  %v1385 = vadd.f32 %v1284, %v1384
  %v1386 = vpop.f32.mrf.mxu0
  %1387 = vdwg.mxu0
  %1389 = vset.pattern.permute.xlu0 0
  %1390 = vperm.xlu0 %1389, %v1358
  %v1391 = vpop.permute.xlu0 %1390
  %1394 = vset.pattern.permute.xlu0 0
  %1395 = vperm.xlu0 %1394, %v1361
  %v1396 = vpop.permute.xlu0 %1395
  %1399 = vset.pattern.permute.xlu0 0
  %1400 = vperm.xlu0 %1399, %v1366
  %v1401 = vpop.permute.xlu0 %1400
  %1404 = vset.pattern.permute.xlu0 0
  %1405 = vperm.xlu0 %1404, %v1369
  %v1406 = vpop.permute.xlu0 %1405
  %1409 = vset.pattern.permute.xlu0 0
  %1410 = vperm.xlu0 %1409, %v1374
  %v1411 = vpop.permute.xlu0 %1410
  %1414 = vset.pattern.permute.xlu0 0
  %1415 = vperm.xlu0 %1414, %v1377
  %v1416 = vpop.permute.xlu0 %1415
  %1419 = vset.pattern.permute.xlu0 0
  %1420 = vperm.xlu0 %1419, %v1382
  %v1421 = vpop.permute.xlu0 %1420
  %1424 = vset.pattern.permute.xlu0 0
  %1425 = vperm.xlu0 %1424, %v1385
  %v1426 = vpop.permute.xlu0 %1425
  %v1428 = vmul.f32 %v1391, %v295
  %v1429 = vmul.f32 %v1396, %v300
  %v1430 = vmul.f32 %v1401, %v305
  %v1431 = vmul.f32 %v1406, %v310
  %v1432 = vmul.f32 %v1411, %v315
  %v1433 = vmul.f32 %v1416, %v320
  %v1434 = vmul.f32 %v1421, %v325
  %v1435 = vmul.f32 %v1426, %v330
  %v1436 = vld [vmem:[#allocation2] sm:$0xff]
  %v1437 = vld [vmem:[#allocation2 + $0x8] sm:$0xff]
  %1438 = vxpose.xlu0.b32.start [1/16] %v177, 128
  %1439 = vxpose.xlu0.b32.cont [2/16] %v178, 128
  %1440 = vxpose.xlu0.b32.cont [3/16] %v179, 128
  %1441 = vxpose.xlu0.b32.cont [4/16] %v180, 128
  %1442 = vxpose.xlu0.b32.cont [5/16] %v181, 128
  %1443 = vxpose.xlu0.b32.cont [6/16] %v182, 128
  %1444 = vxpose.xlu0.b32.cont [7/16] %v183, 128
  %1445 = vxpose.xlu0.b32.cont [8/16] %v184, 128
  %1446 = vxpose.xlu0.b32.cont [9/16] 0.0, 128
  %1447 = vxpose.xlu0.b32.cont [10/16] 0.0, 128
  %1448 = vxpose.xlu0.b32.cont [11/16] 0.0, 128
  %1449 = vxpose.xlu0.b32.cont [12/16] 0.0, 128
  %1450 = vxpose.xlu0.b32.cont [13/16] 0.0, 128
  %1451 = vxpose.xlu0.b32.cont [14/16] 0.0, 128
  %1452 = vxpose.xlu0.b32.cont [15/16] 0.0, 128
  %1453 = vxpose.xlu0.b32.end [16/16] 0.0, 128
  %v1454 = vpop.trf.xlu0
  %v1455 = vpop.trf.xlu0
  %v1456 = vpop.trf.xlu0
  %v1457 = vpop.trf.xlu0
  %v1458 = vpop.trf.xlu0
  %v1459 = vpop.trf.xlu0
  %v1460 = vpop.trf.xlu0
  %v1461 = vpop.trf.xlu0
  %v1462 = vpop.trf.xlu0
  %v1463 = vpop.trf.xlu0
  %v1464 = vpop.trf.xlu0
  %v1465 = vpop.trf.xlu0
  %v1466 = vpop.trf.xlu0
  %v1467 = vpop.trf.xlu0
  %v1468 = vpop.trf.xlu0
  %v1469 = vpop.trf.xlu0
  %v1471 = vsel %vm1310, %v1454, 0
  %v1474 = vsel %vm1310, %v1455, 0
  %1476 = vmatprep.subr.mxu0 0.0
  %1477 = vmatpush1.msra.mxu0 0.0
  %1478 = vmatprep.subr.mxu0 0.0
  %1479 = vmatpush1.msra.mxu0 0.0
  %1480 = vmatprep.subr.mxu0 0.0
  %1481 = vmatpush1.msra.mxu0 0.0
  %1482 = vmatprep.subr.mxu0 0.0
  %1483 = vmatpush1.msra.mxu0 0.0
  %1484 = vmatprep.subr.mxu0 0.0
  %1485 = vmatpush1.msra.mxu0 0.0
  %1486 = vmatprep.subr.mxu0 0.0
  %1487 = vmatpush1.msra.mxu0 0.0
  %1488 = vmatprep.subr.mxu0 0.0
  %1489 = vmatpush1.msra.mxu0 0.0
  %1490 = vmatprep.subr.mxu0 0.0
  %1491 = vmatpush1.msra.mxu0 0.0
  %1492 = vmatprep.subr.mxu0 0.0
  %1493 = vmatpush1.msra.mxu0 %v1114
  %1494 = vmatprep.subr.mxu0 0.0
  %1495 = vmatpush1.msra.mxu0 %v1113
  %1496 = vmatprep.subr.mxu0 0.0
  %1497 = vmatpush1.msra.mxu0 %v1112
  %1498 = vmatprep.subr.mxu0 0.0
  %1499 = vmatpush1.msra.mxu0 %v1111
  %1500 = vmatprep.subr.mxu0 0.0
  %1501 = vmatpush1.msra.mxu0 %v1110
  %1502 = vmatprep.subr.mxu0 0.0
  %1503 = vmatpush1.msra.mxu0 %v1109
  %1504 = vmatprep.subr.mxu0 0.0
  %1505 = vmatpush1.msra.mxu0 %v1108
  %1506 = vmatprep.subr.mxu0 0.0
  %1507 = vmatpush1.msra.mxu0 %v1107
  %1508 = vmatprep.subr.mxu0 0.0
  %1509 = vmatpush2.msra.mxu0 0.0
  %1510 = vmatprep.subr.mxu0 0.0
  %1511 = vmatpush2.msra.mxu0 0.0
  %1512 = vmatprep.subr.mxu0 0.0
  %1513 = vmatpush2.msra.mxu0 0.0
  %1514 = vmatprep.subr.mxu0 0.0
  %1515 = vmatpush2.msra.mxu0 0.0
  %1516 = vmatprep.subr.mxu0 0.0
  %1517 = vmatpush2.msra.mxu0 0.0
  %1518 = vmatprep.subr.mxu0 0.0
  %1519 = vmatpush2.msra.mxu0 0.0
  %1520 = vmatprep.subr.mxu0 0.0
  %1521 = vmatpush2.msra.mxu0 0.0
  %1522 = vmatprep.subr.mxu0 0.0
  %1523 = vmatpush2.msra.mxu0 0.0
  %1524 = vmatprep.subr.mxu0 0.0
  %1525 = vmatpush2.msra.mxu0 0.0
  %1526 = vmatprep.subr.mxu0 0.0
  %1527 = vmatpush2.msra.mxu0 0.0
  %1528 = vmatprep.subr.mxu0 0.0
  %1529 = vmatpush2.msra.mxu0 0.0
  %1530 = vmatprep.subr.mxu0 0.0
  %1531 = vmatpush2.msra.mxu0 0.0
  %1532 = vmatprep.subr.mxu0 0.0
  %1533 = vmatpush2.msra.mxu0 0.0
  %1534 = vmatprep.subr.mxu0 0.0
  %1535 = vmatpush2.msra.mxu0 0.0
  %1536 = vmatprep.subr.mxu0 0.0
  %1537 = vmatpush2.msra.mxu0 0.0
  %1538 = vmatprep.subr.mxu0 0.0
  %1539 = vmatpush2.msra.mxu0 0.0
  %1540 = vmatprep.mubr.f32.mxu0 0.0
  %1541 = vmatmul.mubr.f32.gmra.mxu0 %v1471
  %v1542 = vpop.f32.mrf.mxu0
  %v1543 = vadd.f32 0.0, %v1542
  %v1544 = vpop.f32.mrf.mxu0
  %1545 = vmatprep.mubr.f32.mxu0 0.0
  %1546 = vmatmul.mubr.f32.gmra.mxu0 %v1474
  %v1547 = vpop.f32.mrf.mxu0
  %v1548 = vadd.f32 0.0, %v1547
  %v1549 = vpop.f32.mrf.mxu0
  %1550 = vdwg.mxu0
  %v1551 = vadd.f32 %v1436, %v1543
  %v1552 = vadd.f32 %v1437, %v1548
  %1553 = vst.msk [vmem:[#allocation2] sm:$0xff] %vm203, %v1551
  %1554 = vst.msk [vmem:[#allocation2 + $0x8] sm:$0xff] %vm203, %v1552
  %v1555 = vld [vmem:[#allocation3] sm:$0xff]
  %v1556 = vld [vmem:[#allocation3 + $0x8] sm:$0xff]
  %1557 = vmatprep.subr.mxu0 0.0
  %1558 = vmatpush1.msra.mxu0 0.0
  %1559 = vmatprep.subr.mxu0 0.0
  %1560 = vmatpush1.msra.mxu0 0.0
  %1561 = vmatprep.subr.mxu0 0.0
  %1562 = vmatpush1.msra.mxu0 0.0
  %1563 = vmatprep.subr.mxu0 0.0
  %1564 = vmatpush1.msra.mxu0 0.0
  %1565 = vmatprep.subr.mxu0 0.0
  %1566 = vmatpush1.msra.mxu0 0.0
  %1567 = vmatprep.subr.mxu0 0.0
  %1568 = vmatpush1.msra.mxu0 0.0
  %1569 = vmatprep.subr.mxu0 0.0
  %1570 = vmatpush1.msra.mxu0 0.0
  %1571 = vmatprep.subr.mxu0 0.0
  %1572 = vmatpush1.msra.mxu0 0.0
  %1573 = vmatprep.subr.mxu0 0.0
  %1574 = vmatpush1.msra.mxu0 %v1435
  %1575 = vmatprep.subr.mxu0 0.0
  %1576 = vmatpush1.msra.mxu0 %v1434
  %1577 = vmatprep.subr.mxu0 0.0
  %1578 = vmatpush1.msra.mxu0 %v1433
  %1579 = vmatprep.subr.mxu0 0.0
  %1580 = vmatpush1.msra.mxu0 %v1432
  %1581 = vmatprep.subr.mxu0 0.0
  %1582 = vmatpush1.msra.mxu0 %v1431
  %1583 = vmatprep.subr.mxu0 0.0
  %1584 = vmatpush1.msra.mxu0 %v1430
  %1585 = vmatprep.subr.mxu0 0.0
  %1586 = vmatpush1.msra.mxu0 %v1429
  %1587 = vmatprep.subr.mxu0 0.0
  %1588 = vmatpush1.msra.mxu0 %v1428
  %1589 = vmatprep.subr.mxu0 0.0
  %1590 = vmatpush2.msra.mxu0 0.0
  %1591 = vmatprep.subr.mxu0 0.0
  %1592 = vmatpush2.msra.mxu0 0.0
  %1593 = vmatprep.subr.mxu0 0.0
  %1594 = vmatpush2.msra.mxu0 0.0
  %1595 = vmatprep.subr.mxu0 0.0
  %1596 = vmatpush2.msra.mxu0 0.0
  %1597 = vmatprep.subr.mxu0 0.0
  %1598 = vmatpush2.msra.mxu0 0.0
  %1599 = vmatprep.subr.mxu0 0.0
  %1600 = vmatpush2.msra.mxu0 0.0
  %1601 = vmatprep.subr.mxu0 0.0
  %1602 = vmatpush2.msra.mxu0 0.0
  %1603 = vmatprep.subr.mxu0 0.0
  %1604 = vmatpush2.msra.mxu0 0.0
  %1605 = vmatprep.subr.mxu0 0.0
  %1606 = vmatpush2.msra.mxu0 0.0
  %1607 = vmatprep.subr.mxu0 0.0
  %1608 = vmatpush2.msra.mxu0 0.0
  %1609 = vmatprep.subr.mxu0 0.0
  %1610 = vmatpush2.msra.mxu0 0.0
  %1611 = vmatprep.subr.mxu0 0.0
  %1612 = vmatpush2.msra.mxu0 0.0
  %1613 = vmatprep.subr.mxu0 0.0
  %1614 = vmatpush2.msra.mxu0 0.0
  %1615 = vmatprep.subr.mxu0 0.0
  %1616 = vmatpush2.msra.mxu0 0.0
  %1617 = vmatprep.subr.mxu0 0.0
  %1618 = vmatpush2.msra.mxu0 0.0
  %1619 = vmatprep.subr.mxu0 0.0
  %1620 = vmatpush2.msra.mxu0 0.0
  %1621 = vmatprep.mubr.f32.mxu0 0.0
  %1622 = vmatmul.mubr.f32.gmra.mxu0 %v1471
  %v1623 = vpop.f32.mrf.mxu0
  %v1624 = vadd.f32 0.0, %v1623
  %v1625 = vpop.f32.mrf.mxu0
  %1626 = vmatprep.mubr.f32.mxu0 0.0
  %1627 = vmatmul.mubr.f32.gmra.mxu0 %v1474
  %v1628 = vpop.f32.mrf.mxu0
  %v1629 = vadd.f32 0.0, %v1628
  %v1630 = vpop.f32.mrf.mxu0
  %1631 = vdwg.mxu0
  %v1632 = vadd.f32 %v1555, %v1624
  %v1633 = vadd.f32 %v1556, %v1629
  %1634 = vst.msk [vmem:[#allocation3] sm:$0xff] %vm341, %v1632
  %1635 = vst.msk [vmem:[#allocation3 + $0x8] sm:$0xff] %vm341, %v1633
  // Predicated region
  $region98: #{egnn_sparse_network_forward.2} parent=0 // pred_check
    %p1636 = pneg %p77
  $region99: #{egnn_sparse_network_forward.2} parent=0 // pred_check_branch
    %1638 = sbr.rel (%p1636) target = $region101
  $region100: #{egnn_sparse_network_forward.2} parent=0 // pred_region
    %v1639 = vld [vmem:[%s3] sm:$0xff]
    %v1640 = vld [vmem:[%s3 + $0x8] sm:$0xff]
    %v1641 = vld [vmem:[%s4] sm:$0xff]
    %v1642 = vld [vmem:[%s4 + $0x8] sm:$0xff]
    %v1643 = vld [vmem:[#allocation3] sm:$0xff]
    %v1644 = vld [vmem:[#allocation3 + $0x8] sm:$0xff]
    %v1645 = vadd.f32 %v1641, %v1643
    %v1646 = vadd.f32 %v1642, %v1644
    %1647 = vst.msk [vmem:[%s23] sm:$0xff] %vm341, %v1645
    %1648 = vst.msk [vmem:[%s23 + $0x8] sm:$0xff] %vm341, %v1646
    %vm1649 = vcmask 261120
    %v1650 = vsel %vm1649, %v1639, 0.0
    %1651 = vadd.xlane.f32.xlu0 %v1650
    %v1652 = vpop.xlane.xlu0 %1651
    %v1653 = vsel %vm1649, %v1640, 0.0
    %1654 = vadd.xlane.f32.xlu0 %v1653
    %v1655 = vpop.xlane.xlu0 %1654
    %v1656 = vrcp.pop 32.0
    %v1657 = vmul.f32 %v1652, %v1656
    %v1658 = vmul.f32 %v1655, %v1656
    %v1659 = vsub.f32 %v1639, %v1657
    %v1660 = vsub.f32 %v1640, %v1658
    %v1661 = vmul.f32 %v1659, %v1659
    %v1662 = vmul.f32 %v1660, %v1660
    %v1663 = vsel %vm1649, %v1661, 0.0
    %1664 = vadd.xlane.f32.xlu0 %v1663
    %v1665 = vpop.xlane.xlu0 %1664
    %v1666 = vsel %vm1649, %v1662, 0.0
    %1667 = vadd.xlane.f32.xlu0 %v1666
    %v1668 = vpop.xlane.xlu0 %1667
    %v1669 = vmul.f32 %v1665, %v1656
    %v1670 = vmul.f32 %v1668, %v1656
    %v1671 = vadd.f32 %v1669, 1e-05
    %v1672 = vadd.f32 %v1670, 1e-05
    %v1673 = vrsqrt.pop %v1671
    %v1674 = vrsqrt.pop %v1672
    %v1675 = vmul.f32 %v1659, %v1673
    %v1676 = vmul.f32 %v1660, %v1674
    %v1677 = vld [vmem:[%s16] sm:$0x1]
    %v1679 = vlaneseq
    %v1680 = vshrl.u32 %v1679, 7
    %v1681 = vsub.s32 0, %v1680
    %v1682 = vrot.slane %v1677, %v1681
    %v1684 = vmul.f32 %v1675, %v1682
    %v1685 = vmul.f32 %v1676, %v1682
    %v1686 = vld [vmem:[%s17] sm:$0x1]
    %v1688 = vlaneseq
    %v1689 = vshrl.u32 %v1688, 7
    %v1690 = vsub.s32 0, %v1689
    %v1691 = vrot.slane %v1686, %v1690
    %v1693 = vadd.f32 %v1684, %v1691
    %v1694 = vadd.f32 %v1685, %v1691
    %v1695 = vpack.c.bf16 %v1694, %v1693
    %v1696 = vld [vmem:[%s18] sm:$0xf]
    %v1697 = vld [vmem:[%s18 + $0x4] sm:$0xf]
    %v1698 = vld [vmem:[%s18 + $0x8] sm:$0xf]
    %v1699 = vld [vmem:[%s18 + $0xc] sm:$0xf]
    %v1700 = vld [vmem:[#allocation2] sm:$0xff]
    %v1701 = vld [vmem:[#allocation2 + $0x8] sm:$0xff]
    %v1702 = vpack.c.bf16 %v1701, %v1700
    %v1703 = vld [vmem:[%s19] sm:$0xf]
    %v1704 = vld [vmem:[%s19 + $0x4] sm:$0xf]
    %v1707 = vunpack.c.l.b16 %v1703
    %v1708 = vunpack.c.l.b16 %v1704
    %v1709 = vpack.c.b16 %v1708, %v1707
    %v1712 = vsel %vm203, %v1702, 0
    %1714 = vmatprep.subr.bf16.mxu0 0
    %1715 = vmatpush1.bf16.msra.mxu0 0
    %1716 = vmatprep.subr.bf16.mxu0 0
    %1717 = vmatpush1.bf16.msra.mxu0 0
    %1718 = vmatprep.subr.bf16.mxu0 0
    %1719 = vmatpush1.bf16.msra.mxu0 0
    %1720 = vmatprep.subr.bf16.mxu0 0
    %1721 = vmatpush1.bf16.msra.mxu0 0
    %1722 = vmatprep.subr.bf16.mxu0 0
    %1723 = vmatpush1.bf16.msra.mxu0 0
    %1724 = vmatprep.subr.bf16.mxu0 0
    %1725 = vmatpush1.bf16.msra.mxu0 0
    %1726 = vmatprep.subr.bf16.mxu0 0
    %1727 = vmatpush1.bf16.msra.mxu0 0
    %1728 = vmatprep.subr.bf16.mxu0 0
    %1729 = vmatpush1.bf16.msra.mxu0 %v1709
    %1730 = vmatprep.subr.bf16.mxu0 0
    %1731 = vmatpush2.bf16.msra.mxu0 0
    %1732 = vmatprep.subr.bf16.mxu0 0
    %1733 = vmatpush2.bf16.msra.mxu0 0
    %1734 = vmatprep.subr.bf16.mxu0 0
    %1735 = vmatpush2.bf16.msra.mxu0 0
    %1736 = vmatprep.subr.bf16.mxu0 0
    %1737 = vmatpush2.bf16.msra.mxu0 0
    %1738 = vmatprep.subr.bf16.mxu0 0
    %1739 = vmatpush2.bf16.msra.mxu0 0
    %1740 = vmatprep.subr.bf16.mxu0 0
    %1741 = vmatpush2.bf16.msra.mxu0 0
    %1742 = vmatprep.subr.bf16.mxu0 0
    %1743 = vmatpush2.bf16.msra.mxu0 0
    %1744 = vmatprep.subr.bf16.mxu0 0
    %1745 = vmatpush2.bf16.msra.mxu0 0
    %1746 = vmatprep.mubr.bf16.mxu0 0
    %1747 = vmatmul.mubr.bf16.gmra.mxu0 %v1712
    %v1748 = vpop.f32.mrf.mxu0
    %v1749 = vadd.f32 0.0, %v1748
    %v1750 = vpop.f32.mrf.mxu0
    %v1751 = vpop.f32.mrf.mxu0
    %v1752 = vadd.f32 0.0, %v1751
    %v1753 = vpop.f32.mrf.mxu0
    %1754 = vdwg.mxu0
    %v1759 = vunpack.c.l.b16 %v1696
    %v1760 = vunpack.c.l.b16 %v1697
    %v1761 = vunpack.c.l.b16 %v1698
    %v1762 = vunpack.c.l.b16 %v1699
    %v1763 = vpack.c.b16 %v1760, %v1759
    %v1764 = vpack.c.b16 %v1762, %v1761
    %v1768 = vsel %vm1649, %v1695, 0
    %1770 = vmatprep.subr.bf16.mxu0 0
    %1771 = vmatpush1.bf16.msra.mxu0 0
    %1772 = vmatprep.subr.bf16.mxu0 0
    %1773 = vmatpush1.bf16.msra.mxu0 0
    %1774 = vmatprep.subr.bf16.mxu0 0
    %1775 = vmatpush1.bf16.msra.mxu0 0
    %1776 = vmatprep.subr.bf16.mxu0 0
    %1777 = vmatpush1.bf16.msra.mxu0 0
    %1778 = vmatprep.subr.bf16.mxu0 0
    %1779 = vmatpush1.bf16.msra.mxu0 0
    %1780 = vmatprep.subr.bf16.mxu0 0
    %1781 = vmatpush1.bf16.msra.mxu0 0
    %1782 = vmatprep.subr.bf16.mxu0 0
    %1783 = vmatpush1.bf16.msra.mxu0 %v1764
    %1784 = vmatprep.subr.bf16.mxu0 0
    %1785 = vmatpush1.bf16.msra.mxu0 %v1763
    %1786 = vmatprep.subr.bf16.mxu0 0
    %1787 = vmatpush2.bf16.msra.mxu0 0
    %1788 = vmatprep.subr.bf16.mxu0 0
    %1789 = vmatpush2.bf16.msra.mxu0 0
    %1790 = vmatprep.subr.bf16.mxu0 0
    %1791 = vmatpush2.bf16.msra.mxu0 0
    %1792 = vmatprep.subr.bf16.mxu0 0
    %1793 = vmatpush2.bf16.msra.mxu0 0
    %1794 = vmatprep.subr.bf16.mxu0 0
    %1795 = vmatpush2.bf16.msra.mxu0 0
    %1796 = vmatprep.subr.bf16.mxu0 0
    %1797 = vmatpush2.bf16.msra.mxu0 0
    %1798 = vmatprep.subr.bf16.mxu0 0
    %1799 = vmatpush2.bf16.msra.mxu0 0
    %1800 = vmatprep.subr.bf16.mxu0 0
    %1801 = vmatpush2.bf16.msra.mxu0 0
    %1802 = vmatprep.mubr.bf16.mxu0 0
    %1803 = vmatmul.mubr.bf16.gmra.mxu0 %v1768
    %v1804 = vpop.f32.mrf.mxu0
    %v1805 = vadd.f32 %v1749, %v1804
    %v1806 = vpop.f32.mrf.mxu0
    %v1807 = vpop.f32.mrf.mxu0
    %v1808 = vadd.f32 %v1752, %v1807
    %v1809 = vpop.f32.mrf.mxu0
    %1810 = vdwg.mxu0
    %v1811 = vld [vmem:[%s20] sm:$0x1]
    %v1813 = vlaneseq
    %v1814 = vshrl.u32 %v1813, 7
    %v1815 = vsub.s32 0, %v1814
    %v1816 = vrot.slane %v1811, %v1815
    %v1818 = vadd.f32 %v1805, %v1816
    %v1819 = vadd.f32 %v1808, %v1816
    %v1820 = vxor.u32 %v1818, 2147483648
    %v1821 = vxor.u32 %v1819, 2147483648
    %v1822 = vmul.f32 %v1820, 1.442695
    %v1823 = vpow.pop %v1822
    %v1824 = vmul.f32 %v1821, 1.442695
    %v1825 = vpow.pop %v1824
    %v1826 = vadd.f32 %v1823, 1.0
    %v1827 = vadd.f32 %v1825, 1.0
    %v1828 = vrcp.pop %v1826
    %v1829 = vmul.f32 1.0, %v1828
    %v1830 = vrcp.pop %v1827
    %v1831 = vmul.f32 1.0, %v1830
    %v1832 = vmul.f32 %v1818, %v1829
    %v1833 = vmul.f32 %v1819, %v1831
    %v1834 = vpack.c.bf16 %v1833, %v1832
    %v1835 = vld [vmem:[%s21] sm:$0xf]
    %v1836 = vld [vmem:[%s21 + $0x4] sm:$0xf]
    %v1837 = vld [vmem:[%s21 + $0x8] sm:$0xf]
    %v1838 = vld [vmem:[%s21 + $0xc] sm:$0xf]
    %v1839 = vld [vmem:[%s21 + $0x10] sm:$0xf]
    %v1840 = vld [vmem:[%s21 + $0x14] sm:$0xf]
    %v1841 = vld [vmem:[%s21 + $0x18] sm:$0xf]
    %v1842 = vld [vmem:[%s21 + $0x1c] sm:$0xf]
    %v1843 = vld [vmem:[%s22] sm:$0x1]
    %v1845 = vlaneseq
    %v1846 = vshrl.u32 %v1845, 7
    %v1847 = vsub.s32 0, %v1846
    %v1848 = vrot.slane %v1843, %v1847
    %v1858 = vunpack.c.l.b16 %v1835
    %v1859 = vunpack.c.l.b16 %v1836
    %v1860 = vunpack.c.l.b16 %v1837
    %v1861 = vunpack.c.l.b16 %v1838
    %v1862 = vunpack.c.l.b16 %v1839
    %v1863 = vunpack.c.l.b16 %v1840
    %v1864 = vunpack.c.l.b16 %v1841
    %v1865 = vunpack.c.l.b16 %v1842
    %v1866 = vpack.c.b16 %v1859, %v1858
    %v1867 = vpack.c.b16 %v1861, %v1860
    %v1868 = vpack.c.b16 %v1863, %v1862
    %v1869 = vpack.c.b16 %v1865, %v1864
    %v1875 = vsel %vm1310, %v1834, 0
    %1877 = vmatprep.subr.bf16.mxu0 0
    %1878 = vmatpush1.bf16.msra.mxu0 0
    %1879 = vmatprep.subr.bf16.mxu0 0
    %1880 = vmatpush1.bf16.msra.mxu0 0
    %1881 = vmatprep.subr.bf16.mxu0 0
    %1882 = vmatpush1.bf16.msra.mxu0 0
    %1883 = vmatprep.subr.bf16.mxu0 0
    %1884 = vmatpush1.bf16.msra.mxu0 0
    %1885 = vmatprep.subr.bf16.mxu0 0
    %1886 = vmatpush1.bf16.msra.mxu0 %v1869
    %1887 = vmatprep.subr.bf16.mxu0 0
    %1888 = vmatpush1.bf16.msra.mxu0 %v1868
    %1889 = vmatprep.subr.bf16.mxu0 0
    %1890 = vmatpush1.bf16.msra.mxu0 %v1867
    %1891 = vmatprep.subr.bf16.mxu0 0
    %1892 = vmatpush1.bf16.msra.mxu0 %v1866
    %1893 = vmatprep.subr.bf16.mxu0 0
    %1894 = vmatpush2.bf16.msra.mxu0 0
    %1895 = vmatprep.subr.bf16.mxu0 0
    %1896 = vmatpush2.bf16.msra.mxu0 0
    %1897 = vmatprep.subr.bf16.mxu0 0
    %1898 = vmatpush2.bf16.msra.mxu0 0
    %1899 = vmatprep.subr.bf16.mxu0 0
    %1900 = vmatpush2.bf16.msra.mxu0 0
    %1901 = vmatprep.subr.bf16.mxu0 0
    %1902 = vmatpush2.bf16.msra.mxu0 0
    %1903 = vmatprep.subr.bf16.mxu0 0
    %1904 = vmatpush2.bf16.msra.mxu0 0
    %1905 = vmatprep.subr.bf16.mxu0 0
    %1906 = vmatpush2.bf16.msra.mxu0 0
    %1907 = vmatprep.subr.bf16.mxu0 0
    %1908 = vmatpush2.bf16.msra.mxu0 0
    %1909 = vmatprep.mubr.bf16.mxu0 0
    %1910 = vmatmul.mubr.bf16.gmra.mxu0 %v1875
    %v1911 = vpop.f32.mrf.mxu0
    %v1912 = vadd.f32 %v1848, %v1911
    %v1913 = vpop.f32.mrf.mxu0
    %v1914 = vpop.f32.mrf.mxu0
    %v1915 = vadd.f32 %v1848, %v1914
    %v1916 = vpop.f32.mrf.mxu0
    %1917 = vdwg.mxu0
    %v1918 = vadd.f32 %v1639, %v1912
    %v1919 = vadd.f32 %v1640, %v1915
    %1922 = vrot.lane.b32.xlu0 %v1918, 3
    %v1923 = vpop.permute.xlu0 %1922
    %1924 = vrot.lane.b32.xlu0 %v1919, 3
    %v1925 = vpop.permute.xlu0 %1924
    %vm1928 = vcmask 285720
    %1929 = vst.msk [vmem:[%s23] sm:$0xff] %vm1928, %v1923
    %1930 = vst.msk [vmem:[%s23 + $0x8] sm:$0xff] %vm1928, %v1925
  $region101: #{egnn_sparse_network_forward.2} parent=0 // pred_fallthru
    _
  // Predicated region
  $region102: #{egnn_sparse_network_forward.2} parent=0 // pred_check
    _
  $region103: #{egnn_sparse_network_forward.2} parent=0 // pred_check_branch
    %1932 = sbr.rel (0) target = $region105
  $region104: #{egnn_sparse_network_forward.2} parent=0 // pred_region
    _
  $region105: #{egnn_sparse_network_forward.2} parent=0 // pred_fallthru
    _
  // Predicated region
  $region106: #{egnn_sparse_network_forward.2} parent=0 // pred_check
    _
  $region107: #{egnn_sparse_network_forward.2} parent=0 // pred_check_branch
    %1934 = sbr.rel (0) target = $region109
  $region108: #{egnn_sparse_network_forward.2} parent=0 // pred_region
    _
  $region109: #{egnn_sparse_network_forward.2} parent=0 // pred_fallthru
    _

// kernel: egnn_sparse_network_forward.3
$region0: #{egnn_sparse_network_forward.3}
  #allocation0 [shape = 'u32[]', space=smem, size = 0x4, offset = 0x4, fixed_abs, tag = 'smem constant byte address 0x4 - core index']
  #allocation1 [shape = 'u32[144,128]{1,0:T(1,128)}', space=vmem, size = 0x12000, scoped, tag = 'internal scratch']
  #allocation2 [shape = 'f32[16,16]{1,0:T(8,128)}', space=vmem, size = 0x2000, scoped, tag = 'scratch operand']
  #allocation3 [shape = 'f32[16,3]{1,0:T(8,128)}', space=vmem, size = 0x2000, scoped, tag = 'scratch operand']
  #allocation4 [shape = 'f32[1,1]{1,0:T(1,128)S(1)}', space=vmem, size = 0x200, scoped, tag = 'scoped memory for egnn_sparse_network_forward.3']
  %s0 = inlined_call_operand.vmem [shape: s32[64,1], index: 0, kind: input, shape index: {}]
  %s1 = inlined_call_operand.vmem [shape: s32[64,1], index: 1, kind: input, shape index: {}]
  %s2 = inlined_call_operand.vmem [shape: bf16[64,4], index: 2, kind: input, shape index: {}]
  %s3 = inlined_call_operand.vmem [shape: f32[16,32], index: 3, kind: input, shape index: {}]
  %s4 = inlined_call_operand.vmem [shape: f32[16,3], index: 4, kind: input, shape index: {}]
  %s5 = inlined_call_operand.vmem [shape: bf16[16,138], index: 5, kind: input, shape index: {}]
  %s6 = inlined_call_operand.vmem [shape: bf16[16,138], index: 6, kind: input, shape index: {}]
  %s7 = inlined_call_operand.vmem [shape: bf16[4,138], index: 7, kind: input, shape index: {}]
  %s8 = inlined_call_operand.vmem [shape: f32[1,138], index: 8, kind: input, shape index: {}]
  %s9 = inlined_call_operand.vmem [shape: f32[1,138], index: 9, kind: input, shape index: {}]
  %s10 = inlined_call_operand.vmem [shape: bf16[138,16], index: 10, kind: input, shape index: {}]
  %s11 = inlined_call_operand.vmem [shape: f32[1,16], index: 11, kind: input, shape index: {}]
  %s12 = inlined_call_operand.vmem [shape: bf16[16,64], index: 12, kind: input, shape index: {}]
  %s13 = inlined_call_operand.vmem [shape: f32[1,64], index: 13, kind: input, shape index: {}]
  %s14 = inlined_call_operand.vmem [shape: bf16[64,1], index: 14, kind: input, shape index: {}]
  %s15 = inlined_call_operand.<no memory space> [shape: f32[1,1], index: 15, kind: input, shape index: {}]
  %s16 = inlined_call_operand.vmem [shape: f32[1,32], index: 16, kind: input, shape index: {}]
  %s17 = inlined_call_operand.vmem [shape: f32[1,32], index: 17, kind: input, shape index: {}]
  %s18 = inlined_call_operand.vmem [shape: bf16[32,64], index: 18, kind: input, shape index: {}]
  %s19 = inlined_call_operand.vmem [shape: bf16[16,64], index: 19, kind: input, shape index: {}]
  %s20 = inlined_call_operand.vmem [shape: f32[1,64], index: 20, kind: input, shape index: {}]
  %s21 = inlined_call_operand.vmem [shape: bf16[64,32], index: 21, kind: input, shape index: {}]
  %s22 = inlined_call_operand.vmem [shape: f32[1,32], index: 22, kind: input, shape index: {}]
  %s23 = inlined_call_operand.hbm [shape: f32[16,35], index: 23, kind: output, shape index: {}]
  %s24 = sld [smem:[#allocation0]]
  $region110: #{egnn_sparse_network_forward.3} parent=0
    _
  %s26 = ssub.s32 1, %s24
  %s27 = scalar_select 0, %s26, %s24
  %v28 = vstv %s15
  %29 = vst [vmem:[#allocation4] sm:$0x1] %v28
  $region1: #{egnn_sparse_network_forward.3} parent=0
    #allocation5 [shape = 'u8[8192]{0}', space=vmem, size = 0x2000, scoped, tag = 'output window, operand 0, single buffered']
    #allocation6 [shape = 's32[1]{0}', space=sflag, size = 0x4, scoped, tag = 'scoped memory for egnn_sparse_network_forward.3']
    %30 = vsyncpa [#allocation6], 0
    // Predicated region
    $region2: #{egnn_sparse_network_forward.3} parent=1 // pred_check
      _
    $region3: #{egnn_sparse_network_forward.3} parent=1 // pred_check_branch
      %32 = sbr.rel (0) target = $region5
    $region4: #{egnn_sparse_network_forward.3} parent=1 // pred_region
      _
    $region5: #{egnn_sparse_network_forward.3} parent=1 // pred_fallthru
      _
    // Predicated region
    $region6: #{egnn_sparse_network_forward.3} parent=1 // pred_check
      _
    $region7: #{egnn_sparse_network_forward.3} parent=1 // pred_check_branch
      %34 = sbr.rel (0) target = $region9
    $region8: #{egnn_sparse_network_forward.3} parent=1 // pred_region
      _
    $region9: #{egnn_sparse_network_forward.3} parent=1 // pred_fallthru
      _
    // Predicated region
    $region10: #{egnn_sparse_network_forward.3} parent=1 // pred_check
      _
    $region11: #{egnn_sparse_network_forward.3} parent=1 // pred_check_branch
      %36 = sbr.rel (0) target = $region13
    $region12: #{egnn_sparse_network_forward.3} parent=1 // pred_region
      _
    $region13: #{egnn_sparse_network_forward.3} parent=1 // pred_fallthru
      _
    // Predicated region
    $region14: #{egnn_sparse_network_forward.3} parent=1 // pred_check
      _
    $region15: #{egnn_sparse_network_forward.3} parent=1 // pred_check_branch
      %38 = sbr.rel (0) target = $region17
    $region16: #{egnn_sparse_network_forward.3} parent=1 // pred_region
      _
    $region17: #{egnn_sparse_network_forward.3} parent=1 // pred_fallthru
      _
    // Predicated region
    $region18: #{egnn_sparse_network_forward.3} parent=1 // pred_check
      _
    $region19: #{egnn_sparse_network_forward.3} parent=1 // pred_check_branch
      %40 = sbr.rel (0) target = $region21
    $region20: #{egnn_sparse_network_forward.3} parent=1 // pred_region
      _
    $region21: #{egnn_sparse_network_forward.3} parent=1 // pred_fallthru
      _
    // Predicated region
    $region22: #{egnn_sparse_network_forward.3} parent=1 // pred_check
      _
    $region23: #{egnn_sparse_network_forward.3} parent=1 // pred_check_branch
      %42 = sbr.rel (0) target = $region25
    $region24: #{egnn_sparse_network_forward.3} parent=1 // pred_region
      _
    $region25: #{egnn_sparse_network_forward.3} parent=1 // pred_fallthru
      _
    // Predicated region
    $region26: #{egnn_sparse_network_forward.3} parent=1 // pred_check
      _
    $region27: #{egnn_sparse_network_forward.3} parent=1 // pred_check_branch
      %44 = sbr.rel (0) target = $region29
    $region28: #{egnn_sparse_network_forward.3} parent=1 // pred_region
      _
    $region29: #{egnn_sparse_network_forward.3} parent=1 // pred_fallthru
      _
    // Predicated region
    $region30: #{egnn_sparse_network_forward.3} parent=1 // pred_check
      _
    $region31: #{egnn_sparse_network_forward.3} parent=1 // pred_check_branch
      %46 = sbr.rel (0) target = $region33
    $region32: #{egnn_sparse_network_forward.3} parent=1 // pred_region
      _
    $region33: #{egnn_sparse_network_forward.3} parent=1 // pred_fallthru
      _
    // Predicated region
    $region34: #{egnn_sparse_network_forward.3} parent=1 // pred_check
      _
    $region35: #{egnn_sparse_network_forward.3} parent=1 // pred_check_branch
      %48 = sbr.rel (0) target = $region37
    $region36: #{egnn_sparse_network_forward.3} parent=1 // pred_region
      _
    $region37: #{egnn_sparse_network_forward.3} parent=1 // pred_fallthru
      _
    // Predicated region
    $region38: #{egnn_sparse_network_forward.3} parent=1 // pred_check
      _
    $region39: #{egnn_sparse_network_forward.3} parent=1 // pred_check_branch
      %50 = sbr.rel (0) target = $region41
    $region40: #{egnn_sparse_network_forward.3} parent=1 // pred_region
      _
    $region41: #{egnn_sparse_network_forward.3} parent=1 // pred_fallthru
      _
    // Predicated region
    $region42: #{egnn_sparse_network_forward.3} parent=1 // pred_check
      _
    $region43: #{egnn_sparse_network_forward.3} parent=1 // pred_check_branch
      %52 = sbr.rel (0) target = $region45
    $region44: #{egnn_sparse_network_forward.3} parent=1 // pred_region
      _
    $region45: #{egnn_sparse_network_forward.3} parent=1 // pred_fallthru
      _
    // Predicated region
    $region46: #{egnn_sparse_network_forward.3} parent=1 // pred_check
      _
    $region47: #{egnn_sparse_network_forward.3} parent=1 // pred_check_branch
      %54 = sbr.rel (0) target = $region49
    $region48: #{egnn_sparse_network_forward.3} parent=1 // pred_region
      _
    $region49: #{egnn_sparse_network_forward.3} parent=1 // pred_fallthru
      _
    // Predicated region
    $region50: #{egnn_sparse_network_forward.3} parent=1 // pred_check
      _
    $region51: #{egnn_sparse_network_forward.3} parent=1 // pred_check_branch
      %56 = sbr.rel (0) target = $region53
    $region52: #{egnn_sparse_network_forward.3} parent=1 // pred_region
      _
    $region53: #{egnn_sparse_network_forward.3} parent=1 // pred_fallthru
      _
    // Predicated region
    $region54: #{egnn_sparse_network_forward.3} parent=1 // pred_check
      _
    $region55: #{egnn_sparse_network_forward.3} parent=1 // pred_check_branch
      %58 = sbr.rel (0) target = $region57
    $region56: #{egnn_sparse_network_forward.3} parent=1 // pred_region
      _
    $region57: #{egnn_sparse_network_forward.3} parent=1 // pred_fallthru
      _
    // Predicated region
    $region58: #{egnn_sparse_network_forward.3} parent=1 // pred_check
      _
    $region59: #{egnn_sparse_network_forward.3} parent=1 // pred_check_branch
      %60 = sbr.rel (0) target = $region61
    $region60: #{egnn_sparse_network_forward.3} parent=1 // pred_region
      _
    $region61: #{egnn_sparse_network_forward.3} parent=1 // pred_fallthru
      _
    // Predicated region
    $region62: #{egnn_sparse_network_forward.3} parent=1 // pred_check
      _
    $region63: #{egnn_sparse_network_forward.3} parent=1 // pred_check_branch
      %62 = sbr.rel (0) target = $region65
    $region64: #{egnn_sparse_network_forward.3} parent=1 // pred_region
      _
    $region65: #{egnn_sparse_network_forward.3} parent=1 // pred_fallthru
      _
    // Predicated region
    $region66: #{egnn_sparse_network_forward.3} parent=1 // pred_check
      _
    $region67: #{egnn_sparse_network_forward.3} parent=1 // pred_check_branch
      %64 = sbr.rel (0) target = $region69
    $region68: #{egnn_sparse_network_forward.3} parent=1 // pred_region
      _
    $region69: #{egnn_sparse_network_forward.3} parent=1 // pred_fallthru
      _
    // Predicated region
    $region70: #{egnn_sparse_network_forward.3} parent=1 // pred_check
      _
    $region71: #{egnn_sparse_network_forward.3} parent=1 // pred_check_branch
      %66 = sbr.rel (0) target = $region73
    $region72: #{egnn_sparse_network_forward.3} parent=1 // pred_region
      _
    $region73: #{egnn_sparse_network_forward.3} parent=1 // pred_fallthru
      _
    // Predicated region
    $region74: #{egnn_sparse_network_forward.3} parent=1 // pred_check
      _
    $region75: #{egnn_sparse_network_forward.3} parent=1 // pred_check_branch
      %68 = sbr.rel (0) target = $region77
    $region76: #{egnn_sparse_network_forward.3} parent=1 // pred_region
      _
    $region77: #{egnn_sparse_network_forward.3} parent=1 // pred_fallthru
      _
    // Predicated region
    $region78: #{egnn_sparse_network_forward.3} parent=1 // pred_check
      _
    $region79: #{egnn_sparse_network_forward.3} parent=1 // pred_check_branch
      %70 = sbr.rel (0) target = $region81
    $region80: #{egnn_sparse_network_forward.3} parent=1 // pred_region
      _
    $region81: #{egnn_sparse_network_forward.3} parent=1 // pred_fallthru
      _
    // Predicated region
    $region82: #{egnn_sparse_network_forward.3} parent=1 // pred_check
      _
    $region83: #{egnn_sparse_network_forward.3} parent=1 // pred_check_branch
      %72 = sbr.rel (0) target = $region85
    $region84: #{egnn_sparse_network_forward.3} parent=1 // pred_region
      _
    $region85: #{egnn_sparse_network_forward.3} parent=1 // pred_fallthru
      _
    // Predicated region
    $region86: #{egnn_sparse_network_forward.3} parent=1 // pred_check
      _
    $region87: #{egnn_sparse_network_forward.3} parent=1 // pred_check_branch
      %74 = sbr.rel (0) target = $region89
    $region88: #{egnn_sparse_network_forward.3} parent=1 // pred_region
      _
    $region89: #{egnn_sparse_network_forward.3} parent=1 // pred_fallthru
      _
    // Predicated region
    $region90: #{egnn_sparse_network_forward.3} parent=1 // pred_check
      _
    $region91: #{egnn_sparse_network_forward.3} parent=1 // pred_check_branch
      %76 = sbr.rel (0) target = $region93
    $region92: #{egnn_sparse_network_forward.3} parent=1 // pred_region
      _
    $region93: #{egnn_sparse_network_forward.3} parent=1 // pred_fallthru
      _
    %p78 = scmp.eq.s32.totalorder 0, 0
    // Predicated region
    $region94: #{egnn_sparse_network_forward.3} parent=1 // pred_check
      %p79 = pneg %p78
    $region95: #{egnn_sparse_network_forward.3} parent=1 // pred_check_branch
      %81 = sbr.rel (%p79) target = $region97
    $region96: #{egnn_sparse_network_forward.3} parent=1 // pred_region
      %vm82 = vcmask 130048
      %83 = vst.msk [vmem:[#allocation2] sm:$0xff] %vm82, 0.0
      %84 = vst.msk [vmem:[#allocation2 + $0x8] sm:$0xff] %vm82, 0.0
      %vm85 = vcmask 23552
      %86 = vst.msk [vmem:[#allocation3] sm:$0xff] %vm85, 0.0
      %87 = vst.msk [vmem:[#allocation3 + $0x8] sm:$0xff] %vm85, 0.0
    $region97: #{egnn_sparse_network_forward.3} parent=1 // pred_fallthru
      _
    %v88 = vlaneseq
    %v89 = vand.u32 %v88, 127
    %v90 = vld [vmem:[%s0] sm:$0xff]
    %v91 = vld [vmem:[%s0 + $0x8] sm:$0xff]
    %v92 = vld [vmem:[%s0 + $0x10] sm:$0xff]
    %v93 = vld [vmem:[%s0 + $0x18] sm:$0xff]
    %v94 = vld [vmem:[%s0 + $0x20] sm:$0xff]
    %v95 = vld [vmem:[%s0 + $0x28] sm:$0xff]
    %v96 = vld [vmem:[%s0 + $0x30] sm:$0xff]
    %v97 = vld [vmem:[%s0 + $0x38] sm:$0xff]
    %98 = vset.pattern.permute.xlu0 0
    %99 = vperm.xlu0 %98, %v90
    %v100 = vpop.permute.xlu0 %99
    %101 = vset.pattern.permute.xlu0 0
    %102 = vperm.xlu0 %101, %v91
    %v103 = vpop.permute.xlu0 %102
    %104 = vset.pattern.permute.xlu0 0
    %105 = vperm.xlu0 %104, %v92
    %v106 = vpop.permute.xlu0 %105
    %107 = vset.pattern.permute.xlu0 0
    %108 = vperm.xlu0 %107, %v93
    %v109 = vpop.permute.xlu0 %108
    %110 = vset.pattern.permute.xlu0 0
    %111 = vperm.xlu0 %110, %v94
    %v112 = vpop.permute.xlu0 %111
    %113 = vset.pattern.permute.xlu0 0
    %114 = vperm.xlu0 %113, %v95
    %v115 = vpop.permute.xlu0 %114
    %116 = vset.pattern.permute.xlu0 0
    %117 = vperm.xlu0 %116, %v96
    %v118 = vpop.permute.xlu0 %117
    %119 = vset.pattern.permute.xlu0 0
    %120 = vperm.xlu0 %119, %v97
    %v121 = vpop.permute.xlu0 %120
    %vm122 = vcmp.eq.s32.totalorder %v89, %v100
    %vm123 = vcmp.eq.s32.totalorder %v89, %v103
    %vm124 = vcmp.eq.s32.totalorder %v89, %v106
    %vm125 = vcmp.eq.s32.totalorder %v89, %v109
    %vm126 = vcmp.eq.s32.totalorder %v89, %v112
    %vm127 = vcmp.eq.s32.totalorder %v89, %v115
    %vm128 = vcmp.eq.s32.totalorder %v89, %v118
    %vm129 = vcmp.eq.s32.totalorder %v89, %v121
    %v130 = vsel %vm122, 1.0, 0.0
    %v131 = vsel %vm123, 1.0, 0.0
    %v132 = vsel %vm124, 1.0, 0.0
    %v133 = vsel %vm125, 1.0, 0.0
    %v134 = vsel %vm126, 1.0, 0.0
    %v135 = vsel %vm127, 1.0, 0.0
    %v136 = vsel %vm128, 1.0, 0.0
    %v137 = vsel %vm129, 1.0, 0.0
    %v138 = vld [vmem:[%s1] sm:$0xff]
    %v139 = vld [vmem:[%s1 + $0x8] sm:$0xff]
    %v140 = vld [vmem:[%s1 + $0x10] sm:$0xff]
    %v141 = vld [vmem:[%s1 + $0x18] sm:$0xff]
    %v142 = vld [vmem:[%s1 + $0x20] sm:$0xff]
    %v143 = vld [vmem:[%s1 + $0x28] sm:$0xff]
    %v144 = vld [vmem:[%s1 + $0x30] sm:$0xff]
    %v145 = vld [vmem:[%s1 + $0x38] sm:$0xff]
    %146 = vset.pattern.permute.xlu0 0
    %147 = vperm.xlu0 %146, %v138
    %v148 = vpop.permute.xlu0 %147
    %149 = vset.pattern.permute.xlu0 0
    %150 = vperm.xlu0 %149, %v139
    %v151 = vpop.permute.xlu0 %150
    %152 = vset.pattern.permute.xlu0 0
    %153 = vperm.xlu0 %152, %v140
    %v154 = vpop.permute.xlu0 %153
    %155 = vset.pattern.permute.xlu0 0
    %156 = vperm.xlu0 %155, %v141
    %v157 = vpop.permute.xlu0 %156
    %158 = vset.pattern.permute.xlu0 0
    %159 = vperm.xlu0 %158, %v142
    %v160 = vpop.permute.xlu0 %159
    %161 = vset.pattern.permute.xlu0 0
    %162 = vperm.xlu0 %161, %v143
    %v163 = vpop.permute.xlu0 %162
    %164 = vset.pattern.permute.xlu0 0
    %165 = vperm.xlu0 %164, %v144
    %v166 = vpop.permute.xlu0 %165
    %167 = vset.pattern.permute.xlu0 0
    %168 = vperm.xlu0 %167, %v145
    %v169 = vpop.permute.xlu0 %168
    %vm170 = vcmp.eq.s32.totalorder %v89, %v148
    %vm171 = vcmp.eq.s32.totalorder %v89, %v151
    %vm172 = vcmp.eq.s32.totalorder %v89, %v154
    %vm173 = vcmp.eq.s32.totalorder %v89, %v157
    %vm174 = vcmp.eq.s32.totalorder %v89, %v160
    %vm175 = vcmp.eq.s32.totalorder %v89, %v163
    %vm176 = vcmp.eq.s32.totalorder %v89, %v166
    %vm177 = vcmp.eq.s32.totalorder %v89, %v169
    %v178 = vsel %vm170, 1.0, 0.0
    %v179 = vsel %vm171, 1.0, 0.0
    %v180 = vsel %vm172, 1.0, 0.0
    %v181 = vsel %vm173, 1.0, 0.0
    %v182 = vsel %vm174, 1.0, 0.0
    %v183 = vsel %vm175, 1.0, 0.0
    %v184 = vsel %vm176, 1.0, 0.0
    %v185 = vsel %vm177, 1.0, 0.0
    %v186 = vpack.c.bf16 %v131, %v130
    %v187 = vpack.c.bf16 %v133, %v132
    %v188 = vpack.c.bf16 %v135, %v134
    %v189 = vpack.c.bf16 %v137, %v136
    %v190 = vpack.c.bf16 %v179, %v178
    %v191 = vpack.c.bf16 %v181, %v180
    %v192 = vpack.c.bf16 %v183, %v182
    %v193 = vpack.c.bf16 %v185, %v184
    %v194 = vsub.f32 %v130, %v178
    %v195 = vsub.f32 %v131, %v179
    %v196 = vsub.f32 %v132, %v180
    %v197 = vsub.f32 %v133, %v181
    %v198 = vsub.f32 %v134, %v182
    %v199 = vsub.f32 %v135, %v183
    %v200 = vsub.f32 %v136, %v184
    %v201 = vsub.f32 %v137, %v185
    %v202 = vld [vmem:[%s4] sm:$0xff]
    %v203 = vld [vmem:[%s4 + $0x8] sm:$0xff]
    %vm204 = vcmask 130048
    %v206 = vsel %vm204, %v194, 0
    %v209 = vsel %vm204, %v195, 0
    %v212 = vsel %vm204, %v196, 0
    %v215 = vsel %vm204, %v197, 0
    %v218 = vsel %vm204, %v198, 0
    %v221 = vsel %vm204, %v199, 0
    %v224 = vsel %vm204, %v200, 0
    %v227 = vsel %vm204, %v201, 0
    %229 = vmatprep.subr.mxu0 0.0
    %230 = vmatpush1.msra.mxu0 0.0
    %231 = vmatprep.subr.mxu0 0.0
    %232 = vmatpush1.msra.mxu0 0.0
    %233 = vmatprep.subr.mxu0 0.0
    %234 = vmatpush1.msra.mxu0 0.0
    %235 = vmatprep.subr.mxu0 0.0
    %236 = vmatpush1.msra.mxu0 0.0
    %237 = vmatprep.subr.mxu0 0.0
    %238 = vmatpush1.msra.mxu0 0.0
    %239 = vmatprep.subr.mxu0 0.0
    %240 = vmatpush1.msra.mxu0 0.0
    %241 = vmatprep.subr.mxu0 0.0
    %242 = vmatpush1.msra.mxu0 0.0
    %243 = vmatprep.subr.mxu0 0.0
    %244 = vmatpush1.msra.mxu0 0.0
    %245 = vmatprep.subr.mxu0 0.0
    %246 = vmatpush1.msra.mxu0 0.0
    %247 = vmatprep.subr.mxu0 0.0
    %248 = vmatpush1.msra.mxu0 0.0
    %249 = vmatprep.subr.mxu0 0.0
    %250 = vmatpush1.msra.mxu0 0.0
    %251 = vmatprep.subr.mxu0 0.0
    %252 = vmatpush1.msra.mxu0 0.0
    %253 = vmatprep.subr.mxu0 0.0
    %254 = vmatpush1.msra.mxu0 0.0
    %255 = vmatprep.subr.mxu0 0.0
    %256 = vmatpush1.msra.mxu0 0.0
    %257 = vmatprep.subr.mxu0 0.0
    %258 = vmatpush1.msra.mxu0 %v203
    %259 = vmatprep.subr.mxu0 0.0
    %260 = vmatpush1.msra.mxu0 %v202
    %261 = vmatprep.subr.mxu0 0.0
    %262 = vmatpush2.msra.mxu0 0.0
    %263 = vmatprep.subr.mxu0 0.0
    %264 = vmatpush2.msra.mxu0 0.0
    %265 = vmatprep.subr.mxu0 0.0
    %266 = vmatpush2.msra.mxu0 0.0
    %267 = vmatprep.subr.mxu0 0.0
    %268 = vmatpush2.msra.mxu0 0.0
    %269 = vmatprep.subr.mxu0 0.0
    %270 = vmatpush2.msra.mxu0 0.0
    %271 = vmatprep.subr.mxu0 0.0
    %272 = vmatpush2.msra.mxu0 0.0
    %273 = vmatprep.subr.mxu0 0.0
    %274 = vmatpush2.msra.mxu0 0.0
    %275 = vmatprep.subr.mxu0 0.0
    %276 = vmatpush2.msra.mxu0 0.0
    %277 = vmatprep.subr.mxu0 0.0
    %278 = vmatpush2.msra.mxu0 0.0
    %279 = vmatprep.subr.mxu0 0.0
    %280 = vmatpush2.msra.mxu0 0.0
    %281 = vmatprep.subr.mxu0 0.0
    %282 = vmatpush2.msra.mxu0 0.0
    %283 = vmatprep.subr.mxu0 0.0
    %284 = vmatpush2.msra.mxu0 0.0
    %285 = vmatprep.subr.mxu0 0.0
    %286 = vmatpush2.msra.mxu0 0.0
    %287 = vmatprep.subr.mxu0 0.0
    %288 = vmatpush2.msra.mxu0 0.0
    %289 = vmatprep.subr.mxu0 0.0
    %290 = vmatpush2.msra.mxu0 0.0
    %291 = vmatprep.subr.mxu0 0.0
    %292 = vmatpush2.msra.mxu0 0.0
    %293 = vmatprep.mubr.f32.mxu0 0.0
    %294 = vmatmul.mubr.f32.gmra.mxu0 %v206
    %v295 = vpop.f32.mrf.mxu0
    %v296 = vadd.f32 0.0, %v295
    %v297 = vpop.f32.mrf.mxu0
    %298 = vmatprep.mubr.f32.mxu0 0.0
    %299 = vmatmul.mubr.f32.gmra.mxu0 %v209
    %v300 = vpop.f32.mrf.mxu0
    %v301 = vadd.f32 0.0, %v300
    %v302 = vpop.f32.mrf.mxu0
    %303 = vmatprep.mubr.f32.mxu0 0.0
    %304 = vmatmul.mubr.f32.gmra.mxu0 %v212
    %v305 = vpop.f32.mrf.mxu0
    %v306 = vadd.f32 0.0, %v305
    %v307 = vpop.f32.mrf.mxu0
    %308 = vmatprep.mubr.f32.mxu0 0.0
    %309 = vmatmul.mubr.f32.gmra.mxu0 %v215
    %v310 = vpop.f32.mrf.mxu0
    %v311 = vadd.f32 0.0, %v310
    %v312 = vpop.f32.mrf.mxu0
    %313 = vmatprep.mubr.f32.mxu0 0.0
    %314 = vmatmul.mubr.f32.gmra.mxu0 %v218
    %v315 = vpop.f32.mrf.mxu0
    %v316 = vadd.f32 0.0, %v315
    %v317 = vpop.f32.mrf.mxu0
    %318 = vmatprep.mubr.f32.mxu0 0.0
    %319 = vmatmul.mubr.f32.gmra.mxu0 %v221
    %v320 = vpop.f32.mrf.mxu0
    %v321 = vadd.f32 0.0, %v320
    %v322 = vpop.f32.mrf.mxu0
    %323 = vmatprep.mubr.f32.mxu0 0.0
    %324 = vmatmul.mubr.f32.gmra.mxu0 %v224
    %v325 = vpop.f32.mrf.mxu0
    %v326 = vadd.f32 0.0, %v325
    %v327 = vpop.f32.mrf.mxu0
    %328 = vmatprep.mubr.f32.mxu0 0.0
    %329 = vmatmul.mubr.f32.gmra.mxu0 %v227
    %v330 = vpop.f32.mrf.mxu0
    %v331 = vadd.f32 0.0, %v330
    %v332 = vpop.f32.mrf.mxu0
    %333 = vdwg.mxu0
    %v334 = vmul.f32 %v296, %v296
    %v335 = vmul.f32 %v301, %v301
    %v336 = vmul.f32 %v306, %v306
    %v337 = vmul.f32 %v311, %v311
    %v338 = vmul.f32 %v316, %v316
    %v339 = vmul.f32 %v321, %v321
    %v340 = vmul.f32 %v326, %v326
    %v341 = vmul.f32 %v331, %v331
    %vm342 = vcmask 23552
    %v343 = vsel %vm342, %v334, 0.0
    %344 = vadd.xlane.f32.xlu0 %v343
    %v345 = vpop.xlane.xlu0 %344
    %v346 = vsel %vm342, %v335, 0.0
    %347 = vadd.xlane.f32.xlu0 %v346
    %v348 = vpop.xlane.xlu0 %347
    %v349 = vsel %vm342, %v336, 0.0
    %350 = vadd.xlane.f32.xlu0 %v349
    %v351 = vpop.xlane.xlu0 %350
    %v352 = vsel %vm342, %v337, 0.0
    %353 = vadd.xlane.f32.xlu0 %v352
    %v354 = vpop.xlane.xlu0 %353
    %v355 = vsel %vm342, %v338, 0.0
    %356 = vadd.xlane.f32.xlu0 %v355
    %v357 = vpop.xlane.xlu0 %356
    %v358 = vsel %vm342, %v339, 0.0
    %359 = vadd.xlane.f32.xlu0 %v358
    %v360 = vpop.xlane.xlu0 %359
    %v361 = vsel %vm342, %v340, 0.0
    %362 = vadd.xlane.f32.xlu0 %v361
    %v363 = vpop.xlane.xlu0 %362
    %v364 = vsel %vm342, %v341, 0.0
    %365 = vadd.xlane.f32.xlu0 %v364
    %v366 = vpop.xlane.xlu0 %365
    %v367 = vld [vmem:[%s5] sm:$0xff]
    %v368 = vld [vmem:[%s5 + $0x8] sm:$0xff]
    %v369 = vld [vmem:[%s6] sm:$0xff]
    %v370 = vld [vmem:[%s6 + $0x8] sm:$0xff]
    %v373 = vunpack.c.l.b16 %v369
    %v374 = vunpack.c.h.b16 %v369
    %v375 = vunpack.c.l.b16 %v370
    %v376 = vunpack.c.h.b16 %v370
    %v377 = vpack.c.b16 %v375, %v373
    %v378 = vpack.c.b16 %v376, %v374
    %v382 = vsel %vm204, %v186, 0
    %v385 = vsel %vm204, %v187, 0
    %v388 = vsel %vm204, %v188, 0
    %v391 = vsel %vm204, %v189, 0
    %393 = vmatprep.subr.bf16.mxu0 0
    %394 = vmatpush1.bf16.msra.mxu0 0
    %395 = vmatprep.subr.bf16.mxu0 0
    %396 = vmatpush1.bf16.msra.mxu0 0
    %397 = vmatprep.subr.bf16.mxu0 0
    %398 = vmatpush1.bf16.msra.mxu0 0
    %399 = vmatprep.subr.bf16.mxu0 0
    %400 = vmatpush1.bf16.msra.mxu0 0
    %401 = vmatprep.subr.bf16.mxu0 0
    %402 = vmatpush1.bf16.msra.mxu0 0
    %403 = vmatprep.subr.bf16.mxu0 0
    %404 = vmatpush1.bf16.msra.mxu0 0
    %405 = vmatprep.subr.bf16.mxu0 0
    %406 = vmatpush1.bf16.msra.mxu0 0
    %407 = vmatprep.subr.bf16.mxu0 %v378
    %408 = vmatpush1.bf16.msra.mxu0 %v377
    %409 = vmatprep.subr.bf16.mxu0 0
    %410 = vmatpush2.bf16.msra.mxu0 0
    %411 = vmatprep.subr.bf16.mxu0 0
    %412 = vmatpush2.bf16.msra.mxu0 0
    %413 = vmatprep.subr.bf16.mxu0 0
    %414 = vmatpush2.bf16.msra.mxu0 0
    %415 = vmatprep.subr.bf16.mxu0 0
    %416 = vmatpush2.bf16.msra.mxu0 0
    %417 = vmatprep.subr.bf16.mxu0 0
    %418 = vmatpush2.bf16.msra.mxu0 0
    %419 = vmatprep.subr.bf16.mxu0 0
    %420 = vmatpush2.bf16.msra.mxu0 0
    %421 = vmatprep.subr.bf16.mxu0 0
    %422 = vmatpush2.bf16.msra.mxu0 0
    %423 = vmatprep.subr.bf16.mxu0 0
    %424 = vmatpush2.bf16.msra.mxu0 0
    %425 = vmatprep.mubr.bf16.mxu0 0
    %426 = vmatmul.mubr.bf16.gmra.mxu0 %v382
    %v427 = vpop.f32.mrf.mxu0
    %v428 = vadd.f32 0.0, %v427
    %v429 = vpop.f32.mrf.mxu0
    %v430 = vadd.f32 0.0, %v429
    %v431 = vpop.f32.mrf.mxu0
    %v432 = vadd.f32 0.0, %v431
    %v433 = vpop.f32.mrf.mxu0
    %v434 = vadd.f32 0.0, %v433
    %435 = vmatprep.mubr.bf16.mxu0 0
    %436 = vmatmul.mubr.bf16.gmra.mxu0 %v385
    %v437 = vpop.f32.mrf.mxu0
    %v438 = vadd.f32 0.0, %v437
    %v439 = vpop.f32.mrf.mxu0
    %v440 = vadd.f32 0.0, %v439
    %v441 = vpop.f32.mrf.mxu0
    %v442 = vadd.f32 0.0, %v441
    %v443 = vpop.f32.mrf.mxu0
    %v444 = vadd.f32 0.0, %v443
    %445 = vmatprep.mubr.bf16.mxu0 0
    %446 = vmatmul.mubr.bf16.gmra.mxu0 %v388
    %v447 = vpop.f32.mrf.mxu0
    %v448 = vadd.f32 0.0, %v447
    %v449 = vpop.f32.mrf.mxu0
    %v450 = vadd.f32 0.0, %v449
    %v451 = vpop.f32.mrf.mxu0
    %v452 = vadd.f32 0.0, %v451
    %v453 = vpop.f32.mrf.mxu0
    %v454 = vadd.f32 0.0, %v453
    %455 = vmatprep.mubr.bf16.mxu0 0
    %456 = vmatmul.mubr.bf16.gmra.mxu0 %v391
    %v457 = vpop.f32.mrf.mxu0
    %v458 = vadd.f32 0.0, %v457
    %v459 = vpop.f32.mrf.mxu0
    %v460 = vadd.f32 0.0, %v459
    %v461 = vpop.f32.mrf.mxu0
    %v462 = vadd.f32 0.0, %v461
    %v463 = vpop.f32.mrf.mxu0
    %v464 = vadd.f32 0.0, %v463
    %465 = vdwg.mxu0
    %v468 = vunpack.c.l.b16 %v367
    %v469 = vunpack.c.h.b16 %v367
    %v470 = vunpack.c.l.b16 %v368
    %v471 = vunpack.c.h.b16 %v368
    %v472 = vpack.c.b16 %v470, %v468
    %v473 = vpack.c.b16 %v471, %v469
    %v477 = vsel %vm204, %v190, 0
    %v480 = vsel %vm204, %v191, 0
    %v483 = vsel %vm204, %v192, 0
    %v486 = vsel %vm204, %v193, 0
    %488 = vmatprep.subr.bf16.mxu0 0
    %489 = vmatpush1.bf16.msra.mxu0 0
    %490 = vmatprep.subr.bf16.mxu0 0
    %491 = vmatpush1.bf16.msra.mxu0 0
    %492 = vmatprep.subr.bf16.mxu0 0
    %493 = vmatpush1.bf16.msra.mxu0 0
    %494 = vmatprep.subr.bf16.mxu0 0
    %495 = vmatpush1.bf16.msra.mxu0 0
    %496 = vmatprep.subr.bf16.mxu0 0
    %497 = vmatpush1.bf16.msra.mxu0 0
    %498 = vmatprep.subr.bf16.mxu0 0
    %499 = vmatpush1.bf16.msra.mxu0 0
    %500 = vmatprep.subr.bf16.mxu0 0
    %501 = vmatpush1.bf16.msra.mxu0 0
    %502 = vmatprep.subr.bf16.mxu0 %v473
    %503 = vmatpush1.bf16.msra.mxu0 %v472
    %504 = vmatprep.subr.bf16.mxu0 0
    %505 = vmatpush2.bf16.msra.mxu0 0
    %506 = vmatprep.subr.bf16.mxu0 0
    %507 = vmatpush2.bf16.msra.mxu0 0
    %508 = vmatprep.subr.bf16.mxu0 0
    %509 = vmatpush2.bf16.msra.mxu0 0
    %510 = vmatprep.subr.bf16.mxu0 0
    %511 = vmatpush2.bf16.msra.mxu0 0
    %512 = vmatprep.subr.bf16.mxu0 0
    %513 = vmatpush2.bf16.msra.mxu0 0
    %514 = vmatprep.subr.bf16.mxu0 0
    %515 = vmatpush2.bf16.msra.mxu0 0
    %516 = vmatprep.subr.bf16.mxu0 0
    %517 = vmatpush2.bf16.msra.mxu0 0
    %518 = vmatprep.subr.bf16.mxu0 0
    %519 = vmatpush2.bf16.msra.mxu0 0
    %520 = vmatprep.mubr.bf16.mxu0 0
    %521 = vmatmul.mubr.bf16.gmra.mxu0 %v477
    %v522 = vpop.f32.mrf.mxu0
    %v523 = vadd.f32 %v428, %v522
    %v524 = vpop.f32.mrf.mxu0
    %v525 = vadd.f32 %v430, %v524
    %v526 = vpop.f32.mrf.mxu0
    %v527 = vadd.f32 %v432, %v526
    %v528 = vpop.f32.mrf.mxu0
    %v529 = vadd.f32 %v434, %v528
    %530 = vmatprep.mubr.bf16.mxu0 0
    %531 = vmatmul.mubr.bf16.gmra.mxu0 %v480
    %v532 = vpop.f32.mrf.mxu0
    %v533 = vadd.f32 %v438, %v532
    %v534 = vpop.f32.mrf.mxu0
    %v535 = vadd.f32 %v440, %v534
    %v536 = vpop.f32.mrf.mxu0
    %v537 = vadd.f32 %v442, %v536
    %v538 = vpop.f32.mrf.mxu0
    %v539 = vadd.f32 %v444, %v538
    %540 = vmatprep.mubr.bf16.mxu0 0
    %541 = vmatmul.mubr.bf16.gmra.mxu0 %v483
    %v542 = vpop.f32.mrf.mxu0
    %v543 = vadd.f32 %v448, %v542
    %v544 = vpop.f32.mrf.mxu0
    %v545 = vadd.f32 %v450, %v544
    %v546 = vpop.f32.mrf.mxu0
    %v547 = vadd.f32 %v452, %v546
    %v548 = vpop.f32.mrf.mxu0
    %v549 = vadd.f32 %v454, %v548
    %550 = vmatprep.mubr.bf16.mxu0 0
    %551 = vmatmul.mubr.bf16.gmra.mxu0 %v486
    %v552 = vpop.f32.mrf.mxu0
    %v553 = vadd.f32 %v458, %v552
    %v554 = vpop.f32.mrf.mxu0
    %v555 = vadd.f32 %v460, %v554
    %v556 = vpop.f32.mrf.mxu0
    %v557 = vadd.f32 %v462, %v556
    %v558 = vpop.f32.mrf.mxu0
    %v559 = vadd.f32 %v464, %v558
    %560 = vdwg.mxu0
    %v561 = vld [vmem:[%s2] sm:$0xf]
    %v562 = vld [vmem:[%s2 + $0x4] sm:$0xf]
    %v563 = vld [vmem:[%s2 + $0x8] sm:$0xf]
    %v564 = vld [vmem:[%s2 + $0xc] sm:$0xf]
    %v565 = vld [vmem:[%s2 + $0x10] sm:$0xf]
    %v566 = vld [vmem:[%s2 + $0x14] sm:$0xf]
    %v567 = vld [vmem:[%s2 + $0x18] sm:$0xf]
    %v568 = vld [vmem:[%s2 + $0x1c] sm:$0xf]
    %v569 = vld [vmem:[%s7] sm:$0xf]
    %v578 = vunpack.c.l.b16 %v561
    %v579 = vunpack.c.l.b16 %v562
    %v580 = vunpack.c.l.b16 %v563
    %v581 = vunpack.c.l.b16 %v564
    %v582 = vunpack.c.l.b16 %v565
    %v583 = vunpack.c.l.b16 %v566
    %v584 = vunpack.c.l.b16 %v567
    %v585 = vunpack.c.l.b16 %v568
    %v586 = vpack.c.b16 %v579, %v578
    %v587 = vpack.c.b16 %v581, %v580
    %v588 = vpack.c.b16 %v583, %v582
    %v589 = vpack.c.b16 %v585, %v584
    %v592 = vunpack.c.l.s4 1983009808
    %v593 = vunpack.c.0.s8 %v592
    %v594 = vlaneseq
    %v595 = vshrl.u32 %v594, 7
    %v596 = vsub.s32 %v593, %v595
    %v597 = vrot.slane %v569, %v596
    %v598 = vcombine.high %v597, %v597
    %vm599 = vcmask 31744
    %v601 = vsel %vm599, %v586, 0
    %v604 = vsel %vm599, %v587, 0
    %v607 = vsel %vm599, %v588, 0
    %v610 = vsel %vm599, %v589, 0
    %vm612 = vcmask 1041408
    %v614 = vsel %vm612, %v597, 0
    %v617 = vsel %vm612, %v598, 0
    %619 = vmatprep.subr.bf16.mxu0 0
    %620 = vmatpush1.bf16.msra.mxu0 0
    %621 = vmatprep.subr.bf16.mxu0 0
    %622 = vmatpush1.bf16.msra.mxu0 0
    %623 = vmatprep.subr.bf16.mxu0 0
    %624 = vmatpush1.bf16.msra.mxu0 0
    %625 = vmatprep.subr.bf16.mxu0 0
    %626 = vmatpush1.bf16.msra.mxu0 0
    %627 = vmatprep.subr.bf16.mxu0 0
    %628 = vmatpush1.bf16.msra.mxu0 0
    %629 = vmatprep.subr.bf16.mxu0 0
    %630 = vmatpush1.bf16.msra.mxu0 0
    %631 = vmatprep.subr.bf16.mxu0 0
    %632 = vmatpush1.bf16.msra.mxu0 0
    %633 = vmatprep.subr.bf16.mxu0 %v617
    %634 = vmatpush1.bf16.msra.mxu0 %v614
    %635 = vmatprep.subr.bf16.mxu0 0
    %636 = vmatpush2.bf16.msra.mxu0 0
    %637 = vmatprep.subr.bf16.mxu0 0
    %638 = vmatpush2.bf16.msra.mxu0 0
    %639 = vmatprep.subr.bf16.mxu0 0
    %640 = vmatpush2.bf16.msra.mxu0 0
    %641 = vmatprep.subr.bf16.mxu0 0
    %642 = vmatpush2.bf16.msra.mxu0 0
    %643 = vmatprep.subr.bf16.mxu0 0
    %644 = vmatpush2.bf16.msra.mxu0 0
    %645 = vmatprep.subr.bf16.mxu0 0
    %646 = vmatpush2.bf16.msra.mxu0 0
    %647 = vmatprep.subr.bf16.mxu0 0
    %648 = vmatpush2.bf16.msra.mxu0 0
    %649 = vmatprep.subr.bf16.mxu0 0
    %650 = vmatpush2.bf16.msra.mxu0 0
    %651 = vmatprep.mubr.bf16.mxu0 0
    %652 = vmatmul.mubr.bf16.gmra.mxu0 %v601
    %v653 = vpop.f32.mrf.mxu0
    %v654 = vadd.f32 0.0, %v653
    %v655 = vpop.f32.mrf.mxu0
    %v656 = vadd.f32 0.0, %v655
    %v657 = vpop.f32.mrf.mxu0
    %v658 = vadd.f32 0.0, %v657
    %v659 = vpop.f32.mrf.mxu0
    %v660 = vadd.f32 0.0, %v659
    %661 = vmatprep.mubr.bf16.mxu0 0
    %662 = vmatmul.mubr.bf16.gmra.mxu0 %v604
    %v663 = vpop.f32.mrf.mxu0
    %v664 = vadd.f32 0.0, %v663
    %v665 = vpop.f32.mrf.mxu0
    %v666 = vadd.f32 0.0, %v665
    %v667 = vpop.f32.mrf.mxu0
    %v668 = vadd.f32 0.0, %v667
    %v669 = vpop.f32.mrf.mxu0
    %v670 = vadd.f32 0.0, %v669
    %671 = vmatprep.mubr.bf16.mxu0 0
    %672 = vmatmul.mubr.bf16.gmra.mxu0 %v607
    %v673 = vpop.f32.mrf.mxu0
    %v674 = vadd.f32 0.0, %v673
    %v675 = vpop.f32.mrf.mxu0
    %v676 = vadd.f32 0.0, %v675
    %v677 = vpop.f32.mrf.mxu0
    %v678 = vadd.f32 0.0, %v677
    %v679 = vpop.f32.mrf.mxu0
    %v680 = vadd.f32 0.0, %v679
    %681 = vmatprep.mubr.bf16.mxu0 0
    %682 = vmatmul.mubr.bf16.gmra.mxu0 %v610
    %v683 = vpop.f32.mrf.mxu0
    %v684 = vadd.f32 0.0, %v683
    %v685 = vpop.f32.mrf.mxu0
    %v686 = vadd.f32 0.0, %v685
    %v687 = vpop.f32.mrf.mxu0
    %v688 = vadd.f32 0.0, %v687
    %v689 = vpop.f32.mrf.mxu0
    %v690 = vadd.f32 0.0, %v689
    %691 = vdwg.mxu0
    %v692 = vadd.f32 %v523, %v654
    %v693 = vadd.f32 %v525, %v656
    %v694 = vadd.f32 %v527, %v658
    %v695 = vadd.f32 %v529, %v660
    %v696 = vadd.f32 %v533, %v664
    %v697 = vadd.f32 %v535, %v666
    %v698 = vadd.f32 %v537, %v668
    %v699 = vadd.f32 %v539, %v670
    %v700 = vadd.f32 %v543, %v674
    %v701 = vadd.f32 %v545, %v676
    %v702 = vadd.f32 %v547, %v678
    %v703 = vadd.f32 %v549, %v680
    %v704 = vadd.f32 %v553, %v684
    %v705 = vadd.f32 %v555, %v686
    %v706 = vadd.f32 %v557, %v688
    %v707 = vadd.f32 %v559, %v690
    %v708 = vld [vmem:[%s8] sm:$0x3]
    %v710 = vlaneseq
    %v711 = vshrl.u32 %v710, 7
    %v712 = vsub.s32 0, %v711
    %v713 = vrot.slane %v708, %v712
    %v714 = vlaneseq
    %v715 = vshrl.u32 %v714, 7
    %v716 = vsub.s32 1, %v715
    %v717 = vrot.slane %v708, %v716
    %v720 = vmul.f32 %v345, %v713
    %v721 = vmul.f32 %v345, %v717
    %v722 = vmul.f32 %v348, %v713
    %v723 = vmul.f32 %v348, %v717
    %v724 = vmul.f32 %v351, %v713
    %v725 = vmul.f32 %v351, %v717
    %v726 = vmul.f32 %v354, %v713
    %v727 = vmul.f32 %v354, %v717
    %v728 = vmul.f32 %v357, %v713
    %v729 = vmul.f32 %v357, %v717
    %v730 = vmul.f32 %v360, %v713
    %v731 = vmul.f32 %v360, %v717
    %v732 = vmul.f32 %v363, %v713
    %v733 = vmul.f32 %v363, %v717
    %v734 = vmul.f32 %v366, %v713
    %v735 = vmul.f32 %v366, %v717
    %v736 = vadd.f32 %v692, %v720
    %v737 = vadd.f32 %v693, %v721
    %v738 = vadd.f32 %v694, %v722
    %v739 = vadd.f32 %v695, %v723
    %v740 = vadd.f32 %v696, %v724
    %v741 = vadd.f32 %v697, %v725
    %v742 = vadd.f32 %v698, %v726
    %v743 = vadd.f32 %v699, %v727
    %v744 = vadd.f32 %v700, %v728
    %v745 = vadd.f32 %v701, %v729
    %v746 = vadd.f32 %v702, %v730
    %v747 = vadd.f32 %v703, %v731
    %v748 = vadd.f32 %v704, %v732
    %v749 = vadd.f32 %v705, %v733
    %v750 = vadd.f32 %v706, %v734
    %v751 = vadd.f32 %v707, %v735
    %v752 = vld [vmem:[%s9] sm:$0x3]
    %v754 = vlaneseq
    %v755 = vshrl.u32 %v754, 7
    %v756 = vsub.s32 0, %v755
    %v757 = vrot.slane %v752, %v756
    %v758 = vlaneseq
    %v759 = vshrl.u32 %v758, 7
    %v760 = vsub.s32 1, %v759
    %v761 = vrot.slane %v752, %v760
    %v764 = vadd.f32 %v736, %v757
    %v765 = vadd.f32 %v737, %v761
    %v766 = vadd.f32 %v738, %v757
    %v767 = vadd.f32 %v739, %v761
    %v768 = vadd.f32 %v740, %v757
    %v769 = vadd.f32 %v741, %v761
    %v770 = vadd.f32 %v742, %v757
    %v771 = vadd.f32 %v743, %v761
    %v772 = vadd.f32 %v744, %v757
    %v773 = vadd.f32 %v745, %v761
    %v774 = vadd.f32 %v746, %v757
    %v775 = vadd.f32 %v747, %v761
    %v776 = vadd.f32 %v748, %v757
    %v777 = vadd.f32 %v749, %v761
    %v778 = vadd.f32 %v750, %v757
    %v779 = vadd.f32 %v751, %v761
    %v780 = vxor.u32 %v764, 2147483648
    %v781 = vxor.u32 %v765, 2147483648
    %v782 = vxor.u32 %v766, 2147483648
    %v783 = vxor.u32 %v767, 2147483648
    %v784 = vxor.u32 %v768, 2147483648
    %v785 = vxor.u32 %v769, 2147483648
    %v786 = vxor.u32 %v770, 2147483648
    %v787 = vxor.u32 %v771, 2147483648
    %v788 = vxor.u32 %v772, 2147483648
    %v789 = vxor.u32 %v773, 2147483648
    %v790 = vxor.u32 %v774, 2147483648
    %v791 = vxor.u32 %v775, 2147483648
    %v792 = vxor.u32 %v776, 2147483648
    %v793 = vxor.u32 %v777, 2147483648
    %v794 = vxor.u32 %v778, 2147483648
    %v795 = vxor.u32 %v779, 2147483648
    %v796 = vmul.f32 %v780, 1.442695
    %v797 = vpow.pop %v796
    %v798 = vmul.f32 %v781, 1.442695
    %v799 = vpow.pop %v798
    %v800 = vmul.f32 %v782, 1.442695
    %v801 = vpow.pop %v800
    %v802 = vmul.f32 %v783, 1.442695
    %v803 = vpow.pop %v802
    %v804 = vmul.f32 %v784, 1.442695
    %v805 = vpow.pop %v804
    %v806 = vmul.f32 %v785, 1.442695
    %v807 = vpow.pop %v806
    %v808 = vmul.f32 %v786, 1.442695
    %v809 = vpow.pop %v808
    %v810 = vmul.f32 %v787, 1.442695
    %v811 = vpow.pop %v810
    %v812 = vmul.f32 %v788, 1.442695
    %v813 = vpow.pop %v812
    %v814 = vmul.f32 %v789, 1.442695
    %v815 = vpow.pop %v814
    %v816 = vmul.f32 %v790, 1.442695
    %v817 = vpow.pop %v816
    %v818 = vmul.f32 %v791, 1.442695
    %v819 = vpow.pop %v818
    %v820 = vmul.f32 %v792, 1.442695
    %v821 = vpow.pop %v820
    %v822 = vmul.f32 %v793, 1.442695
    %v823 = vpow.pop %v822
    %v824 = vmul.f32 %v794, 1.442695
    %v825 = vpow.pop %v824
    %v826 = vmul.f32 %v795, 1.442695
    %v827 = vpow.pop %v826
    %v828 = vadd.f32 %v797, 1.0
    %v829 = vadd.f32 %v799, 1.0
    %v830 = vadd.f32 %v801, 1.0
    %v831 = vadd.f32 %v803, 1.0
    %v832 = vadd.f32 %v805, 1.0
    %v833 = vadd.f32 %v807, 1.0
    %v834 = vadd.f32 %v809, 1.0
    %v835 = vadd.f32 %v811, 1.0
    %v836 = vadd.f32 %v813, 1.0
    %v837 = vadd.f32 %v815, 1.0
    %v838 = vadd.f32 %v817, 1.0
    %v839 = vadd.f32 %v819, 1.0
    %v840 = vadd.f32 %v821, 1.0
    %v841 = vadd.f32 %v823, 1.0
    %v842 = vadd.f32 %v825, 1.0
    %v843 = vadd.f32 %v827, 1.0
    %v844 = vrcp.pop %v828
    %v845 = vmul.f32 1.0, %v844
    %v846 = vrcp.pop %v829
    %v847 = vmul.f32 1.0, %v846
    %v848 = vrcp.pop %v830
    %v849 = vmul.f32 1.0, %v848
    %v850 = vrcp.pop %v831
    %v851 = vmul.f32 1.0, %v850
    %v852 = vrcp.pop %v832
    %v853 = vmul.f32 1.0, %v852
    %v854 = vrcp.pop %v833
    %v855 = vmul.f32 1.0, %v854
    %v856 = vrcp.pop %v834
    %v857 = vmul.f32 1.0, %v856
    %v858 = vrcp.pop %v835
    %v859 = vmul.f32 1.0, %v858
    %v860 = vrcp.pop %v836
    %v861 = vmul.f32 1.0, %v860
    %v862 = vrcp.pop %v837
    %v863 = vmul.f32 1.0, %v862
    %v864 = vrcp.pop %v838
    %v865 = vmul.f32 1.0, %v864
    %v866 = vrcp.pop %v839
    %v867 = vmul.f32 1.0, %v866
    %v868 = vrcp.pop %v840
    %v869 = vmul.f32 1.0, %v868
    %v870 = vrcp.pop %v841
    %v871 = vmul.f32 1.0, %v870
    %v872 = vrcp.pop %v842
    %v873 = vmul.f32 1.0, %v872
    %v874 = vrcp.pop %v843
    %v875 = vmul.f32 1.0, %v874
    %v876 = vmul.f32 %v764, %v845
    %v877 = vmul.f32 %v765, %v847
    %v878 = vmul.f32 %v766, %v849
    %v879 = vmul.f32 %v767, %v851
    %v880 = vmul.f32 %v768, %v853
    %v881 = vmul.f32 %v769, %v855
    %v882 = vmul.f32 %v770, %v857
    %v883 = vmul.f32 %v771, %v859
    %v884 = vmul.f32 %v772, %v861
    %v885 = vmul.f32 %v773, %v863
    %v886 = vmul.f32 %v774, %v865
    %v887 = vmul.f32 %v775, %v867
    %v888 = vmul.f32 %v776, %v869
    %v889 = vmul.f32 %v777, %v871
    %v890 = vmul.f32 %v778, %v873
    %v891 = vmul.f32 %v779, %v875
    %v892 = vpack.c.bf16 %v878, %v876
    %v893 = vpack.c.bf16 %v879, %v877
    %v894 = vpack.c.bf16 %v882, %v880
    %v895 = vpack.c.bf16 %v883, %v881
    %v896 = vpack.c.bf16 %v886, %v884
    %v897 = vpack.c.bf16 %v887, %v885
    %v898 = vpack.c.bf16 %v890, %v888
    %v899 = vpack.c.bf16 %v891, %v889
    %v900 = vld [vmem:[%s10] sm:$0xf]
    %v901 = vld [vmem:[%s10 + $0x4] sm:$0xf]
    %v902 = vld [vmem:[%s10 + $0x8] sm:$0xf]
    %v903 = vld [vmem:[%s10 + $0xc] sm:$0xf]
    %v904 = vld [vmem:[%s10 + $0x10] sm:$0xf]
    %v905 = vld [vmem:[%s10 + $0x14] sm:$0xf]
    %v906 = vld [vmem:[%s10 + $0x18] sm:$0xf]
    %v907 = vld [vmem:[%s10 + $0x1c] sm:$0xf]
    %v908 = vld [vmem:[%s10 + $0x20] sm:$0xf]
    %v909 = vld [vmem:[%s10 + $0x24] sm:$0xf]
    %v910 = vld [vmem:[%s10 + $0x28] sm:$0xf]
    %v911 = vld [vmem:[%s10 + $0x2c] sm:$0xf]
    %v912 = vld [vmem:[%s10 + $0x30] sm:$0xf]
    %v913 = vld [vmem:[%s10 + $0x34] sm:$0xf]
    %v914 = vld [vmem:[%s10 + $0x38] sm:$0xf]
    %v915 = vld [vmem:[%s10 + $0x3c] sm:$0xf]
    %v916 = vld [vmem:[%s10 + $0x40] sm:$0xf]
    %v917 = vld [vmem:[%s10 + $0x44] sm:$0x1]
    %v918 = vld [vmem:[%s11] sm:$0x1]
    %v920 = vlaneseq
    %v921 = vshrl.u32 %v920, 7
    %v922 = vsub.s32 0, %v921
    %v923 = vrot.slane %v918, %v922
    %v943 = vunpack.c.l.b16 %v900
    %v944 = vunpack.c.l.b16 %v901
    %v945 = vunpack.c.l.b16 %v902
    %v946 = vunpack.c.l.b16 %v903
    %v947 = vunpack.c.l.b16 %v904
    %v948 = vunpack.c.l.b16 %v905
    %v949 = vunpack.c.l.b16 %v906
    %v950 = vunpack.c.l.b16 %v907
    %v951 = vunpack.c.l.b16 %v908
    %v952 = vunpack.c.l.b16 %v909
    %v953 = vunpack.c.l.b16 %v910
    %v954 = vunpack.c.l.b16 %v911
    %v955 = vunpack.c.l.b16 %v912
    %v956 = vunpack.c.l.b16 %v913
    %v957 = vunpack.c.l.b16 %v914
    %v958 = vunpack.c.l.b16 %v915
    %v959 = vunpack.c.l.b16 %v916
    %v960 = vunpack.c.l.b16 %v917
    %v961 = vpack.c.b16 %v944, %v943
    %v962 = vpack.c.b16 %v946, %v945
    %v963 = vpack.c.b16 %v948, %v947
    %v964 = vpack.c.b16 %v950, %v949
    %v965 = vpack.c.b16 %v952, %v951
    %v966 = vpack.c.b16 %v954, %v953
    %v967 = vpack.c.b16 %v956, %v955
    %v968 = vpack.c.b16 %v958, %v957
    %v969 = vpack.c.b16 %v960, %v959
    %vm978 = vcmask 80896
    %v980 = vsel %vm978, %v893, 0
    %v983 = vsel %vm978, %v895, 0
    %v986 = vsel %vm978, %v897, 0
    %v989 = vsel %vm978, %v899, 0
    %vm991 = vcmask 1044480
    %v993 = vsel %vm991, %v969, 0
    %995 = vmatprep.subr.bf16.mxu0 0
    %996 = vmatpush1.bf16.msra.mxu0 %v968
    %997 = vmatprep.subr.bf16.mxu0 0
    %998 = vmatpush1.bf16.msra.mxu0 %v967
    %999 = vmatprep.subr.bf16.mxu0 0
    %1000 = vmatpush1.bf16.msra.mxu0 %v966
    %1001 = vmatprep.subr.bf16.mxu0 0
    %1002 = vmatpush1.bf16.msra.mxu0 %v965
    %1003 = vmatprep.subr.bf16.mxu0 0
    %1004 = vmatpush1.bf16.msra.mxu0 %v964
    %1005 = vmatprep.subr.bf16.mxu0 0
    %1006 = vmatpush1.bf16.msra.mxu0 %v963
    %1007 = vmatprep.subr.bf16.mxu0 0
    %1008 = vmatpush1.bf16.msra.mxu0 %v962
    %1009 = vmatprep.subr.bf16.mxu0 0
    %1010 = vmatpush1.bf16.msra.mxu0 %v961
    %1011 = vmatprep.subr.bf16.mxu0 0
    %1012 = vmatpush2.bf16.msra.mxu0 0
    %1013 = vmatprep.subr.bf16.mxu0 0
    %1014 = vmatpush2.bf16.msra.mxu0 0
    %1015 = vmatprep.subr.bf16.mxu0 0
    %1016 = vmatpush2.bf16.msra.mxu0 0
    %1017 = vmatprep.subr.bf16.mxu0 0
    %1018 = vmatpush2.bf16.msra.mxu0 0
    %1019 = vmatprep.subr.bf16.mxu0 0
    %1020 = vmatpush2.bf16.msra.mxu0 0
    %1021 = vmatprep.subr.bf16.mxu0 0
    %1022 = vmatpush2.bf16.msra.mxu0 0
    %1023 = vmatprep.subr.bf16.mxu0 0
    %1024 = vmatpush2.bf16.msra.mxu0 0
    %1025 = vmatprep.subr.bf16.mxu0 0
    %1026 = vmatpush2.bf16.msra.mxu0 %v993
    %1027 = vmatprep.mubr.bf16.mxu0 %v980
    %1028 = vmatmul.mubr.bf16.gmra.mxu0 %v892
    %v1029 = vpop.f32.mrf.mxu0
    %v1030 = vadd.f32 %v923, %v1029
    %v1031 = vpop.f32.mrf.mxu0
    %v1032 = vpop.f32.mrf.mxu0
    %v1033 = vadd.f32 %v923, %v1032
    %v1034 = vpop.f32.mrf.mxu0
    %1035 = vmatprep.mubr.bf16.mxu0 %v983
    %1036 = vmatmul.mubr.bf16.gmra.mxu0 %v894
    %v1037 = vpop.f32.mrf.mxu0
    %v1038 = vadd.f32 %v923, %v1037
    %v1039 = vpop.f32.mrf.mxu0
    %v1040 = vpop.f32.mrf.mxu0
    %v1041 = vadd.f32 %v923, %v1040
    %v1042 = vpop.f32.mrf.mxu0
    %1043 = vmatprep.mubr.bf16.mxu0 %v986
    %1044 = vmatmul.mubr.bf16.gmra.mxu0 %v896
    %v1045 = vpop.f32.mrf.mxu0
    %v1046 = vadd.f32 %v923, %v1045
    %v1047 = vpop.f32.mrf.mxu0
    %v1048 = vpop.f32.mrf.mxu0
    %v1049 = vadd.f32 %v923, %v1048
    %v1050 = vpop.f32.mrf.mxu0
    %1051 = vmatprep.mubr.bf16.mxu0 %v989
    %1052 = vmatmul.mubr.bf16.gmra.mxu0 %v898
    %v1053 = vpop.f32.mrf.mxu0
    %v1054 = vadd.f32 %v923, %v1053
    %v1055 = vpop.f32.mrf.mxu0
    %v1056 = vpop.f32.mrf.mxu0
    %v1057 = vadd.f32 %v923, %v1056
    %v1058 = vpop.f32.mrf.mxu0
    %1059 = vdwg.mxu0
    %v1060 = vxor.u32 %v1030, 2147483648
    %v1061 = vxor.u32 %v1033, 2147483648
    %v1062 = vxor.u32 %v1038, 2147483648
    %v1063 = vxor.u32 %v1041, 2147483648
    %v1064 = vxor.u32 %v1046, 2147483648
    %v1065 = vxor.u32 %v1049, 2147483648
    %v1066 = vxor.u32 %v1054, 2147483648
    %v1067 = vxor.u32 %v1057, 2147483648
    %v1068 = vmul.f32 %v1060, 1.442695
    %v1069 = vpow.pop %v1068
    %v1070 = vmul.f32 %v1061, 1.442695
    %v1071 = vpow.pop %v1070
    %v1072 = vmul.f32 %v1062, 1.442695
    %v1073 = vpow.pop %v1072
    %v1074 = vmul.f32 %v1063, 1.442695
    %v1075 = vpow.pop %v1074
    %v1076 = vmul.f32 %v1064, 1.442695
    %v1077 = vpow.pop %v1076
    %v1078 = vmul.f32 %v1065, 1.442695
    %v1079 = vpow.pop %v1078
    %v1080 = vmul.f32 %v1066, 1.442695
    %v1081 = vpow.pop %v1080
    %v1082 = vmul.f32 %v1067, 1.442695
    %v1083 = vpow.pop %v1082
    %v1084 = vadd.f32 %v1069, 1.0
    %v1085 = vadd.f32 %v1071, 1.0
    %v1086 = vadd.f32 %v1073, 1.0
    %v1087 = vadd.f32 %v1075, 1.0
    %v1088 = vadd.f32 %v1077, 1.0
    %v1089 = vadd.f32 %v1079, 1.0
    %v1090 = vadd.f32 %v1081, 1.0
    %v1091 = vadd.f32 %v1083, 1.0
    %v1092 = vrcp.pop %v1084
    %v1093 = vmul.f32 1.0, %v1092
    %v1094 = vrcp.pop %v1085
    %v1095 = vmul.f32 1.0, %v1094
    %v1096 = vrcp.pop %v1086
    %v1097 = vmul.f32 1.0, %v1096
    %v1098 = vrcp.pop %v1087
    %v1099 = vmul.f32 1.0, %v1098
    %v1100 = vrcp.pop %v1088
    %v1101 = vmul.f32 1.0, %v1100
    %v1102 = vrcp.pop %v1089
    %v1103 = vmul.f32 1.0, %v1102
    %v1104 = vrcp.pop %v1090
    %v1105 = vmul.f32 1.0, %v1104
    %v1106 = vrcp.pop %v1091
    %v1107 = vmul.f32 1.0, %v1106
    %v1108 = vmul.f32 %v1030, %v1093
    %v1109 = vmul.f32 %v1033, %v1095
    %v1110 = vmul.f32 %v1038, %v1097
    %v1111 = vmul.f32 %v1041, %v1099
    %v1112 = vmul.f32 %v1046, %v1101
    %v1113 = vmul.f32 %v1049, %v1103
    %v1114 = vmul.f32 %v1054, %v1105
    %v1115 = vmul.f32 %v1057, %v1107
    %v1116 = vpack.c.bf16 %v1109, %v1108
    %v1117 = vpack.c.bf16 %v1111, %v1110
    %v1118 = vpack.c.bf16 %v1113, %v1112
    %v1119 = vpack.c.bf16 %v1115, %v1114
    %v1120 = vld [vmem:[%s12] sm:$0xf]
    %v1121 = vld [vmem:[%s12 + $0x4] sm:$0xf]
    %v1122 = vld [vmem:[%s13] sm:$0x1]
    %v1124 = vlaneseq
    %v1125 = vshrl.u32 %v1124, 7
    %v1126 = vsub.s32 0, %v1125
    %v1127 = vrot.slane %v1122, %v1126
    %v1131 = vunpack.c.l.b16 %v1120
    %v1132 = vunpack.c.l.b16 %v1121
    %v1133 = vpack.c.b16 %v1132, %v1131
    %v1136 = vsel %vm204, %v1116, 0
    %v1139 = vsel %vm204, %v1117, 0
    %v1142 = vsel %vm204, %v1118, 0
    %v1145 = vsel %vm204, %v1119, 0
    %1147 = vmatprep.subr.bf16.mxu0 0
    %1148 = vmatpush1.bf16.msra.mxu0 0
    %1149 = vmatprep.subr.bf16.mxu0 0
    %1150 = vmatpush1.bf16.msra.mxu0 0
    %1151 = vmatprep.subr.bf16.mxu0 0
    %1152 = vmatpush1.bf16.msra.mxu0 0
    %1153 = vmatprep.subr.bf16.mxu0 0
    %1154 = vmatpush1.bf16.msra.mxu0 0
    %1155 = vmatprep.subr.bf16.mxu0 0
    %1156 = vmatpush1.bf16.msra.mxu0 0
    %1157 = vmatprep.subr.bf16.mxu0 0
    %1158 = vmatpush1.bf16.msra.mxu0 0
    %1159 = vmatprep.subr.bf16.mxu0 0
    %1160 = vmatpush1.bf16.msra.mxu0 0
    %1161 = vmatprep.subr.bf16.mxu0 0
    %1162 = vmatpush1.bf16.msra.mxu0 %v1133
    %1163 = vmatprep.subr.bf16.mxu0 0
    %1164 = vmatpush2.bf16.msra.mxu0 0
    %1165 = vmatprep.subr.bf16.mxu0 0
    %1166 = vmatpush2.bf16.msra.mxu0 0
    %1167 = vmatprep.subr.bf16.mxu0 0
    %1168 = vmatpush2.bf16.msra.mxu0 0
    %1169 = vmatprep.subr.bf16.mxu0 0
    %1170 = vmatpush2.bf16.msra.mxu0 0
    %1171 = vmatprep.subr.bf16.mxu0 0
    %1172 = vmatpush2.bf16.msra.mxu0 0
    %1173 = vmatprep.subr.bf16.mxu0 0
    %1174 = vmatpush2.bf16.msra.mxu0 0
    %1175 = vmatprep.subr.bf16.mxu0 0
    %1176 = vmatpush2.bf16.msra.mxu0 0
    %1177 = vmatprep.subr.bf16.mxu0 0
    %1178 = vmatpush2.bf16.msra.mxu0 0
    %1179 = vmatprep.mubr.bf16.mxu0 0
    %1180 = vmatmul.mubr.bf16.gmra.mxu0 %v1136
    %v1181 = vpop.f32.mrf.mxu0
    %v1182 = vadd.f32 %v1127, %v1181
    %v1183 = vpop.f32.mrf.mxu0
    %v1184 = vpop.f32.mrf.mxu0
    %v1185 = vadd.f32 %v1127, %v1184
    %v1186 = vpop.f32.mrf.mxu0
    %1187 = vmatprep.mubr.bf16.mxu0 0
    %1188 = vmatmul.mubr.bf16.gmra.mxu0 %v1139
    %v1189 = vpop.f32.mrf.mxu0
    %v1190 = vadd.f32 %v1127, %v1189
    %v1191 = vpop.f32.mrf.mxu0
    %v1192 = vpop.f32.mrf.mxu0
    %v1193 = vadd.f32 %v1127, %v1192
    %v1194 = vpop.f32.mrf.mxu0
    %1195 = vmatprep.mubr.bf16.mxu0 0
    %1196 = vmatmul.mubr.bf16.gmra.mxu0 %v1142
    %v1197 = vpop.f32.mrf.mxu0
    %v1198 = vadd.f32 %v1127, %v1197
    %v1199 = vpop.f32.mrf.mxu0
    %v1200 = vpop.f32.mrf.mxu0
    %v1201 = vadd.f32 %v1127, %v1200
    %v1202 = vpop.f32.mrf.mxu0
    %1203 = vmatprep.mubr.bf16.mxu0 0
    %1204 = vmatmul.mubr.bf16.gmra.mxu0 %v1145
    %v1205 = vpop.f32.mrf.mxu0
    %v1206 = vadd.f32 %v1127, %v1205
    %v1207 = vpop.f32.mrf.mxu0
    %v1208 = vpop.f32.mrf.mxu0
    %v1209 = vadd.f32 %v1127, %v1208
    %v1210 = vpop.f32.mrf.mxu0
    %1211 = vdwg.mxu0
    %v1212 = vxor.u32 %v1182, 2147483648
    %v1213 = vxor.u32 %v1185, 2147483648
    %v1214 = vxor.u32 %v1190, 2147483648
    %v1215 = vxor.u32 %v1193, 2147483648
    %v1216 = vxor.u32 %v1198, 2147483648
    %v1217 = vxor.u32 %v1201, 2147483648
    %v1218 = vxor.u32 %v1206, 2147483648
    %v1219 = vxor.u32 %v1209, 2147483648
    %v1220 = vmul.f32 %v1212, 1.442695
    %v1221 = vpow.pop %v1220
    %v1222 = vmul.f32 %v1213, 1.442695
    %v1223 = vpow.pop %v1222
    %v1224 = vmul.f32 %v1214, 1.442695
    %v1225 = vpow.pop %v1224
    %v1226 = vmul.f32 %v1215, 1.442695
    %v1227 = vpow.pop %v1226
    %v1228 = vmul.f32 %v1216, 1.442695
    %v1229 = vpow.pop %v1228
    %v1230 = vmul.f32 %v1217, 1.442695
    %v1231 = vpow.pop %v1230
    %v1232 = vmul.f32 %v1218, 1.442695
    %v1233 = vpow.pop %v1232
    %v1234 = vmul.f32 %v1219, 1.442695
    %v1235 = vpow.pop %v1234
    %v1236 = vadd.f32 %v1221, 1.0
    %v1237 = vadd.f32 %v1223, 1.0
    %v1238 = vadd.f32 %v1225, 1.0
    %v1239 = vadd.f32 %v1227, 1.0
    %v1240 = vadd.f32 %v1229, 1.0
    %v1241 = vadd.f32 %v1231, 1.0
    %v1242 = vadd.f32 %v1233, 1.0
    %v1243 = vadd.f32 %v1235, 1.0
    %v1244 = vrcp.pop %v1236
    %v1245 = vmul.f32 1.0, %v1244
    %v1246 = vrcp.pop %v1237
    %v1247 = vmul.f32 1.0, %v1246
    %v1248 = vrcp.pop %v1238
    %v1249 = vmul.f32 1.0, %v1248
    %v1250 = vrcp.pop %v1239
    %v1251 = vmul.f32 1.0, %v1250
    %v1252 = vrcp.pop %v1240
    %v1253 = vmul.f32 1.0, %v1252
    %v1254 = vrcp.pop %v1241
    %v1255 = vmul.f32 1.0, %v1254
    %v1256 = vrcp.pop %v1242
    %v1257 = vmul.f32 1.0, %v1256
    %v1258 = vrcp.pop %v1243
    %v1259 = vmul.f32 1.0, %v1258
    %v1260 = vmul.f32 %v1182, %v1245
    %v1261 = vmul.f32 %v1185, %v1247
    %v1262 = vmul.f32 %v1190, %v1249
    %v1263 = vmul.f32 %v1193, %v1251
    %v1264 = vmul.f32 %v1198, %v1253
    %v1265 = vmul.f32 %v1201, %v1255
    %v1266 = vmul.f32 %v1206, %v1257
    %v1267 = vmul.f32 %v1209, %v1259
    %v1268 = vpack.c.bf16 %v1261, %v1260
    %v1269 = vpack.c.bf16 %v1263, %v1262
    %v1270 = vpack.c.bf16 %v1265, %v1264
    %v1271 = vpack.c.bf16 %v1267, %v1266
    %v1272 = vld [vmem:[%s14] sm:$0xf]
    %v1273 = vld [vmem:[%s14 + $0x4] sm:$0xf]
    %v1274 = vld [vmem:[%s14 + $0x8] sm:$0xf]
    %v1275 = vld [vmem:[%s14 + $0xc] sm:$0xf]
    %v1276 = vld [vmem:[%s14 + $0x10] sm:$0xf]
    %v1277 = vld [vmem:[%s14 + $0x14] sm:$0xf]
    %v1278 = vld [vmem:[%s14 + $0x18] sm:$0xf]
    %v1279 = vld [vmem:[%s14 + $0x1c] sm:$0xf]
    %v1280 = vld [vmem:[#allocation4] sm:$0x1]
    %v1282 = vlaneseq
    %v1283 = vshrl.u32 %v1282, 7
    %v1284 = vsub.s32 0, %v1283
    %v1285 = vrot.slane %v1280, %v1284
    %v1295 = vunpack.c.l.b16 %v1272
    %v1296 = vunpack.c.l.b16 %v1273
    %v1297 = vunpack.c.l.b16 %v1274
    %v1298 = vunpack.c.l.b16 %v1275
    %v1299 = vunpack.c.l.b16 %v1276
    %v1300 = vunpack.c.l.b16 %v1277
    %v1301 = vunpack.c.l.b16 %v1278
    %v1302 = vunpack.c.l.b16 %v1279
    %v1303 = vpack.c.b16 %v1296, %v1295
    %v1304 = vpack.c.b16 %v1298, %v1297
    %v1305 = vpack.c.b16 %v1300, %v1299
    %v1306 = vpack.c.b16 %v1302, %v1301
    %vm1311 = vcmask 523264
    %v1313 = vsel %vm1311, %v1268, 0
    %v1316 = vsel %vm1311, %v1269, 0
    %v1319 = vsel %vm1311, %v1270, 0
    %v1322 = vsel %vm1311, %v1271, 0
    %1324 = vmatprep.subr.bf16.mxu0 0
    %1325 = vmatpush1.bf16.msra.mxu0 0
    %1326 = vmatprep.subr.bf16.mxu0 0
    %1327 = vmatpush1.bf16.msra.mxu0 0
    %1328 = vmatprep.subr.bf16.mxu0 0
    %1329 = vmatpush1.bf16.msra.mxu0 0
    %1330 = vmatprep.subr.bf16.mxu0 0
    %1331 = vmatpush1.bf16.msra.mxu0 0
    %1332 = vmatprep.subr.bf16.mxu0 0
    %1333 = vmatpush1.bf16.msra.mxu0 %v1306
    %1334 = vmatprep.subr.bf16.mxu0 0
    %1335 = vmatpush1.bf16.msra.mxu0 %v1305
    %1336 = vmatprep.subr.bf16.mxu0 0
    %1337 = vmatpush1.bf16.msra.mxu0 %v1304
    %1338 = vmatprep.subr.bf16.mxu0 0
    %1339 = vmatpush1.bf16.msra.mxu0 %v1303
    %1340 = vmatprep.subr.bf16.mxu0 0
    %1341 = vmatpush2.bf16.msra.mxu0 0
    %1342 = vmatprep.subr.bf16.mxu0 0
    %1343 = vmatpush2.bf16.msra.mxu0 0
    %1344 = vmatprep.subr.bf16.mxu0 0
    %1345 = vmatpush2.bf16.msra.mxu0 0
    %1346 = vmatprep.subr.bf16.mxu0 0
    %1347 = vmatpush2.bf16.msra.mxu0 0
    %1348 = vmatprep.subr.bf16.mxu0 0
    %1349 = vmatpush2.bf16.msra.mxu0 0
    %1350 = vmatprep.subr.bf16.mxu0 0
    %1351 = vmatpush2.bf16.msra.mxu0 0
    %1352 = vmatprep.subr.bf16.mxu0 0
    %1353 = vmatpush2.bf16.msra.mxu0 0
    %1354 = vmatprep.subr.bf16.mxu0 0
    %1355 = vmatpush2.bf16.msra.mxu0 0
    %1356 = vmatprep.mubr.bf16.mxu0 0
    %1357 = vmatmul.mubr.bf16.gmra.mxu0 %v1313
    %v1358 = vpop.f32.mrf.mxu0
    %v1359 = vadd.f32 %v1285, %v1358
    %v1360 = vpop.f32.mrf.mxu0
    %v1361 = vpop.f32.mrf.mxu0
    %v1362 = vadd.f32 %v1285, %v1361
    %v1363 = vpop.f32.mrf.mxu0
    %1364 = vmatprep.mubr.bf16.mxu0 0
    %1365 = vmatmul.mubr.bf16.gmra.mxu0 %v1316
    %v1366 = vpop.f32.mrf.mxu0
    %v1367 = vadd.f32 %v1285, %v1366
    %v1368 = vpop.f32.mrf.mxu0
    %v1369 = vpop.f32.mrf.mxu0
    %v1370 = vadd.f32 %v1285, %v1369
    %v1371 = vpop.f32.mrf.mxu0
    %1372 = vmatprep.mubr.bf16.mxu0 0
    %1373 = vmatmul.mubr.bf16.gmra.mxu0 %v1319
    %v1374 = vpop.f32.mrf.mxu0
    %v1375 = vadd.f32 %v1285, %v1374
    %v1376 = vpop.f32.mrf.mxu0
    %v1377 = vpop.f32.mrf.mxu0
    %v1378 = vadd.f32 %v1285, %v1377
    %v1379 = vpop.f32.mrf.mxu0
    %1380 = vmatprep.mubr.bf16.mxu0 0
    %1381 = vmatmul.mubr.bf16.gmra.mxu0 %v1322
    %v1382 = vpop.f32.mrf.mxu0
    %v1383 = vadd.f32 %v1285, %v1382
    %v1384 = vpop.f32.mrf.mxu0
    %v1385 = vpop.f32.mrf.mxu0
    %v1386 = vadd.f32 %v1285, %v1385
    %v1387 = vpop.f32.mrf.mxu0
    %1388 = vdwg.mxu0
    %1390 = vset.pattern.permute.xlu0 0
    %1391 = vperm.xlu0 %1390, %v1359
    %v1392 = vpop.permute.xlu0 %1391
    %1395 = vset.pattern.permute.xlu0 0
    %1396 = vperm.xlu0 %1395, %v1362
    %v1397 = vpop.permute.xlu0 %1396
    %1400 = vset.pattern.permute.xlu0 0
    %1401 = vperm.xlu0 %1400, %v1367
    %v1402 = vpop.permute.xlu0 %1401
    %1405 = vset.pattern.permute.xlu0 0
    %1406 = vperm.xlu0 %1405, %v1370
    %v1407 = vpop.permute.xlu0 %1406
    %1410 = vset.pattern.permute.xlu0 0
    %1411 = vperm.xlu0 %1410, %v1375
    %v1412 = vpop.permute.xlu0 %1411
    %1415 = vset.pattern.permute.xlu0 0
    %1416 = vperm.xlu0 %1415, %v1378
    %v1417 = vpop.permute.xlu0 %1416
    %1420 = vset.pattern.permute.xlu0 0
    %1421 = vperm.xlu0 %1420, %v1383
    %v1422 = vpop.permute.xlu0 %1421
    %1425 = vset.pattern.permute.xlu0 0
    %1426 = vperm.xlu0 %1425, %v1386
    %v1427 = vpop.permute.xlu0 %1426
    %v1429 = vmul.f32 %v1392, %v296
    %v1430 = vmul.f32 %v1397, %v301
    %v1431 = vmul.f32 %v1402, %v306
    %v1432 = vmul.f32 %v1407, %v311
    %v1433 = vmul.f32 %v1412, %v316
    %v1434 = vmul.f32 %v1417, %v321
    %v1435 = vmul.f32 %v1422, %v326
    %v1436 = vmul.f32 %v1427, %v331
    %v1437 = vld [vmem:[#allocation2] sm:$0xff]
    %v1438 = vld [vmem:[#allocation2 + $0x8] sm:$0xff]
    %1439 = vxpose.xlu0.b32.start [1/16] %v178, 128
    %1440 = vxpose.xlu0.b32.cont [2/16] %v179, 128
    %1441 = vxpose.xlu0.b32.cont [3/16] %v180, 128
    %1442 = vxpose.xlu0.b32.cont [4/16] %v181, 128
    %1443 = vxpose.xlu0.b32.cont [5/16] %v182, 128
    %1444 = vxpose.xlu0.b32.cont [6/16] %v183, 128
    %1445 = vxpose.xlu0.b32.cont [7/16] %v184, 128
    %1446 = vxpose.xlu0.b32.cont [8/16] %v185, 128
    %1447 = vxpose.xlu0.b32.cont [9/16] 0.0, 128
    %1448 = vxpose.xlu0.b32.cont [10/16] 0.0, 128
    %1449 = vxpose.xlu0.b32.cont [11/16] 0.0, 128
    %1450 = vxpose.xlu0.b32.cont [12/16] 0.0, 128
    %1451 = vxpose.xlu0.b32.cont [13/16] 0.0, 128
    %1452 = vxpose.xlu0.b32.cont [14/16] 0.0, 128
    %1453 = vxpose.xlu0.b32.cont [15/16] 0.0, 128
    %1454 = vxpose.xlu0.b32.end [16/16] 0.0, 128
    %v1455 = vpop.trf.xlu0
    %v1456 = vpop.trf.xlu0
    %v1457 = vpop.trf.xlu0
    %v1458 = vpop.trf.xlu0
    %v1459 = vpop.trf.xlu0
    %v1460 = vpop.trf.xlu0
    %v1461 = vpop.trf.xlu0
    %v1462 = vpop.trf.xlu0
    %v1463 = vpop.trf.xlu0
    %v1464 = vpop.trf.xlu0
    %v1465 = vpop.trf.xlu0
    %v1466 = vpop.trf.xlu0
    %v1467 = vpop.trf.xlu0
    %v1468 = vpop.trf.xlu0
    %v1469 = vpop.trf.xlu0
    %v1470 = vpop.trf.xlu0
    %v1472 = vsel %vm1311, %v1455, 0
    %v1475 = vsel %vm1311, %v1456, 0
    %1477 = vmatprep.subr.mxu0 0.0
    %1478 = vmatpush1.msra.mxu0 0.0
    %1479 = vmatprep.subr.mxu0 0.0
    %1480 = vmatpush1.msra.mxu0 0.0
    %1481 = vmatprep.subr.mxu0 0.0
    %1482 = vmatpush1.msra.mxu0 0.0
    %1483 = vmatprep.subr.mxu0 0.0
    %1484 = vmatpush1.msra.mxu0 0.0
    %1485 = vmatprep.subr.mxu0 0.0
    %1486 = vmatpush1.msra.mxu0 0.0
    %1487 = vmatprep.subr.mxu0 0.0
    %1488 = vmatpush1.msra.mxu0 0.0
    %1489 = vmatprep.subr.mxu0 0.0
    %1490 = vmatpush1.msra.mxu0 0.0
    %1491 = vmatprep.subr.mxu0 0.0
    %1492 = vmatpush1.msra.mxu0 0.0
    %1493 = vmatprep.subr.mxu0 0.0
    %1494 = vmatpush1.msra.mxu0 %v1115
    %1495 = vmatprep.subr.mxu0 0.0
    %1496 = vmatpush1.msra.mxu0 %v1114
    %1497 = vmatprep.subr.mxu0 0.0
    %1498 = vmatpush1.msra.mxu0 %v1113
    %1499 = vmatprep.subr.mxu0 0.0
    %1500 = vmatpush1.msra.mxu0 %v1112
    %1501 = vmatprep.subr.mxu0 0.0
    %1502 = vmatpush1.msra.mxu0 %v1111
    %1503 = vmatprep.subr.mxu0 0.0
    %1504 = vmatpush1.msra.mxu0 %v1110
    %1505 = vmatprep.subr.mxu0 0.0
    %1506 = vmatpush1.msra.mxu0 %v1109
    %1507 = vmatprep.subr.mxu0 0.0
    %1508 = vmatpush1.msra.mxu0 %v1108
    %1509 = vmatprep.subr.mxu0 0.0
    %1510 = vmatpush2.msra.mxu0 0.0
    %1511 = vmatprep.subr.mxu0 0.0
    %1512 = vmatpush2.msra.mxu0 0.0
    %1513 = vmatprep.subr.mxu0 0.0
    %1514 = vmatpush2.msra.mxu0 0.0
    %1515 = vmatprep.subr.mxu0 0.0
    %1516 = vmatpush2.msra.mxu0 0.0
    %1517 = vmatprep.subr.mxu0 0.0
    %1518 = vmatpush2.msra.mxu0 0.0
    %1519 = vmatprep.subr.mxu0 0.0
    %1520 = vmatpush2.msra.mxu0 0.0
    %1521 = vmatprep.subr.mxu0 0.0
    %1522 = vmatpush2.msra.mxu0 0.0
    %1523 = vmatprep.subr.mxu0 0.0
    %1524 = vmatpush2.msra.mxu0 0.0
    %1525 = vmatprep.subr.mxu0 0.0
    %1526 = vmatpush2.msra.mxu0 0.0
    %1527 = vmatprep.subr.mxu0 0.0
    %1528 = vmatpush2.msra.mxu0 0.0
    %1529 = vmatprep.subr.mxu0 0.0
    %1530 = vmatpush2.msra.mxu0 0.0
    %1531 = vmatprep.subr.mxu0 0.0
    %1532 = vmatpush2.msra.mxu0 0.0
    %1533 = vmatprep.subr.mxu0 0.0
    %1534 = vmatpush2.msra.mxu0 0.0
    %1535 = vmatprep.subr.mxu0 0.0
    %1536 = vmatpush2.msra.mxu0 0.0
    %1537 = vmatprep.subr.mxu0 0.0
    %1538 = vmatpush2.msra.mxu0 0.0
    %1539 = vmatprep.subr.mxu0 0.0
    %1540 = vmatpush2.msra.mxu0 0.0
    %1541 = vmatprep.mubr.f32.mxu0 0.0
    %1542 = vmatmul.mubr.f32.gmra.mxu0 %v1472
    %v1543 = vpop.f32.mrf.mxu0
    %v1544 = vadd.f32 0.0, %v1543
    %v1545 = vpop.f32.mrf.mxu0
    %1546 = vmatprep.mubr.f32.mxu0 0.0
    %1547 = vmatmul.mubr.f32.gmra.mxu0 %v1475
    %v1548 = vpop.f32.mrf.mxu0
    %v1549 = vadd.f32 0.0, %v1548
    %v1550 = vpop.f32.mrf.mxu0
    %1551 = vdwg.mxu0
    %v1552 = vadd.f32 %v1437, %v1544
    %v1553 = vadd.f32 %v1438, %v1549
    %1554 = vst.msk [vmem:[#allocation2] sm:$0xff] %vm204, %v1552
    %1555 = vst.msk [vmem:[#allocation2 + $0x8] sm:$0xff] %vm204, %v1553
    %v1556 = vld [vmem:[#allocation3] sm:$0xff]
    %v1557 = vld [vmem:[#allocation3 + $0x8] sm:$0xff]
    %1558 = vmatprep.subr.mxu0 0.0
    %1559 = vmatpush1.msra.mxu0 0.0
    %1560 = vmatprep.subr.mxu0 0.0
    %1561 = vmatpush1.msra.mxu0 0.0
    %1562 = vmatprep.subr.mxu0 0.0
    %1563 = vmatpush1.msra.mxu0 0.0
    %1564 = vmatprep.subr.mxu0 0.0
    %1565 = vmatpush1.msra.mxu0 0.0
    %1566 = vmatprep.subr.mxu0 0.0
    %1567 = vmatpush1.msra.mxu0 0.0
    %1568 = vmatprep.subr.mxu0 0.0
    %1569 = vmatpush1.msra.mxu0 0.0
    %1570 = vmatprep.subr.mxu0 0.0
    %1571 = vmatpush1.msra.mxu0 0.0
    %1572 = vmatprep.subr.mxu0 0.0
    %1573 = vmatpush1.msra.mxu0 0.0
    %1574 = vmatprep.subr.mxu0 0.0
    %1575 = vmatpush1.msra.mxu0 %v1436
    %1576 = vmatprep.subr.mxu0 0.0
    %1577 = vmatpush1.msra.mxu0 %v1435
    %1578 = vmatprep.subr.mxu0 0.0
    %1579 = vmatpush1.msra.mxu0 %v1434
    %1580 = vmatprep.subr.mxu0 0.0
    %1581 = vmatpush1.msra.mxu0 %v1433
    %1582 = vmatprep.subr.mxu0 0.0
    %1583 = vmatpush1.msra.mxu0 %v1432
    %1584 = vmatprep.subr.mxu0 0.0
    %1585 = vmatpush1.msra.mxu0 %v1431
    %1586 = vmatprep.subr.mxu0 0.0
    %1587 = vmatpush1.msra.mxu0 %v1430
    %1588 = vmatprep.subr.mxu0 0.0
    %1589 = vmatpush1.msra.mxu0 %v1429
    %1590 = vmatprep.subr.mxu0 0.0
    %1591 = vmatpush2.msra.mxu0 0.0
    %1592 = vmatprep.subr.mxu0 0.0
    %1593 = vmatpush2.msra.mxu0 0.0
    %1594 = vmatprep.subr.mxu0 0.0
    %1595 = vmatpush2.msra.mxu0 0.0
    %1596 = vmatprep.subr.mxu0 0.0
    %1597 = vmatpush2.msra.mxu0 0.0
    %1598 = vmatprep.subr.mxu0 0.0
    %1599 = vmatpush2.msra.mxu0 0.0
    %1600 = vmatprep.subr.mxu0 0.0
    %1601 = vmatpush2.msra.mxu0 0.0
    %1602 = vmatprep.subr.mxu0 0.0
    %1603 = vmatpush2.msra.mxu0 0.0
    %1604 = vmatprep.subr.mxu0 0.0
    %1605 = vmatpush2.msra.mxu0 0.0
    %1606 = vmatprep.subr.mxu0 0.0
    %1607 = vmatpush2.msra.mxu0 0.0
    %1608 = vmatprep.subr.mxu0 0.0
    %1609 = vmatpush2.msra.mxu0 0.0
    %1610 = vmatprep.subr.mxu0 0.0
    %1611 = vmatpush2.msra.mxu0 0.0
    %1612 = vmatprep.subr.mxu0 0.0
    %1613 = vmatpush2.msra.mxu0 0.0
    %1614 = vmatprep.subr.mxu0 0.0
    %1615 = vmatpush2.msra.mxu0 0.0
    %1616 = vmatprep.subr.mxu0 0.0
    %1617 = vmatpush2.msra.mxu0 0.0
    %1618 = vmatprep.subr.mxu0 0.0
    %1619 = vmatpush2.msra.mxu0 0.0
    %1620 = vmatprep.subr.mxu0 0.0
    %1621 = vmatpush2.msra.mxu0 0.0
    %1622 = vmatprep.mubr.f32.mxu0 0.0
    %1623 = vmatmul.mubr.f32.gmra.mxu0 %v1472
    %v1624 = vpop.f32.mrf.mxu0
    %v1625 = vadd.f32 0.0, %v1624
    %v1626 = vpop.f32.mrf.mxu0
    %1627 = vmatprep.mubr.f32.mxu0 0.0
    %1628 = vmatmul.mubr.f32.gmra.mxu0 %v1475
    %v1629 = vpop.f32.mrf.mxu0
    %v1630 = vadd.f32 0.0, %v1629
    %v1631 = vpop.f32.mrf.mxu0
    %1632 = vdwg.mxu0
    %v1633 = vadd.f32 %v1556, %v1625
    %v1634 = vadd.f32 %v1557, %v1630
    %1635 = vst.msk [vmem:[#allocation3] sm:$0xff] %vm342, %v1633
    %1636 = vst.msk [vmem:[#allocation3 + $0x8] sm:$0xff] %vm342, %v1634
    // Predicated region
    $region98: #{egnn_sparse_network_forward.3} parent=1 // pred_check
      %p1637 = pneg %p78
    $region99: #{egnn_sparse_network_forward.3} parent=1 // pred_check_branch
      %1639 = sbr.rel (%p1637) target = $region101
    $region100: #{egnn_sparse_network_forward.3} parent=1 // pred_region
      %v1640 = vld [vmem:[%s3] sm:$0xff]
      %v1641 = vld [vmem:[%s3 + $0x8] sm:$0xff]
      %v1642 = vld [vmem:[%s4] sm:$0xff]
      %v1643 = vld [vmem:[%s4 + $0x8] sm:$0xff]
      %v1644 = vld [vmem:[#allocation3] sm:$0xff]
      %v1645 = vld [vmem:[#allocation3 + $0x8] sm:$0xff]
      %v1646 = vadd.f32 %v1642, %v1644
      %v1647 = vadd.f32 %v1643, %v1645
      %1648 = vst.msk [vmem:[#allocation5] sm:$0xff] %vm342, %v1646
      %1649 = vst.msk [vmem:[#allocation5 + $0x8] sm:$0xff] %vm342, %v1647
      %vm1650 = vcmask 261120
      %v1651 = vsel %vm1650, %v1640, 0.0
      %1652 = vadd.xlane.f32.xlu0 %v1651
      %v1653 = vpop.xlane.xlu0 %1652
      %v1654 = vsel %vm1650, %v1641, 0.0
      %1655 = vadd.xlane.f32.xlu0 %v1654
      %v1656 = vpop.xlane.xlu0 %1655
      %v1657 = vrcp.pop 32.0
      %v1658 = vmul.f32 %v1653, %v1657
      %v1659 = vmul.f32 %v1656, %v1657
      %v1660 = vsub.f32 %v1640, %v1658
      %v1661 = vsub.f32 %v1641, %v1659
      %v1662 = vmul.f32 %v1660, %v1660
      %v1663 = vmul.f32 %v1661, %v1661
      %v1664 = vsel %vm1650, %v1662, 0.0
      %1665 = vadd.xlane.f32.xlu0 %v1664
      %v1666 = vpop.xlane.xlu0 %1665
      %v1667 = vsel %vm1650, %v1663, 0.0
      %1668 = vadd.xlane.f32.xlu0 %v1667
      %v1669 = vpop.xlane.xlu0 %1668
      %v1670 = vmul.f32 %v1666, %v1657
      %v1671 = vmul.f32 %v1669, %v1657
      %v1672 = vadd.f32 %v1670, 1e-05
      %v1673 = vadd.f32 %v1671, 1e-05
      %v1674 = vrsqrt.pop %v1672
      %v1675 = vrsqrt.pop %v1673
      %v1676 = vmul.f32 %v1660, %v1674
      %v1677 = vmul.f32 %v1661, %v1675
      %v1678 = vld [vmem:[%s16] sm:$0x1]
      %v1680 = vlaneseq
      %v1681 = vshrl.u32 %v1680, 7
      %v1682 = vsub.s32 0, %v1681
      %v1683 = vrot.slane %v1678, %v1682
      %v1685 = vmul.f32 %v1676, %v1683
      %v1686 = vmul.f32 %v1677, %v1683
      %v1687 = vld [vmem:[%s17] sm:$0x1]
      %v1689 = vlaneseq
      %v1690 = vshrl.u32 %v1689, 7
      %v1691 = vsub.s32 0, %v1690
      %v1692 = vrot.slane %v1687, %v1691
      %v1694 = vadd.f32 %v1685, %v1692
      %v1695 = vadd.f32 %v1686, %v1692
      %v1696 = vpack.c.bf16 %v1695, %v1694
      %v1697 = vld [vmem:[%s18] sm:$0xf]
      %v1698 = vld [vmem:[%s18 + $0x4] sm:$0xf]
      %v1699 = vld [vmem:[%s18 + $0x8] sm:$0xf]
      %v1700 = vld [vmem:[%s18 + $0xc] sm:$0xf]
      %v1701 = vld [vmem:[#allocation2] sm:$0xff]
      %v1702 = vld [vmem:[#allocation2 + $0x8] sm:$0xff]
      %v1703 = vpack.c.bf16 %v1702, %v1701
      %v1704 = vld [vmem:[%s19] sm:$0xf]
      %v1705 = vld [vmem:[%s19 + $0x4] sm:$0xf]
      %v1708 = vunpack.c.l.b16 %v1704
      %v1709 = vunpack.c.l.b16 %v1705
      %v1710 = vpack.c.b16 %v1709, %v1708
      %v1713 = vsel %vm204, %v1703, 0
      %1715 = vmatprep.subr.bf16.mxu0 0
      %1716 = vmatpush1.bf16.msra.mxu0 0
      %1717 = vmatprep.subr.bf16.mxu0 0
      %1718 = vmatpush1.bf16.msra.mxu0 0
      %1719 = vmatprep.subr.bf16.mxu0 0
      %1720 = vmatpush1.bf16.msra.mxu0 0
      %1721 = vmatprep.subr.bf16.mxu0 0
      %1722 = vmatpush1.bf16.msra.mxu0 0
      %1723 = vmatprep.subr.bf16.mxu0 0
      %1724 = vmatpush1.bf16.msra.mxu0 0
      %1725 = vmatprep.subr.bf16.mxu0 0
      %1726 = vmatpush1.bf16.msra.mxu0 0
      %1727 = vmatprep.subr.bf16.mxu0 0
      %1728 = vmatpush1.bf16.msra.mxu0 0
      %1729 = vmatprep.subr.bf16.mxu0 0
      %1730 = vmatpush1.bf16.msra.mxu0 %v1710
      %1731 = vmatprep.subr.bf16.mxu0 0
      %1732 = vmatpush2.bf16.msra.mxu0 0
      %1733 = vmatprep.subr.bf16.mxu0 0
      %1734 = vmatpush2.bf16.msra.mxu0 0
      %1735 = vmatprep.subr.bf16.mxu0 0
      %1736 = vmatpush2.bf16.msra.mxu0 0
      %1737 = vmatprep.subr.bf16.mxu0 0
      %1738 = vmatpush2.bf16.msra.mxu0 0
      %1739 = vmatprep.subr.bf16.mxu0 0
      %1740 = vmatpush2.bf16.msra.mxu0 0
      %1741 = vmatprep.subr.bf16.mxu0 0
      %1742 = vmatpush2.bf16.msra.mxu0 0
      %1743 = vmatprep.subr.bf16.mxu0 0
      %1744 = vmatpush2.bf16.msra.mxu0 0
      %1745 = vmatprep.subr.bf16.mxu0 0
      %1746 = vmatpush2.bf16.msra.mxu0 0
      %1747 = vmatprep.mubr.bf16.mxu0 0
      %1748 = vmatmul.mubr.bf16.gmra.mxu0 %v1713
      %v1749 = vpop.f32.mrf.mxu0
      %v1750 = vadd.f32 0.0, %v1749
      %v1751 = vpop.f32.mrf.mxu0
      %v1752 = vpop.f32.mrf.mxu0
      %v1753 = vadd.f32 0.0, %v1752
      %v1754 = vpop.f32.mrf.mxu0
      %1755 = vdwg.mxu0
      %v1760 = vunpack.c.l.b16 %v1697
      %v1761 = vunpack.c.l.b16 %v1698
      %v1762 = vunpack.c.l.b16 %v1699
      %v1763 = vunpack.c.l.b16 %v1700
      %v1764 = vpack.c.b16 %v1761, %v1760
      %v1765 = vpack.c.b16 %v1763, %v1762
      %v1769 = vsel %vm1650, %v1696, 0
      %1771 = vmatprep.subr.bf16.mxu0 0
      %1772 = vmatpush1.bf16.msra.mxu0 0
      %1773 = vmatprep.subr.bf16.mxu0 0
      %1774 = vmatpush1.bf16.msra.mxu0 0
      %1775 = vmatprep.subr.bf16.mxu0 0
      %1776 = vmatpush1.bf16.msra.mxu0 0
      %1777 = vmatprep.subr.bf16.mxu0 0
      %1778 = vmatpush1.bf16.msra.mxu0 0
      %1779 = vmatprep.subr.bf16.mxu0 0
      %1780 = vmatpush1.bf16.msra.mxu0 0
      %1781 = vmatprep.subr.bf16.mxu0 0
      %1782 = vmatpush1.bf16.msra.mxu0 0
      %1783 = vmatprep.subr.bf16.mxu0 0
      %1784 = vmatpush1.bf16.msra.mxu0 %v1765
      %1785 = vmatprep.subr.bf16.mxu0 0
      %1786 = vmatpush1.bf16.msra.mxu0 %v1764
      %1787 = vmatprep.subr.bf16.mxu0 0
      %1788 = vmatpush2.bf16.msra.mxu0 0
      %1789 = vmatprep.subr.bf16.mxu0 0
      %1790 = vmatpush2.bf16.msra.mxu0 0
      %1791 = vmatprep.subr.bf16.mxu0 0
      %1792 = vmatpush2.bf16.msra.mxu0 0
      %1793 = vmatprep.subr.bf16.mxu0 0
      %1794 = vmatpush2.bf16.msra.mxu0 0
      %1795 = vmatprep.subr.bf16.mxu0 0
      %1796 = vmatpush2.bf16.msra.mxu0 0
      %1797 = vmatprep.subr.bf16.mxu0 0
      %1798 = vmatpush2.bf16.msra.mxu0 0
      %1799 = vmatprep.subr.bf16.mxu0 0
      %1800 = vmatpush2.bf16.msra.mxu0 0
      %1801 = vmatprep.subr.bf16.mxu0 0
      %1802 = vmatpush2.bf16.msra.mxu0 0
      %1803 = vmatprep.mubr.bf16.mxu0 0
      %1804 = vmatmul.mubr.bf16.gmra.mxu0 %v1769
      %v1805 = vpop.f32.mrf.mxu0
      %v1806 = vadd.f32 %v1750, %v1805
      %v1807 = vpop.f32.mrf.mxu0
      %v1808 = vpop.f32.mrf.mxu0
      %v1809 = vadd.f32 %v1753, %v1808
      %v1810 = vpop.f32.mrf.mxu0
      %1811 = vdwg.mxu0
      %v1812 = vld [vmem:[%s20] sm:$0x1]
      %v1814 = vlaneseq
      %v1815 = vshrl.u32 %v1814, 7
      %v1816 = vsub.s32 0, %v1815
      %v1817 = vrot.slane %v1812, %v1816
      %v1819 = vadd.f32 %v1806, %v1817
      %v1820 = vadd.f32 %v1809, %v1817
      %v1821 = vxor.u32 %v1819, 2147483648
      %v1822 = vxor.u32 %v1820, 2147483648
      %v1823 = vmul.f32 %v1821, 1.442695
      %v1824 = vpow.pop %v1823
      %v1825 = vmul.f32 %v1822, 1.442695
      %v1826 = vpow.pop %v1825
      %v1827 = vadd.f32 %v1824, 1.0
      %v1828 = vadd.f32 %v1826, 1.0
      %v1829 = vrcp.pop %v1827
      %v1830 = vmul.f32 1.0, %v1829
      %v1831 = vrcp.pop %v1828
      %v1832 = vmul.f32 1.0, %v1831
      %v1833 = vmul.f32 %v1819, %v1830
      %v1834 = vmul.f32 %v1820, %v1832
      %v1835 = vpack.c.bf16 %v1834, %v1833
      %v1836 = vld [vmem:[%s21] sm:$0xf]
      %v1837 = vld [vmem:[%s21 + $0x4] sm:$0xf]
      %v1838 = vld [vmem:[%s21 + $0x8] sm:$0xf]
      %v1839 = vld [vmem:[%s21 + $0xc] sm:$0xf]
      %v1840 = vld [vmem:[%s21 + $0x10] sm:$0xf]
      %v1841 = vld [vmem:[%s21 + $0x14] sm:$0xf]
      %v1842 = vld [vmem:[%s21 + $0x18] sm:$0xf]
      %v1843 = vld [vmem:[%s21 + $0x1c] sm:$0xf]
      %v1844 = vld [vmem:[%s22] sm:$0x1]
      %v1846 = vlaneseq
      %v1847 = vshrl.u32 %v1846, 7
      %v1848 = vsub.s32 0, %v1847
      %v1849 = vrot.slane %v1844, %v1848
      %v1859 = vunpack.c.l.b16 %v1836
      %v1860 = vunpack.c.l.b16 %v1837
      %v1861 = vunpack.c.l.b16 %v1838
      %v1862 = vunpack.c.l.b16 %v1839
      %v1863 = vunpack.c.l.b16 %v1840
      %v1864 = vunpack.c.l.b16 %v1841
      %v1865 = vunpack.c.l.b16 %v1842
      %v1866 = vunpack.c.l.b16 %v1843
      %v1867 = vpack.c.b16 %v1860, %v1859
      %v1868 = vpack.c.b16 %v1862, %v1861
      %v1869 = vpack.c.b16 %v1864, %v1863
      %v1870 = vpack.c.b16 %v1866, %v1865
      %v1876 = vsel %vm1311, %v1835, 0
      %1878 = vmatprep.subr.bf16.mxu0 0
      %1879 = vmatpush1.bf16.msra.mxu0 0
      %1880 = vmatprep.subr.bf16.mxu0 0
      %1881 = vmatpush1.bf16.msra.mxu0 0
      %1882 = vmatprep.subr.bf16.mxu0 0
      %1883 = vmatpush1.bf16.msra.mxu0 0
      %1884 = vmatprep.subr.bf16.mxu0 0
      %1885 = vmatpush1.bf16.msra.mxu0 0
      %1886 = vmatprep.subr.bf16.mxu0 0
      %1887 = vmatpush1.bf16.msra.mxu0 %v1870
      %1888 = vmatprep.subr.bf16.mxu0 0
      %1889 = vmatpush1.bf16.msra.mxu0 %v1869
      %1890 = vmatprep.subr.bf16.mxu0 0
      %1891 = vmatpush1.bf16.msra.mxu0 %v1868
      %1892 = vmatprep.subr.bf16.mxu0 0
      %1893 = vmatpush1.bf16.msra.mxu0 %v1867
      %1894 = vmatprep.subr.bf16.mxu0 0
      %1895 = vmatpush2.bf16.msra.mxu0 0
      %1896 = vmatprep.subr.bf16.mxu0 0
      %1897 = vmatpush2.bf16.msra.mxu0 0
      %1898 = vmatprep.subr.bf16.mxu0 0
      %1899 = vmatpush2.bf16.msra.mxu0 0
      %1900 = vmatprep.subr.bf16.mxu0 0
      %1901 = vmatpush2.bf16.msra.mxu0 0
      %1902 = vmatprep.subr.bf16.mxu0 0
      %1903 = vmatpush2.bf16.msra.mxu0 0
      %1904 = vmatprep.subr.bf16.mxu0 0
      %1905 = vmatpush2.bf16.msra.mxu0 0
      %1906 = vmatprep.subr.bf16.mxu0 0
      %1907 = vmatpush2.bf16.msra.mxu0 0
      %1908 = vmatprep.subr.bf16.mxu0 0
      %1909 = vmatpush2.bf16.msra.mxu0 0
      %1910 = vmatprep.mubr.bf16.mxu0 0
      %1911 = vmatmul.mubr.bf16.gmra.mxu0 %v1876
      %v1912 = vpop.f32.mrf.mxu0
      %v1913 = vadd.f32 %v1849, %v1912
      %v1914 = vpop.f32.mrf.mxu0
      %v1915 = vpop.f32.mrf.mxu0
      %v1916 = vadd.f32 %v1849, %v1915
      %v1917 = vpop.f32.mrf.mxu0
      %1918 = vdwg.mxu0
      %v1919 = vadd.f32 %v1640, %v1913
      %v1920 = vadd.f32 %v1641, %v1916
      %1923 = vrot.lane.b32.xlu0 %v1919, 3
      %v1924 = vpop.permute.xlu0 %1923
      %1925 = vrot.lane.b32.xlu0 %v1920, 3
      %v1926 = vpop.permute.xlu0 %1925
      %vm1929 = vcmask 285720
      %1930 = vst.msk [vmem:[#allocation5] sm:$0xff] %vm1929, %v1924
      %1931 = vst.msk [vmem:[#allocation5 + $0x8] sm:$0xff] %vm1929, %v1926
    $region101: #{egnn_sparse_network_forward.3} parent=1 // pred_fallthru
      _
    // Predicated region
    $region102: #{egnn_sparse_network_forward.3} parent=1 // pred_check
      _
    $region103: #{egnn_sparse_network_forward.3} parent=1 // pred_check_branch
      %1933 = sbr.rel (0) target = $region105
    $region104: #{egnn_sparse_network_forward.3} parent=1 // pred_region
      %s1935 = ssub.s32 256, 256
      %1936 = vsyncadd [#allocation6], %s1935
      %s1937 = sshll.u32 [#allocation5], 4
      %s1938 = int_to_ptr.vmem [resolvable:$true] %s1937
      %1943 = dma.vmem_to_hbm [thread:$0]  %s1938, 256, %s23, [#allocation6], 128, 128, 8
    $region105: #{egnn_sparse_network_forward.3} parent=1 // pred_fallthru
      _
    // Predicated region
    $region106: #{egnn_sparse_network_forward.3} parent=1 // pred_check
      _
    $region107: #{egnn_sparse_network_forward.3} parent=1 // pred_check_branch
      %1945 = sbr.rel (0) target = $region109
    $region108: #{egnn_sparse_network_forward.3} parent=1 // pred_region
      %1946 = dma.done [#allocation6], 256
    $region109: #{egnn_sparse_network_forward.3} parent=1 // pred_fallthru
      _
    %1947 = vsyncpa [#allocation6], 1

</llo_original>
